<compile_context>
chip_gen: v5e
topology: v5e:2x2
jax: 0.10.0
libtpu: 0.0.40
codegen_flags: <defaults>
</compile_context>

<pallas_src>
import jax
import jax.numpy as jnp
from jax import lax
from jax.experimental import pallas as pl
from jax.experimental.pallas import tpu as pltpu


_VMEM = pl.BlockSpec(memory_space=pltpu.MemorySpace.VMEM)


# ----------------------------------------------------------------------------
# Kernels
# ----------------------------------------------------------------------------
def _make_bilstm_kernel(kinds, S, B, H, emit_seq, emit_state, emit_pool):
    """Build a single-direction-per-grid-point BiLSTM kernel.

    kinds: tuple of "uni" (source shape (S*B, D)) or "bi" (source shape
           (2, S*B, H), i.e. a previous bidirectional layer's output).
    Gate order along the fused 4H axis matches PyTorch nn.LSTM: i, f, g, o.
    """
    n_src = len(kinds)
    G = 4 * H

    def kernel(*args):
        x_refs = args[:n_src]
        w_refs = args[n_src:2 * n_src]
        whh_ref, b_ref, h0_ref, c0_ref = args[2 * n_src:2 * n_src + 4]
        pos = 2 * n_src + 4
        out_ref = hN_ref = cN_ref = pool_ref = None
        if emit_seq:
            out_ref = args[pos]; pos += 1
        if emit_state:
            hN_ref, cN_ref = args[pos], args[pos + 1]; pos += 2
        if emit_pool:
            pool_ref = args[pos]; pos += 1
        proj_scr = args[pos]                       # (S, B, 4H) f32 scratch

        d = pl.program_id(0)                       # 0 = forward, 1 = backward

        # ---- hoisted, gate-fused input projection for ALL timesteps --------
        # One (S*B, D) x (D, 4H) MXU matmul per source; bias folded in once.
        proj = jnp.zeros((S * B, G), jnp.float32)
        for x_ref, w_ref, kind in zip(x_refs, w_refs, kinds):
            w = w_ref[...]                                         # bf16
            if kind == "uni":                                      # (S*B, D)
                x = x_ref[...].astype(jnp.bfloat16)
                proj = proj + jnp.dot(x, w,
                                      preferred_element_type=jnp.float32)
            else:                                                  # (2, S*B, H)
                proj = proj + jnp.dot(x_ref[0].astype(jnp.bfloat16), w[:H],
                                      preferred_element_type=jnp.float32)
                proj = proj + jnp.dot(x_ref[1].astype(jnp.bfloat16), w[H:],
                                      preferred_element_type=jnp.float32)
        proj = proj + b_ref[...]                   # (1, 4H) broadcast, once

        # Distribute to (S, B, 4H) so the recurrence indexes the untiled time
        # axis with a (direction-dependent) dynamic index.
        for s in range(S):                         # static, tiny
            proj_scr[s] = proj[s * B:(s + 1) * B, :]

        whh = whh_ref[...]                         # (H, 4H) bf16
        h0 = h0_ref[...]                           # (B, H)  f32
        c0 = c0_ref[...]

        def step(s, carry):
            h, c, acc = carry
            t = s + d * (S - 1 - 2 * s)            # fwd: s ; bwd: S-1-s
            g = proj_scr[t] + jnp.dot(h.astype(jnp.bfloat16), whh,
                                      preferred_element_type=jnp.float32)
            i = jax.nn.sigmoid(g[:, 0:H])
            f = jax.nn.sigmoid(g[:, H:2 * H])
            gg = jnp.tanh(g[:, 2 * H:3 * H])
            o = jax.nn.sigmoid(g[:, 3 * H:4 * H])
            c_new = f * c + i * gg                 # cell state kept in f32
            h_new = o * jnp.tanh(c_new)
            if emit_seq:
                out_ref[t] = h_new                 # in-kernel reversal for bwd
            return h_new, c_new, acc + h_new

        hN, cN, acc = lax.fori_loop(
            0, S, step, (h0, c0, jnp.zeros((B, H), jnp.float32)), unroll=True)

        if emit_state:
            hN_ref[...] = hN
            cN_ref[...] = cN
        if emit_pool:
            pool_ref[...] = acc * (1.0 / S)        # fused avg_pool1d over time

    return kernel


def _pool_linear_kernel(pooled_ref, w_ref, b_ref, o_ref):
    """Final Linear on the (fwd|bwd) mean-pooled features.

    pooled_ref: (2, B, H)   w_ref: (2H, O)   b_ref: (1, O)   o_ref: (B, O)
    """
    H = pooled_ref.shape[-1]
    w = w_ref[...]
    o_ref[...] = (jnp.dot(pooled_ref[0], w[:H],
                          preferred_element_type=jnp.float32)
                  + jnp.dot(pooled_ref[1], w[H:],
                            preferred_element_type=jnp.float32)
                  + b_ref[...])


# ----------------------------------------------------------------------------
# Wrappers
# ----------------------------------------------------------------------------
def _full_spec(arr):
    n = arr.ndim
    return pl.BlockSpec(arr.shape, lambda *_: (0,) * n)


def _bilstm_layer(sources, p, h0, c0, *, S, B, H,
                  emit_seq=True, emit_state=True, emit_pool=False):
    """One bidirectional LSTM layer as a single pallas_call (grid over dir).

    sources: list of ("uni", (S*B, D) f32) or ("bi", (2, S*B, H) f32).
    p: {"wih": [(2, D_src, 4H) bf16 per source], "whh": (2, H, 4H) bf16,
        "b": (2, 1, 4H) f32 (= b_ih + b_hh)}.
    h0, c0: (2, B, H) f32 initial states, direction order [fwd, bwd].
    """
    G = 4 * H
    kinds = tuple(k for k, _ in sources)

    inputs, in_specs = [], []
    for _, arr in sources:
        inputs.append(arr)
        in_specs.append(_full_spec(arr))
    for w in p["wih"]:
        inputs.append(w)
        in_specs.append(pl.BlockSpec((None,) + w.shape[1:],
                                     lambda d: (d, 0, 0)))
    inputs += [p["whh"], p["b"], h0, c0]
    in_specs += [pl.BlockSpec((None, H, G), lambda d: (d, 0, 0)),
                 pl.BlockSpec((None, 1, G), lambda d: (d, 0, 0)),
                 pl.BlockSpec((None, B, H), lambda d: (d, 0, 0)),
                 pl.BlockSpec((None, B, H), lambda d: (d, 0, 0))]

    out_shape, out_specs = [], []
    if emit_seq:
        out_shape.append(jax.ShapeDtypeStruct((2, S, B, H), jnp.float32))
        out_specs.append(pl.BlockSpec((None, S, B, H),
                                      lambda d: (d, 0, 0, 0)))
    if emit_state:
        out_shape += [jax.ShapeDtypeStruct((2, B, H), jnp.float32)] * 2
        out_specs += [pl.BlockSpec((None, B, H), lambda d: (d, 0, 0))] * 2
    if emit_pool:
        out_shape.append(jax.ShapeDtypeStruct((2, B, H), jnp.float32))
        out_specs.append(pl.BlockSpec((None, B, H), lambda d: (d, 0, 0)))

    kernel = _make_bilstm_kernel(kinds, S, B, H, emit_seq, emit_state,
                                 emit_pool)
    return pl.pallas_call(
        kernel,
        grid=(2,),                                  # direction axis fwd/bwd
        out_shape=tuple(out_shape),
        in_specs=in_specs,
        out_specs=tuple(out_specs),
        scratch_shapes=[pltpu.VMEM((S, B, G), jnp.float32)],
        compiler_params=pltpu.CompilerParams(
            dimension_semantics=("parallel",)),     # megacore shard on v7x
    )(*inputs)


def dc_bilstm_forward(params, input_batch):
    # Embedding lookups (glue): (B, S) -> (B, S, E); padding_idx rows are zero.
    emb = params["embeddings"][input_batch]
    emo = params["emotion_embeddings"][input_batch]
    embedded = jnp.concatenate([emb, emo], axis=2)
    embedded = jnp.transpose(embedded, (1, 0, 2)).astype(jnp.float32)  # (S,B,E)
    # dropout -> identity (eval mode)

    S, B, E = embedded.shape
    H = params["lstm1"]["whh"].shape[1]
    emb_flat = embedded.reshape(S * B, E)           # layout-preserving
    zeros = jnp.zeros((2, B, H), jnp.float32)

    out1, h1, c1 = _bilstm_layer([("uni", emb_flat)], params["lstm1"],
                                 zeros, zeros, S=S, B=B, H=H)
    out1f = out1.reshape(2, S * B, H)
    out2, h2, c2 = _bilstm_layer([("bi", out1f), ("uni", emb_flat)],
                                 params["lstm2"], h1, c1, S=S, B=B, H=H)
    out2f = out2.reshape(2, S * B, H)
    # Layer 3: sequence output is consumed only by the avg-pool -> fuse it and
    # never write out3 to HBM.
    (pooled,) = _bilstm_layer([("bi", out1f), ("bi", out2f), ("uni", emb_flat)],
                              params["lstm3"], h2, c2, S=S, B=B, H=H,
                              emit_seq=False, emit_state=False, emit_pool=True)

    return pl.pallas_call(
        _pool_linear_kernel,
        out_shape=jax.ShapeDtypeStruct((B, params["w_out"].shape[-1]),
                                       jnp.float32),
        in_specs=[_VMEM, _VMEM, _VMEM],
        out_specs=_VMEM,
    )(pooled, params["w_out"], params["b_out"])


# ----------------------------------------------------------------------------
# Deterministic parameter init (synthetic; mirrors the shapes in __init__)
# ----------------------------------------------------------------------------
def init_params(key, *, vocab_size, embedding_dim, emotion_embedding_dim,
                lstm_hidden_dim, output_size, pad_idx):
    H = lstm_hidden_dim
    keys = iter(jax.random.split(key, 64))

    def u(shape, scale, dtype=jnp.float32):
        return jax.random.uniform(next(keys), shape, jnp.float32,
                                  -scale, scale).astype(dtype)

    emb = jax.random.normal(next(keys), (vocab_size, embedding_dim),
                            jnp.float32)
    emb = emb.at[pad_idx].set(0.0)
    emo = jax.random.normal(next(keys), (vocab_size, emotion_embedding_dim),
                            jnp.float32)
    emo = emo.at[pad_idx].set(0.0)

    def lstm_layer(src_dims):
        s = 1.0 / float(H) ** 0.5
        return {
            # Gate-fused, per-source input weights: (dir, D_src, 4H), gate
            # order i,f,g,o along the last axis.  bf16 for the MXU.
            "wih": [u((2, d, 4 * H), s, jnp.bfloat16) for d in src_dims],
            "whh": u((2, H, 4 * H), s, jnp.bfloat16),
            "b": u((2, 1, 4 * H), s),               # combined b_ih + b_hh, f32
        }

    E = embedding_dim + emotion_embedding_dim
    so = 1.0 / float(2 * H) ** 0.5
    return {
        "embeddings": emb,
        "emotion_embeddings": emo,
        "lstm1": lstm_layer([E]),
        "lstm2": lstm_layer([2 * H, E]),            # sources: out1, embedded
        "lstm3": lstm_layer([2 * H, 2 * H, E]),     # out1, out2, embedded
        "w_out": u((2 * H, output_size), so),
        "b_out": u((1, output_size), so),
    }


# ----------------------------------------------------------------------------
if __name__ == "__main__":
    cfg = dict(vocab_size=50, embedding_dim=32, emotion_embedding_dim=16,
               lstm_hidden_dim=32, output_size=8, pad_idx=0)
    key = jax.random.PRNGKey(0)
    pkey, dkey = jax.random.split(key)
    params = init_params(pkey, **cfg)

    batch, seq = 2, 8
    input_batch = jax.random.randint(dkey, (batch, seq), 0, cfg["vocab_size"],
                                     dtype=jnp.int32)

    out = jax.jit(dc_bilstm_forward)(params, input_batch)
    jax.block_until_ready(out)
    assert out.shape == (batch, cfg["output_size"]) and out.dtype == jnp.float32
    print("KERNEL_OK")
</pallas_src>

<mosaic_0001>
module attributes {stable_mosaic.version = 11 : i64} {
  func.func @kernel(%arg0: i32, %arg1: memref<2x16x32xf32, #tpu.memory_space<vmem>>, %arg2: memref<2x16x32xf32, #tpu.memory_space<vmem>>, %arg3: memref<16x48xf32, #tpu.memory_space<vmem>>, %arg4: memref<1x64x128xbf16, #tpu.memory_space<vmem>>, %arg5: memref<1x64x128xbf16, #tpu.memory_space<vmem>>, %arg6: memref<1x48x128xbf16, #tpu.memory_space<vmem>>, %arg7: memref<1x32x128xbf16, #tpu.memory_space<vmem>>, %arg8: memref<1x1x128xf32, #tpu.memory_space<vmem>>, %arg9: memref<1x2x32xf32, #tpu.memory_space<vmem>>, %arg10: memref<1x2x32xf32, #tpu.memory_space<vmem>>, %arg11: memref<1x2x32xf32, #tpu.memory_space<vmem>>, %arg12: memref<8x2x128xf32, #tpu.memory_space<vmem>>) attributes {dimension_semantics = [#tpu.dimension_semantics<parallel>], iteration_bounds = array<i64: 2>, scalar_prefetch = 0 : i64, scratch_operands = 1 : i64, tpu.core_type = #tpu.core_type<tc>, window_params = [{pipeline_mode = #tpu.pipeline_mode<synchronous>, transform_indices = @transform_0, window_bounds = array<i64: 2, 16, 32>}, {pipeline_mode = #tpu.pipeline_mode<synchronous>, transform_indices = @transform_1, window_bounds = array<i64: 2, 16, 32>}, {pipeline_mode = #tpu.pipeline_mode<synchronous>, transform_indices = @transform_2, window_bounds = array<i64: 16, 48>}, {transform_indices = @transform_3, window_bounds = array<i64: 1, 64, 128>}, {transform_indices = @transform_4, window_bounds = array<i64: 1, 64, 128>}, {transform_indices = @transform_5, window_bounds = array<i64: 1, 48, 128>}, {transform_indices = @transform_6, window_bounds = array<i64: 1, 32, 128>}, {transform_indices = @transform_7, window_bounds = array<i64: 1, 1, 128>}, {transform_indices = @transform_8, window_bounds = array<i64: 1, 2, 32>}, {transform_indices = @transform_9, window_bounds = array<i64: 1, 2, 32>}, {transform_indices = @transform_10, window_bounds = array<i64: 1, 2, 32>}]} {
    %cst = arith.constant 0.000000e+00 : f32
    %0 = vector.broadcast %cst : f32 to vector<16x128xf32>
    %c0 = arith.constant 0 : index
    %c0_0 = arith.constant 0 : index
    %c0_1 = arith.constant 0 : index
    %1 = vector.load %arg4[%c0, %c0_0, %c0_1] : memref<1x64x128xbf16, #tpu.memory_space<vmem>>, vector<1x64x128xbf16>
    %2 = vector.shape_cast %1 : vector<1x64x128xbf16> to vector<64x128xbf16>
    %c0_2 = arith.constant 0 : index
    %c0_3 = arith.constant 0 : index
    %c0_4 = arith.constant 0 : index
    %3 = vector.load %arg1[%c0_2, %c0_3, %c0_4] : memref<2x16x32xf32, #tpu.memory_space<vmem>>, vector<1x16x32xf32>
    %4 = vector.shape_cast %3 : vector<1x16x32xf32> to vector<16x32xf32>
    %5 = arith.truncf %4 : vector<16x32xf32> to vector<16x32xbf16>
    %6 = vector.extract_strided_slice %2 {offsets = [0, 0], sizes = [32, 128], strides = [1, 1]} : vector<64x128xbf16> to vector<32x128xbf16>
    %cst_5 = arith.constant dense<0.000000e+00> : vector<16x128xf32>
    %7 = tpu.matmul %5, %6, %cst_5 {dimension_numbers = #tpu.dot_dimension_numbers<[1], [0], [0], [1], [0, 0, 1, 1], [], []>} : vector<16x32xbf16>, vector<32x128xbf16>, vector<16x128xf32> -> vector<16x128xf32>
    %8 = arith.addf %0, %7 : vector<16x128xf32>
    %c1 = arith.constant 1 : index
    %c0_6 = arith.constant 0 : index
    %c0_7 = arith.constant 0 : index
    %9 = vector.load %arg1[%c1, %c0_6, %c0_7] : memref<2x16x32xf32, #tpu.memory_space<vmem>>, vector<1x16x32xf32>
    %10 = vector.shape_cast %9 : vector<1x16x32xf32> to vector<16x32xf32>
    %11 = arith.truncf %10 : vector<16x32xf32> to vector<16x32xbf16>
    %12 = vector.extract_strided_slice %2 {offsets = [32, 0], sizes = [32, 128], strides = [1, 1]} : vector<64x128xbf16> to vector<32x128xbf16>
    %cst_8 = arith.constant dense<0.000000e+00> : vector<16x128xf32>
    %13 = tpu.matmul %11, %12, %cst_8 {dimension_numbers = #tpu.dot_dimension_numbers<[1], [0], [0], [1], [0, 0, 1, 1], [], []>} : vector<16x32xbf16>, vector<32x128xbf16>, vector<16x128xf32> -> vector<16x128xf32>
    %14 = arith.addf %8, %13 : vector<16x128xf32>
    %c0_9 = arith.constant 0 : index
    %c0_10 = arith.constant 0 : index
    %c0_11 = arith.constant 0 : index
    %15 = vector.load %arg5[%c0_9, %c0_10, %c0_11] : memref<1x64x128xbf16, #tpu.memory_space<vmem>>, vector<1x64x128xbf16>
    %16 = vector.shape_cast %15 : vector<1x64x128xbf16> to vector<64x128xbf16>
    %c0_12 = arith.constant 0 : index
    %c0_13 = arith.constant 0 : index
    %c0_14 = arith.constant 0 : index
    %17 = vector.load %arg2[%c0_12, %c0_13, %c0_14] : memref<2x16x32xf32, #tpu.memory_space<vmem>>, vector<1x16x32xf32>
    %18 = vector.shape_cast %17 : vector<1x16x32xf32> to vector<16x32xf32>
    %19 = arith.truncf %18 : vector<16x32xf32> to vector<16x32xbf16>
    %20 = vector.extract_strided_slice %16 {offsets = [0, 0], sizes = [32, 128], strides = [1, 1]} : vector<64x128xbf16> to vector<32x128xbf16>
    %cst_15 = arith.constant dense<0.000000e+00> : vector<16x128xf32>
    %21 = tpu.matmul %19, %20, %cst_15 {dimension_numbers = #tpu.dot_dimension_numbers<[1], [0], [0], [1], [0, 0, 1, 1], [], []>} : vector<16x32xbf16>, vector<32x128xbf16>, vector<16x128xf32> -> vector<16x128xf32>
    %22 = arith.addf %14, %21 : vector<16x128xf32>
    %c1_16 = arith.constant 1 : index
    %c0_17 = arith.constant 0 : index
    %c0_18 = arith.constant 0 : index
    %23 = vector.load %arg2[%c1_16, %c0_17, %c0_18] : memref<2x16x32xf32, #tpu.memory_space<vmem>>, vector<1x16x32xf32>
    %24 = vector.shape_cast %23 : vector<1x16x32xf32> to vector<16x32xf32>
    %25 = arith.truncf %24 : vector<16x32xf32> to vector<16x32xbf16>
    %26 = vector.extract_strided_slice %16 {offsets = [32, 0], sizes = [32, 128], strides = [1, 1]} : vector<64x128xbf16> to vector<32x128xbf16>
    %cst_19 = arith.constant dense<0.000000e+00> : vector<16x128xf32>
    %27 = tpu.matmul %25, %26, %cst_19 {dimension_numbers = #tpu.dot_dimension_numbers<[1], [0], [0], [1], [0, 0, 1, 1], [], []>} : vector<16x32xbf16>, vector<32x128xbf16>, vector<16x128xf32> -> vector<16x128xf32>
    %28 = arith.addf %22, %27 : vector<16x128xf32>
    %c0_20 = arith.constant 0 : index
    %c0_21 = arith.constant 0 : index
    %c0_22 = arith.constant 0 : index
    %29 = vector.load %arg6[%c0_20, %c0_21, %c0_22] : memref<1x48x128xbf16, #tpu.memory_space<vmem>>, vector<1x48x128xbf16>
    %30 = vector.shape_cast %29 : vector<1x48x128xbf16> to vector<48x128xbf16>
    %c0_23 = arith.constant 0 : index
    %c0_24 = arith.constant 0 : index
    %31 = vector.load %arg3[%c0_23, %c0_24] : memref<16x48xf32, #tpu.memory_space<vmem>>, vector<16x48xf32>
    %32 = arith.truncf %31 : vector<16x48xf32> to vector<16x48xbf16>
    %cst_25 = arith.constant dense<0.000000e+00> : vector<16x128xf32>
    %33 = tpu.matmul %32, %30, %cst_25 {dimension_numbers = #tpu.dot_dimension_numbers<[1], [0], [0], [1], [0, 0, 1, 1], [], []>} : vector<16x48xbf16>, vector<48x128xbf16>, vector<16x128xf32> -> vector<16x128xf32>
    %34 = arith.addf %28, %33 : vector<16x128xf32>
    %c0_26 = arith.constant 0 : index
    %c0_27 = arith.constant 0 : index
    %c0_28 = arith.constant 0 : index
    %35 = vector.load %arg8[%c0_26, %c0_27, %c0_28] : memref<1x1x128xf32, #tpu.memory_space<vmem>>, vector<1x1x128xf32>
    %36 = vector.shape_cast %35 : vector<1x1x128xf32> to vector<1x128xf32>
    %37 = vector.broadcast %36 : vector<1x128xf32> to vector<16x128xf32>
    %38 = arith.addf %34, %37 : vector<16x128xf32>
    %39 = vector.extract_strided_slice %38 {offsets = [0, 0], sizes = [2, 128], strides = [1, 1]} : vector<16x128xf32> to vector<2x128xf32>
    %c0_29 = arith.constant 0 : index
    %c0_30 = arith.constant 0 : index
    %c0_31 = arith.constant 0 : index
    %40 = vector.load %arg12[%c0_29, %c0_30, %c0_31] : memref<8x2x128xf32, #tpu.memory_space<vmem>>, vector<1x2x128xf32>
    %41 = vector.shape_cast %40 : vector<1x2x128xf32> to vector<2x128xf32>
    %42 = vector.shape_cast %39 : vector<2x128xf32> to vector<1x2x128xf32>
    tpu.vector_store %arg12[%c0_29, %c0_30, %c0_31], %42 {strides = array<i32>} : memref<8x2x128xf32, #tpu.memory_space<vmem>>, vector<1x2x128xf32>,
    %43 = vector.extract_strided_slice %38 {offsets = [2, 0], sizes = [2, 128], strides = [1, 1]} : vector<16x128xf32> to vector<2x128xf32>
    %c1_32 = arith.constant 1 : index
    %c0_33 = arith.constant 0 : index
    %c0_34 = arith.constant 0 : index
    %44 = vector.load %arg12[%c1_32, %c0_33, %c0_34] : memref<8x2x128xf32, #tpu.memory_space<vmem>>, vector<1x2x128xf32>
    %45 = vector.shape_cast %44 : vector<1x2x128xf32> to vector<2x128xf32>
    %46 = vector.shape_cast %43 : vector<2x128xf32> to vector<1x2x128xf32>
    tpu.vector_store %arg12[%c1_32, %c0_33, %c0_34], %46 {strides = array<i32>} : memref<8x2x128xf32, #tpu.memory_space<vmem>>, vector<1x2x128xf32>,
    %47 = vector.extract_strided_slice %38 {offsets = [4, 0], sizes = [2, 128], strides = [1, 1]} : vector<16x128xf32> to vector<2x128xf32>
    %c2 = arith.constant 2 : index
    %c0_35 = arith.constant 0 : index
    %c0_36 = arith.constant 0 : index
    %48 = vector.load %arg12[%c2, %c0_35, %c0_36] : memref<8x2x128xf32, #tpu.memory_space<vmem>>, vector<1x2x128xf32>
    %49 = vector.shape_cast %48 : vector<1x2x128xf32> to vector<2x128xf32>
    %50 = vector.shape_cast %47 : vector<2x128xf32> to vector<1x2x128xf32>
    tpu.vector_store %arg12[%c2, %c0_35, %c0_36], %50 {strides = array<i32>} : memref<8x2x128xf32, #tpu.memory_space<vmem>>, vector<1x2x128xf32>,
    %51 = vector.extract_strided_slice %38 {offsets = [6, 0], sizes = [2, 128], strides = [1, 1]} : vector<16x128xf32> to vector<2x128xf32>
    %c3 = arith.constant 3 : index
    %c0_37 = arith.constant 0 : index
    %c0_38 = arith.constant 0 : index
    %52 = vector.load %arg12[%c3, %c0_37, %c0_38] : memref<8x2x128xf32, #tpu.memory_space<vmem>>, vector<1x2x128xf32>
    %53 = vector.shape_cast %52 : vector<1x2x128xf32> to vector<2x128xf32>
    %54 = vector.shape_cast %51 : vector<2x128xf32> to vector<1x2x128xf32>
    tpu.vector_store %arg12[%c3, %c0_37, %c0_38], %54 {strides = array<i32>} : memref<8x2x128xf32, #tpu.memory_space<vmem>>, vector<1x2x128xf32>,
    %55 = vector.extract_strided_slice %38 {offsets = [8, 0], sizes = [2, 128], strides = [1, 1]} : vector<16x128xf32> to vector<2x128xf32>
    %c4 = arith.constant 4 : index
    %c0_39 = arith.constant 0 : index
    %c0_40 = arith.constant 0 : index
    %56 = vector.load %arg12[%c4, %c0_39, %c0_40] : memref<8x2x128xf32, #tpu.memory_space<vmem>>, vector<1x2x128xf32>
    %57 = vector.shape_cast %56 : vector<1x2x128xf32> to vector<2x128xf32>
    %58 = vector.shape_cast %55 : vector<2x128xf32> to vector<1x2x128xf32>
    tpu.vector_store %arg12[%c4, %c0_39, %c0_40], %58 {strides = array<i32>} : memref<8x2x128xf32, #tpu.memory_space<vmem>>, vector<1x2x128xf32>,
    %59 = vector.extract_strided_slice %38 {offsets = [10, 0], sizes = [2, 128], strides = [1, 1]} : vector<16x128xf32> to vector<2x128xf32>
    %c5 = arith.constant 5 : index
    %c0_41 = arith.constant 0 : index
    %c0_42 = arith.constant 0 : index
    %60 = vector.load %arg12[%c5, %c0_41, %c0_42] : memref<8x2x128xf32, #tpu.memory_space<vmem>>, vector<1x2x128xf32>
    %61 = vector.shape_cast %60 : vector<1x2x128xf32> to vector<2x128xf32>
    %62 = vector.shape_cast %59 : vector<2x128xf32> to vector<1x2x128xf32>
    tpu.vector_store %arg12[%c5, %c0_41, %c0_42], %62 {strides = array<i32>} : memref<8x2x128xf32, #tpu.memory_space<vmem>>, vector<1x2x128xf32>,
    %63 = vector.extract_strided_slice %38 {offsets = [12, 0], sizes = [2, 128], strides = [1, 1]} : vector<16x128xf32> to vector<2x128xf32>
    %c6 = arith.constant 6 : index
    %c0_43 = arith.constant 0 : index
    %c0_44 = arith.constant 0 : index
    %64 = vector.load %arg12[%c6, %c0_43, %c0_44] : memref<8x2x128xf32, #tpu.memory_space<vmem>>, vector<1x2x128xf32>
    %65 = vector.shape_cast %64 : vector<1x2x128xf32> to vector<2x128xf32>
    %66 = vector.shape_cast %63 : vector<2x128xf32> to vector<1x2x128xf32>
    tpu.vector_store %arg12[%c6, %c0_43, %c0_44], %66 {strides = array<i32>} : memref<8x2x128xf32, #tpu.memory_space<vmem>>, vector<1x2x128xf32>,
    %67 = vector.extract_strided_slice %38 {offsets = [14, 0], sizes = [2, 128], strides = [1, 1]} : vector<16x128xf32> to vector<2x128xf32>
    %c7 = arith.constant 7 : index
    %c0_45 = arith.constant 0 : index
    %c0_46 = arith.constant 0 : index
    %68 = vector.load %arg12[%c7, %c0_45, %c0_46] : memref<8x2x128xf32, #tpu.memory_space<vmem>>, vector<1x2x128xf32>
    %69 = vector.shape_cast %68 : vector<1x2x128xf32> to vector<2x128xf32>
    %70 = vector.shape_cast %67 : vector<2x128xf32> to vector<1x2x128xf32>
    tpu.vector_store %arg12[%c7, %c0_45, %c0_46], %70 {strides = array<i32>} : memref<8x2x128xf32, #tpu.memory_space<vmem>>, vector<1x2x128xf32>,
    %c0_47 = arith.constant 0 : index
    %c0_48 = arith.constant 0 : index
    %c0_49 = arith.constant 0 : index
    %71 = vector.load %arg7[%c0_47, %c0_48, %c0_49] : memref<1x32x128xbf16, #tpu.memory_space<vmem>>, vector<1x32x128xbf16>
    %72 = vector.shape_cast %71 : vector<1x32x128xbf16> to vector<32x128xbf16>
    %c0_50 = arith.constant 0 : index
    %c0_51 = arith.constant 0 : index
    %c0_52 = arith.constant 0 : index
    %73 = vector.load %arg9[%c0_50, %c0_51, %c0_52] : memref<1x2x32xf32, #tpu.memory_space<vmem>>, vector<1x2x32xf32>
    %74 = vector.shape_cast %73 : vector<1x2x32xf32> to vector<2x32xf32>
    %c0_53 = arith.constant 0 : index
    %c0_54 = arith.constant 0 : index
    %c0_55 = arith.constant 0 : index
    %75 = vector.load %arg10[%c0_53, %c0_54, %c0_55] : memref<1x2x32xf32, #tpu.memory_space<vmem>>, vector<1x2x32xf32>
    %76 = vector.shape_cast %75 : vector<1x2x32xf32> to vector<2x32xf32>
    %cst_56 = arith.constant 0.000000e+00 : f32
    %77 = vector.broadcast %cst_56 : f32 to vector<2x32xf32>
    %c0_i32 = arith.constant 0 : i32
    %c2_i32 = arith.constant 2 : i32
    %78 = arith.muli %c2_i32, %c0_i32 : i32
    %c7_i32 = arith.constant 7 : i32
    %79 = arith.subi %c7_i32, %78 : i32
    %80 = arith.muli %arg0, %79 : i32
    %81 = arith.addi %c0_i32, %80 : i32
    %82 = arith.index_cast %81 : i32 to index
    %c0_57 = arith.constant 0 : index
    %c0_58 = arith.constant 0 : index
    %83 = vector.load %arg12[%82, %c0_57, %c0_58] : memref<8x2x128xf32, #tpu.memory_space<vmem>>, vector<1x2x128xf32>
    %84 = vector.shape_cast %83 : vector<1x2x128xf32> to vector<2x128xf32>
    %85 = arith.truncf %74 : vector<2x32xf32> to vector<2x32xbf16>
    %cst_59 = arith.constant dense<0.000000e+00> : vector<2x128xf32>
    %86 = tpu.matmul %85, %72, %cst_59 {dimension_numbers = #tpu.dot_dimension_numbers<[1], [0], [0], [1], [0, 0, 1, 1], [], []>} : vector<2x32xbf16>, vector<32x128xbf16>, vector<2x128xf32> -> vector<2x128xf32>
    %87 = arith.addf %84, %86 : vector<2x128xf32>
    %88 = vector.extract_strided_slice %87 {offsets = [0, 0], sizes = [2, 32], strides = [1, 1]} : vector<2x128xf32> to vector<2x32xf32>
    %89 = arith.negf %88 : vector<2x32xf32>
    %90 = math.exp %89 : vector<2x32xf32>
    %cst_60 = arith.constant 1.000000e+00 : f32
    %91 = vector.broadcast %cst_60 : f32 to vector<2x32xf32>
    %92 = arith.addf %91, %90 : vector<2x32xf32>
    %93 = arith.divf %91, %92 : vector<2x32xf32>
    %94 = vector.extract_strided_slice %87 {offsets = [0, 32], sizes = [2, 32], strides = [1, 1]} : vector<2x128xf32> to vector<2x32xf32>
    %95 = arith.negf %94 : vector<2x32xf32>
    %96 = math.exp %95 : vector<2x32xf32>
    %cst_61 = arith.constant 1.000000e+00 : f32
    %97 = vector.broadcast %cst_61 : f32 to vector<2x32xf32>
    %98 = arith.addf %97, %96 : vector<2x32xf32>
    %99 = arith.divf %97, %98 : vector<2x32xf32>
    %100 = vector.extract_strided_slice %87 {offsets = [0, 64], sizes = [2, 32], strides = [1, 1]} : vector<2x128xf32> to vector<2x32xf32>
    %101 = math.tanh %100 : vector<2x32xf32>
    %102 = vector.extract_strided_slice %87 {offsets = [0, 96], sizes = [2, 32], strides = [1, 1]} : vector<2x128xf32> to vector<2x32xf32>
    %103 = arith.negf %102 : vector<2x32xf32>
    %104 = math.exp %103 : vector<2x32xf32>
    %cst_62 = arith.constant 1.000000e+00 : f32
    %105 = vector.broadcast %cst_62 : f32 to vector<2x32xf32>
    %106 = arith.addf %105, %104 : vector<2x32xf32>
    %107 = arith.divf %105, %106 : vector<2x32xf32>
    %108 = arith.mulf %99, %76 : vector<2x32xf32>
    %109 = arith.mulf %93, %101 : vector<2x32xf32>
    %110 = arith.addf %108, %109 : vector<2x32xf32>
    %111 = math.tanh %110 : vector<2x32xf32>
    %112 = arith.mulf %107, %111 : vector<2x32xf32>
    %113 = arith.addf %77, %112 : vector<2x32xf32>
    %c1_i32 = arith.constant 1 : i32
    %c2_i32_63 = arith.constant 2 : i32
    %114 = arith.muli %c2_i32_63, %c1_i32 : i32
    %c7_i32_64 = arith.constant 7 : i32
    %115 = arith.subi %c7_i32_64, %114 : i32
    %116 = arith.muli %arg0, %115 : i32
    %117 = arith.addi %c1_i32, %116 : i32
    %118 = arith.index_cast %117 : i32 to index
    %c0_65 = arith.constant 0 : index
    %c0_66 = arith.constant 0 : index
    %119 = vector.load %arg12[%118, %c0_65, %c0_66] : memref<8x2x128xf32, #tpu.memory_space<vmem>>, vector<1x2x128xf32>
    %120 = vector.shape_cast %119 : vector<1x2x128xf32> to vector<2x128xf32>
    %121 = arith.truncf %112 : vector<2x32xf32> to vector<2x32xbf16>
    %cst_67 = arith.constant dense<0.000000e+00> : vector<2x128xf32>
    %122 = tpu.matmul %121, %72, %cst_67 {dimension_numbers = #tpu.dot_dimension_numbers<[1], [0], [0], [1], [0, 0, 1, 1], [], []>} : vector<2x32xbf16>, vector<32x128xbf16>, vector<2x128xf32> -> vector<2x128xf32>
    %123 = arith.addf %120, %122 : vector<2x128xf32>
    %124 = vector.extract_strided_slice %123 {offsets = [0, 0], sizes = [2, 32], strides = [1, 1]} : vector<2x128xf32> to vector<2x32xf32>
    %125 = arith.negf %124 : vector<2x32xf32>
    %126 = math.exp %125 : vector<2x32xf32>
    %cst_68 = arith.constant 1.000000e+00 : f32
    %127 = vector.broadcast %cst_68 : f32 to vector<2x32xf32>
    %128 = arith.addf %127, %126 : vector<2x32xf32>
    %129 = arith.divf %127, %128 : vector<2x32xf32>
    %130 = vector.extract_strided_slice %123 {offsets = [0, 32], sizes = [2, 32], strides = [1, 1]} : vector<2x128xf32> to vector<2x32xf32>
    %131 = arith.negf %130 : vector<2x32xf32>
    %132 = math.exp %131 : vector<2x32xf32>
    %cst_69 = arith.constant 1.000000e+00 : f32
    %133 = vector.broadcast %cst_69 : f32 to vector<2x32xf32>
    %134 = arith.addf %133, %132 : vector<2x32xf32>
    %135 = arith.divf %133, %134 : vector<2x32xf32>
    %136 = vector.extract_strided_slice %123 {offsets = [0, 64], sizes = [2, 32], strides = [1, 1]} : vector<2x128xf32> to vector<2x32xf32>
    %137 = math.tanh %136 : vector<2x32xf32>
    %138 = vector.extract_strided_slice %123 {offsets = [0, 96], sizes = [2, 32], strides = [1, 1]} : vector<2x128xf32> to vector<2x32xf32>
    %139 = arith.negf %138 : vector<2x32xf32>
    %140 = math.exp %139 : vector<2x32xf32>
    %cst_70 = arith.constant 1.000000e+00 : f32
    %141 = vector.broadcast %cst_70 : f32 to vector<2x32xf32>
    %142 = arith.addf %141, %140 : vector<2x32xf32>
    %143 = arith.divf %141, %142 : vector<2x32xf32>
    %144 = arith.mulf %135, %110 : vector<2x32xf32>
    %145 = arith.mulf %129, %137 : vector<2x32xf32>
    %146 = arith.addf %144, %145 : vector<2x32xf32>
    %147 = math.tanh %146 : vector<2x32xf32>
    %148 = arith.mulf %143, %147 : vector<2x32xf32>
    %149 = arith.addf %113, %148 : vector<2x32xf32>
    %c2_i32_71 = arith.constant 2 : i32
    %c2_i32_72 = arith.constant 2 : i32
    %150 = arith.muli %c2_i32_72, %c2_i32_71 : i32
    %c7_i32_73 = arith.constant 7 : i32
    %151 = arith.subi %c7_i32_73, %150 : i32
    %152 = arith.muli %arg0, %151 : i32
    %153 = arith.addi %c2_i32_71, %152 : i32
    %154 = arith.index_cast %153 : i32 to index
    %c0_74 = arith.constant 0 : index
    %c0_75 = arith.constant 0 : index
    %155 = vector.load %arg12[%154, %c0_74, %c0_75] : memref<8x2x128xf32, #tpu.memory_space<vmem>>, vector<1x2x128xf32>
    %156 = vector.shape_cast %155 : vector<1x2x128xf32> to vector<2x128xf32>
    %157 = arith.truncf %148 : vector<2x32xf32> to vector<2x32xbf16>
    %cst_76 = arith.constant dense<0.000000e+00> : vector<2x128xf32>
    %158 = tpu.matmul %157, %72, %cst_76 {dimension_numbers = #tpu.dot_dimension_numbers<[1], [0], [0], [1], [0, 0, 1, 1], [], []>} : vector<2x32xbf16>, vector<32x128xbf16>, vector<2x128xf32> -> vector<2x128xf32>
    %159 = arith.addf %156, %158 : vector<2x128xf32>
    %160 = vector.extract_strided_slice %159 {offsets = [0, 0], sizes = [2, 32], strides = [1, 1]} : vector<2x128xf32> to vector<2x32xf32>
    %161 = arith.negf %160 : vector<2x32xf32>
    %162 = math.exp %161 : vector<2x32xf32>
    %cst_77 = arith.constant 1.000000e+00 : f32
    %163 = vector.broadcast %cst_77 : f32 to vector<2x32xf32>
    %164 = arith.addf %163, %162 : vector<2x32xf32>
    %165 = arith.divf %163, %164 : vector<2x32xf32>
    %166 = vector.extract_strided_slice %159 {offsets = [0, 32], sizes = [2, 32], strides = [1, 1]} : vector<2x128xf32> to vector<2x32xf32>
    %167 = arith.negf %166 : vector<2x32xf32>
    %168 = math.exp %167 : vector<2x32xf32>
    %cst_78 = arith.constant 1.000000e+00 : f32
    %169 = vector.broadcast %cst_78 : f32 to vector<2x32xf32>
    %170 = arith.addf %169, %168 : vector<2x32xf32>
    %171 = arith.divf %169, %170 : vector<2x32xf32>
    %172 = vector.extract_strided_slice %159 {offsets = [0, 64], sizes = [2, 32], strides = [1, 1]} : vector<2x128xf32> to vector<2x32xf32>
    %173 = math.tanh %172 : vector<2x32xf32>
    %174 = vector.extract_strided_slice %159 {offsets = [0, 96], sizes = [2, 32], strides = [1, 1]} : vector<2x128xf32> to vector<2x32xf32>
    %175 = arith.negf %174 : vector<2x32xf32>
    %176 = math.exp %175 : vector<2x32xf32>
    %cst_79 = arith.constant 1.000000e+00 : f32
    %177 = vector.broadcast %cst_79 : f32 to vector<2x32xf32>
    %178 = arith.addf %177, %176 : vector<2x32xf32>
    %179 = arith.divf %177, %178 : vector<2x32xf32>
    %180 = arith.mulf %171, %146 : vector<2x32xf32>
    %181 = arith.mulf %165, %173 : vector<2x32xf32>
    %182 = arith.addf %180, %181 : vector<2x32xf32>
    %183 = math.tanh %182 : vector<2x32xf32>
    %184 = arith.mulf %179, %183 : vector<2x32xf32>
    %185 = arith.addf %149, %184 : vector<2x32xf32>
    %c3_i32 = arith.constant 3 : i32
    %c2_i32_80 = arith.constant 2 : i32
    %186 = arith.muli %c2_i32_80, %c3_i32 : i32
    %c7_i32_81 = arith.constant 7 : i32
    %187 = arith.subi %c7_i32_81, %186 : i32
    %188 = arith.muli %arg0, %187 : i32
    %189 = arith.addi %c3_i32, %188 : i32
    %190 = arith.index_cast %189 : i32 to index
    %c0_82 = arith.constant 0 : index
    %c0_83 = arith.constant 0 : index
    %191 = vector.load %arg12[%190, %c0_82, %c0_83] : memref<8x2x128xf32, #tpu.memory_space<vmem>>, vector<1x2x128xf32>
    %192 = vector.shape_cast %191 : vector<1x2x128xf32> to vector<2x128xf32>
    %193 = arith.truncf %184 : vector<2x32xf32> to vector<2x32xbf16>
    %cst_84 = arith.constant dense<0.000000e+00> : vector<2x128xf32>
    %194 = tpu.matmul %193, %72, %cst_84 {dimension_numbers = #tpu.dot_dimension_numbers<[1], [0], [0], [1], [0, 0, 1, 1], [], []>} : vector<2x32xbf16>, vector<32x128xbf16>, vector<2x128xf32> -> vector<2x128xf32>
    %195 = arith.addf %192, %194 : vector<2x128xf32>
    %196 = vector.extract_strided_slice %195 {offsets = [0, 0], sizes = [2, 32], strides = [1, 1]} : vector<2x128xf32> to vector<2x32xf32>
    %197 = arith.negf %196 : vector<2x32xf32>
    %198 = math.exp %197 : vector<2x32xf32>
    %cst_85 = arith.constant 1.000000e+00 : f32
    %199 = vector.broadcast %cst_85 : f32 to vector<2x32xf32>
    %200 = arith.addf %199, %198 : vector<2x32xf32>
    %201 = arith.divf %199, %200 : vector<2x32xf32>
    %202 = vector.extract_strided_slice %195 {offsets = [0, 32], sizes = [2, 32], strides = [1, 1]} : vector<2x128xf32> to vector<2x32xf32>
    %203 = arith.negf %202 : vector<2x32xf32>
    %204 = math.exp %203 : vector<2x32xf32>
    %cst_86 = arith.constant 1.000000e+00 : f32
    %205 = vector.broadcast %cst_86 : f32 to vector<2x32xf32>
    %206 = arith.addf %205, %204 : vector<2x32xf32>
    %207 = arith.divf %205, %206 : vector<2x32xf32>
    %208 = vector.extract_strided_slice %195 {offsets = [0, 64], sizes = [2, 32], strides = [1, 1]} : vector<2x128xf32> to vector<2x32xf32>
    %209 = math.tanh %208 : vector<2x32xf32>
    %210 = vector.extract_strided_slice %195 {offsets = [0, 96], sizes = [2, 32], strides = [1, 1]} : vector<2x128xf32> to vector<2x32xf32>
    %211 = arith.negf %210 : vector<2x32xf32>
    %212 = math.exp %211 : vector<2x32xf32>
    %cst_87 = arith.constant 1.000000e+00 : f32
    %213 = vector.broadcast %cst_87 : f32 to vector<2x32xf32>
    %214 = arith.addf %213, %212 : vector<2x32xf32>
    %215 = arith.divf %213, %214 : vector<2x32xf32>
    %216 = arith.mulf %207, %182 : vector<2x32xf32>
    %217 = arith.mulf %201, %209 : vector<2x32xf32>
    %218 = arith.addf %216, %217 : vector<2x32xf32>
    %219 = math.tanh %218 : vector<2x32xf32>
    %220 = arith.mulf %215, %219 : vector<2x32xf32>
    %221 = arith.addf %185, %220 : vector<2x32xf32>
    %c4_i32 = arith.constant 4 : i32
    %c2_i32_88 = arith.constant 2 : i32
    %222 = arith.muli %c2_i32_88, %c4_i32 : i32
    %c7_i32_89 = arith.constant 7 : i32
    %223 = arith.subi %c7_i32_89, %222 : i32
    %224 = arith.muli %arg0, %223 : i32
    %225 = arith.addi %c4_i32, %224 : i32
    %226 = arith.index_cast %225 : i32 to index
    %c0_90 = arith.constant 0 : index
    %c0_91 = arith.constant 0 : index
    %227 = vector.load %arg12[%226, %c0_90, %c0_91] : memref<8x2x128xf32, #tpu.memory_space<vmem>>, vector<1x2x128xf32>
    %228 = vector.shape_cast %227 : vector<1x2x128xf32> to vector<2x128xf32>
    %229 = arith.truncf %220 : vector<2x32xf32> to vector<2x32xbf16>
    %cst_92 = arith.constant dense<0.000000e+00> : vector<2x128xf32>
    %230 = tpu.matmul %229, %72, %cst_92 {dimension_numbers = #tpu.dot_dimension_numbers<[1], [0], [0], [1], [0, 0, 1, 1], [], []>} : vector<2x32xbf16>, vector<32x128xbf16>, vector<2x128xf32> -> vector<2x128xf32>
    %231 = arith.addf %228, %230 : vector<2x128xf32>
    %232 = vector.extract_strided_slice %231 {offsets = [0, 0], sizes = [2, 32], strides = [1, 1]} : vector<2x128xf32> to vector<2x32xf32>
    %233 = arith.negf %232 : vector<2x32xf32>
    %234 = math.exp %233 : vector<2x32xf32>
    %cst_93 = arith.constant 1.000000e+00 : f32
    %235 = vector.broadcast %cst_93 : f32 to vector<2x32xf32>
    %236 = arith.addf %235, %234 : vector<2x32xf32>
    %237 = arith.divf %235, %236 : vector<2x32xf32>
    %238 = vector.extract_strided_slice %231 {offsets = [0, 32], sizes = [2, 32], strides = [1, 1]} : vector<2x128xf32> to vector<2x32xf32>
    %239 = arith.negf %238 : vector<2x32xf32>
    %240 = math.exp %239 : vector<2x32xf32>
    %cst_94 = arith.constant 1.000000e+00 : f32
    %241 = vector.broadcast %cst_94 : f32 to vector<2x32xf32>
    %242 = arith.addf %241, %240 : vector<2x32xf32>
    %243 = arith.divf %241, %242 : vector<2x32xf32>
    %244 = vector.extract_strided_slice %231 {offsets = [0, 64], sizes = [2, 32], strides = [1, 1]} : vector<2x128xf32> to vector<2x32xf32>
    %245 = math.tanh %244 : vector<2x32xf32>
    %246 = vector.extract_strided_slice %231 {offsets = [0, 96], sizes = [2, 32], strides = [1, 1]} : vector<2x128xf32> to vector<2x32xf32>
    %247 = arith.negf %246 : vector<2x32xf32>
    %248 = math.exp %247 : vector<2x32xf32>
    %cst_95 = arith.constant 1.000000e+00 : f32
    %249 = vector.broadcast %cst_95 : f32 to vector<2x32xf32>
    %250 = arith.addf %249, %248 : vector<2x32xf32>
    %251 = arith.divf %249, %250 : vector<2x32xf32>
    %252 = arith.mulf %243, %218 : vector<2x32xf32>
    %253 = arith.mulf %237, %245 : vector<2x32xf32>
    %254 = arith.addf %252, %253 : vector<2x32xf32>
    %255 = math.tanh %254 : vector<2x32xf32>
    %256 = arith.mulf %251, %255 : vector<2x32xf32>
    %257 = arith.addf %221, %256 : vector<2x32xf32>
    %c5_i32 = arith.constant 5 : i32
    %c2_i32_96 = arith.constant 2 : i32
    %258 = arith.muli %c2_i32_96, %c5_i32 : i32
    %c7_i32_97 = arith.constant 7 : i32
    %259 = arith.subi %c7_i32_97, %258 : i32
    %260 = arith.muli %arg0, %259 : i32
    %261 = arith.addi %c5_i32, %260 : i32
    %262 = arith.index_cast %261 : i32 to index
    %c0_98 = arith.constant 0 : index
    %c0_99 = arith.constant 0 : index
    %263 = vector.load %arg12[%262, %c0_98, %c0_99] : memref<8x2x128xf32, #tpu.memory_space<vmem>>, vector<1x2x128xf32>
    %264 = vector.shape_cast %263 : vector<1x2x128xf32> to vector<2x128xf32>
    %265 = arith.truncf %256 : vector<2x32xf32> to vector<2x32xbf16>
    %cst_100 = arith.constant dense<0.000000e+00> : vector<2x128xf32>
    %266 = tpu.matmul %265, %72, %cst_100 {dimension_numbers = #tpu.dot_dimension_numbers<[1], [0], [0], [1], [0, 0, 1, 1], [], []>} : vector<2x32xbf16>, vector<32x128xbf16>, vector<2x128xf32> -> vector<2x128xf32>
    %267 = arith.addf %264, %266 : vector<2x128xf32>
    %268 = vector.extract_strided_slice %267 {offsets = [0, 0], sizes = [2, 32], strides = [1, 1]} : vector<2x128xf32> to vector<2x32xf32>
    %269 = arith.negf %268 : vector<2x32xf32>
    %270 = math.exp %269 : vector<2x32xf32>
    %cst_101 = arith.constant 1.000000e+00 : f32
    %271 = vector.broadcast %cst_101 : f32 to vector<2x32xf32>
    %272 = arith.addf %271, %270 : vector<2x32xf32>
    %273 = arith.divf %271, %272 : vector<2x32xf32>
    %274 = vector.extract_strided_slice %267 {offsets = [0, 32], sizes = [2, 32], strides = [1, 1]} : vector<2x128xf32> to vector<2x32xf32>
    %275 = arith.negf %274 : vector<2x32xf32>
    %276 = math.exp %275 : vector<2x32xf32>
    %cst_102 = arith.constant 1.000000e+00 : f32
    %277 = vector.broadcast %cst_102 : f32 to vector<2x32xf32>
    %278 = arith.addf %277, %276 : vector<2x32xf32>
    %279 = arith.divf %277, %278 : vector<2x32xf32>
    %280 = vector.extract_strided_slice %267 {offsets = [0, 64], sizes = [2, 32], strides = [1, 1]} : vector<2x128xf32> to vector<2x32xf32>
    %281 = math.tanh %280 : vector<2x32xf32>
    %282 = vector.extract_strided_slice %267 {offsets = [0, 96], sizes = [2, 32], strides = [1, 1]} : vector<2x128xf32> to vector<2x32xf32>
    %283 = arith.negf %282 : vector<2x32xf32>
    %284 = math.exp %283 : vector<2x32xf32>
    %cst_103 = arith.constant 1.000000e+00 : f32
    %285 = vector.broadcast %cst_103 : f32 to vector<2x32xf32>
    %286 = arith.addf %285, %284 : vector<2x32xf32>
    %287 = arith.divf %285, %286 : vector<2x32xf32>
    %288 = arith.mulf %279, %254 : vector<2x32xf32>
    %289 = arith.mulf %273, %281 : vector<2x32xf32>
    %290 = arith.addf %288, %289 : vector<2x32xf32>
    %291 = math.tanh %290 : vector<2x32xf32>
    %292 = arith.mulf %287, %291 : vector<2x32xf32>
    %293 = arith.addf %257, %292 : vector<2x32xf32>
    %c6_i32 = arith.constant 6 : i32
    %c2_i32_104 = arith.constant 2 : i32
    %294 = arith.muli %c2_i32_104, %c6_i32 : i32
    %c7_i32_105 = arith.constant 7 : i32
    %295 = arith.subi %c7_i32_105, %294 : i32
    %296 = arith.muli %arg0, %295 : i32
    %297 = arith.addi %c6_i32, %296 : i32
    %298 = arith.index_cast %297 : i32 to index
    %c0_106 = arith.constant 0 : index
    %c0_107 = arith.constant 0 : index
    %299 = vector.load %arg12[%298, %c0_106, %c0_107] : memref<8x2x128xf32, #tpu.memory_space<vmem>>, vector<1x2x128xf32>
    %300 = vector.shape_cast %299 : vector<1x2x128xf32> to vector<2x128xf32>
    %301 = arith.truncf %292 : vector<2x32xf32> to vector<2x32xbf16>
    %cst_108 = arith.constant dense<0.000000e+00> : vector<2x128xf32>
    %302 = tpu.matmul %301, %72, %cst_108 {dimension_numbers = #tpu.dot_dimension_numbers<[1], [0], [0], [1], [0, 0, 1, 1], [], []>} : vector<2x32xbf16>, vector<32x128xbf16>, vector<2x128xf32> -> vector<2x128xf32>
    %303 = arith.addf %300, %302 : vector<2x128xf32>
    %304 = vector.extract_strided_slice %303 {offsets = [0, 0], sizes = [2, 32], strides = [1, 1]} : vector<2x128xf32> to vector<2x32xf32>
    %305 = arith.negf %304 : vector<2x32xf32>
    %306 = math.exp %305 : vector<2x32xf32>
    %cst_109 = arith.constant 1.000000e+00 : f32
    %307 = vector.broadcast %cst_109 : f32 to vector<2x32xf32>
    %308 = arith.addf %307, %306 : vector<2x32xf32>
    %309 = arith.divf %307, %308 : vector<2x32xf32>
    %310 = vector.extract_strided_slice %303 {offsets = [0, 32], sizes = [2, 32], strides = [1, 1]} : vector<2x128xf32> to vector<2x32xf32>
    %311 = arith.negf %310 : vector<2x32xf32>
    %312 = math.exp %311 : vector<2x32xf32>
    %cst_110 = arith.constant 1.000000e+00 : f32
    %313 = vector.broadcast %cst_110 : f32 to vector<2x32xf32>
    %314 = arith.addf %313, %312 : vector<2x32xf32>
    %315 = arith.divf %313, %314 : vector<2x32xf32>
    %316 = vector.extract_strided_slice %303 {offsets = [0, 64], sizes = [2, 32], strides = [1, 1]} : vector<2x128xf32> to vector<2x32xf32>
    %317 = math.tanh %316 : vector<2x32xf32>
    %318 = vector.extract_strided_slice %303 {offsets = [0, 96], sizes = [2, 32], strides = [1, 1]} : vector<2x128xf32> to vector<2x32xf32>
    %319 = arith.negf %318 : vector<2x32xf32>
    %320 = math.exp %319 : vector<2x32xf32>
    %cst_111 = arith.constant 1.000000e+00 : f32
    %321 = vector.broadcast %cst_111 : f32 to vector<2x32xf32>
    %322 = arith.addf %321, %320 : vector<2x32xf32>
    %323 = arith.divf %321, %322 : vector<2x32xf32>
    %324 = arith.mulf %315, %290 : vector<2x32xf32>
    %325 = arith.mulf %309, %317 : vector<2x32xf32>
    %326 = arith.addf %324, %325 : vector<2x32xf32>
    %327 = math.tanh %326 : vector<2x32xf32>
    %328 = arith.mulf %323, %327 : vector<2x32xf32>
    %329 = arith.addf %293, %328 : vector<2x32xf32>
    %c7_i32_112 = arith.constant 7 : i32
    %c2_i32_113 = arith.constant 2 : i32
    %330 = arith.muli %c2_i32_113, %c7_i32_112 : i32
    %c7_i32_114 = arith.constant 7 : i32
    %331 = arith.subi %c7_i32_114, %330 : i32
    %332 = arith.muli %arg0, %331 : i32
    %333 = arith.addi %c7_i32_112, %332 : i32
    %334 = arith.index_cast %333 : i32 to index
    %c0_115 = arith.constant 0 : index
    %c0_116 = arith.constant 0 : index
    %335 = vector.load %arg12[%334, %c0_115, %c0_116] : memref<8x2x128xf32, #tpu.memory_space<vmem>>, vector<1x2x128xf32>
    %336 = vector.shape_cast %335 : vector<1x2x128xf32> to vector<2x128xf32>
    %337 = arith.truncf %328 : vector<2x32xf32> to vector<2x32xbf16>
    %cst_117 = arith.constant dense<0.000000e+00> : vector<2x128xf32>
    %338 = tpu.matmul %337, %72, %cst_117 {dimension_numbers = #tpu.dot_dimension_numbers<[1], [0], [0], [1], [0, 0, 1, 1], [], []>} : vector<2x32xbf16>, vector<32x128xbf16>, vector<2x128xf32> -> vector<2x128xf32>
    %339 = arith.addf %336, %338 : vector<2x128xf32>
    %340 = vector.extract_strided_slice %339 {offsets = [0, 0], sizes = [2, 32], strides = [1, 1]} : vector<2x128xf32> to vector<2x32xf32>
    %341 = arith.negf %340 : vector<2x32xf32>
    %342 = math.exp %341 : vector<2x32xf32>
    %cst_118 = arith.constant 1.000000e+00 : f32
    %343 = vector.broadcast %cst_118 : f32 to vector<2x32xf32>
    %344 = arith.addf %343, %342 : vector<2x32xf32>
    %345 = arith.divf %343, %344 : vector<2x32xf32>
    %346 = vector.extract_strided_slice %339 {offsets = [0, 32], sizes = [2, 32], strides = [1, 1]} : vector<2x128xf32> to vector<2x32xf32>
    %347 = arith.negf %346 : vector<2x32xf32>
    %348 = math.exp %347 : vector<2x32xf32>
    %cst_119 = arith.constant 1.000000e+00 : f32
    %349 = vector.broadcast %cst_119 : f32 to vector<2x32xf32>
    %350 = arith.addf %349, %348 : vector<2x32xf32>
    %351 = arith.divf %349, %350 : vector<2x32xf32>
    %352 = vector.extract_strided_slice %339 {offsets = [0, 64], sizes = [2, 32], strides = [1, 1]} : vector<2x128xf32> to vector<2x32xf32>
    %353 = math.tanh %352 : vector<2x32xf32>
    %354 = vector.extract_strided_slice %339 {offsets = [0, 96], sizes = [2, 32], strides = [1, 1]} : vector<2x128xf32> to vector<2x32xf32>
    %355 = arith.negf %354 : vector<2x32xf32>
    %356 = math.exp %355 : vector<2x32xf32>
    %cst_120 = arith.constant 1.000000e+00 : f32
    %357 = vector.broadcast %cst_120 : f32 to vector<2x32xf32>
    %358 = arith.addf %357, %356 : vector<2x32xf32>
    %359 = arith.divf %357, %358 : vector<2x32xf32>
    %360 = arith.mulf %351, %326 : vector<2x32xf32>
    %361 = arith.mulf %345, %353 : vector<2x32xf32>
    %362 = arith.addf %360, %361 : vector<2x32xf32>
    %363 = math.tanh %362 : vector<2x32xf32>
    %364 = arith.mulf %359, %363 : vector<2x32xf32>
    %365 = arith.addf %329, %364 : vector<2x32xf32>
    %c8_i32 = arith.constant 8 : i32
    %cst_121 = arith.constant 1.250000e-01 : f32
    %366 = vector.broadcast %cst_121 : f32 to vector<2x32xf32>
    %367 = arith.mulf %365, %366 : vector<2x32xf32>
    %c0_122 = arith.constant 0 : index
    %c0_123 = arith.constant 0 : index
    %c0_124 = arith.constant 0 : index
    %368 = vector.load %arg11[%c0_122, %c0_123, %c0_124] : memref<1x2x32xf32, #tpu.memory_space<vmem>>, vector<1x2x32xf32>
    %369 = vector.shape_cast %368 : vector<1x2x32xf32> to vector<2x32xf32>
    %370 = vector.shape_cast %367 : vector<2x32xf32> to vector<1x2x32xf32>
    tpu.vector_store %arg11[%c0_122, %c0_123, %c0_124], %370 {strides = array<i32>} : memref<1x2x32xf32, #tpu.memory_space<vmem>>, vector<1x2x32xf32>,
    return
  }
  func.func @transform_0(%arg0: i32) -> (i32, i32, i32) {
    %c0_i32 = arith.constant 0 : i32
    %c0_i32_0 = arith.constant 0 : i32
    %c0_i32_1 = arith.constant 0 : i32
    %c0_i32_2 = arith.constant 0 : i32
    return %c0_i32, %c0_i32_0, %c0_i32_1 : i32, i32, i32
  }
  func.func @transform_1(%arg0: i32) -> (i32, i32, i32) {
    %c0_i32 = arith.constant 0 : i32
    %c0_i32_0 = arith.constant 0 : i32
    %c0_i32_1 = arith.constant 0 : i32
    %c0_i32_2 = arith.constant 0 : i32
    return %c0_i32, %c0_i32_0, %c0_i32_1 : i32, i32, i32
  }
  func.func @transform_2(%arg0: i32) -> (i32, i32) {
    %c0_i32 = arith.constant 0 : i32
    %c0_i32_0 = arith.constant 0 : i32
    %c0_i32_1 = arith.constant 0 : i32
    return %c0_i32, %c0_i32_0 : i32, i32
  }
  func.func @transform_3(%arg0: i32) -> (i32, i32, i32) {
    %c0_i32 = arith.constant 0 : i32
    %c0_i32_0 = arith.constant 0 : i32
    %c0_i32_1 = arith.constant 0 : i32
    return %arg0, %c0_i32, %c0_i32_0 : i32, i32, i32
  }
  func.func @transform_4(%arg0: i32) -> (i32, i32, i32) {
    %c0_i32 = arith.constant 0 : i32
    %c0_i32_0 = arith.constant 0 : i32
    %c0_i32_1 = arith.constant 0 : i32
    return %arg0, %c0_i32, %c0_i32_0 : i32, i32, i32
  }
  func.func @transform_5(%arg0: i32) -> (i32, i32, i32) {
    %c0_i32 = arith.constant 0 : i32
    %c0_i32_0 = arith.constant 0 : i32
    %c0_i32_1 = arith.constant 0 : i32
    return %arg0, %c0_i32, %c0_i32_0 : i32, i32, i32
  }
  func.func @transform_6(%arg0: i32) -> (i32, i32, i32) {
    %c0_i32 = arith.constant 0 : i32
    %c0_i32_0 = arith.constant 0 : i32
    %c0_i32_1 = arith.constant 0 : i32
    return %arg0, %c0_i32, %c0_i32_0 : i32, i32, i32
  }
  func.func @transform_7(%arg0: i32) -> (i32, i32, i32) {
    %c0_i32 = arith.constant 0 : i32
    %c0_i32_0 = arith.constant 0 : i32
    %c0_i32_1 = arith.constant 0 : i32
    return %arg0, %c0_i32, %c0_i32_0 : i32, i32, i32
  }
  func.func @transform_8(%arg0: i32) -> (i32, i32, i32) {
    %c0_i32 = arith.constant 0 : i32
    %c0_i32_0 = arith.constant 0 : i32
    %c0_i32_1 = arith.constant 0 : i32
    return %arg0, %c0_i32, %c0_i32_0 : i32, i32, i32
  }
  func.func @transform_9(%arg0: i32) -> (i32, i32, i32) {
    %c0_i32 = arith.constant 0 : i32
    %c0_i32_0 = arith.constant 0 : i32
    %c0_i32_1 = arith.constant 0 : i32
    return %arg0, %c0_i32, %c0_i32_0 : i32, i32, i32
  }
  func.func @transform_10(%arg0: i32) -> (i32, i32, i32) {
    %c0_i32 = arith.constant 0 : i32
    %c0_i32_0 = arith.constant 0 : i32
    %c0_i32_1 = arith.constant 0 : i32
    return %arg0, %c0_i32, %c0_i32_0 : i32, i32, i32
  }
}

module attributes {stable_mosaic.version = 11 : i64} {
  func.func @_pool_linear_kernel(%arg0: memref<2x2x32xf32, #tpu.memory_space<vmem>>, %arg1: memref<64x8xf32, #tpu.memory_space<vmem>>, %arg2: memref<1x8xf32, #tpu.memory_space<vmem>>, %arg3: memref<2x8xf32, #tpu.memory_space<vmem>>) attributes {dimension_semantics = [], scalar_prefetch = 0 : i64, scratch_operands = 0 : i64, tpu.core_type = #tpu.core_type<tc>} {
    %c0 = arith.constant 0 : index
    %c0_0 = arith.constant 0 : index
    %0 = vector.load %arg1[%c0, %c0_0] : memref<64x8xf32, #tpu.memory_space<vmem>>, vector<64x8xf32>
    %c0_1 = arith.constant 0 : index
    %c0_2 = arith.constant 0 : index
    %c0_3 = arith.constant 0 : index
    %1 = vector.load %arg0[%c0_1, %c0_2, %c0_3] : memref<2x2x32xf32, #tpu.memory_space<vmem>>, vector<1x2x32xf32>
    %2 = vector.shape_cast %1 : vector<1x2x32xf32> to vector<2x32xf32>
    %3 = vector.extract_strided_slice %0 {offsets = [0, 0], sizes = [32, 8], strides = [1, 1]} : vector<64x8xf32> to vector<32x8xf32>
    %cst = arith.constant dense<0.000000e+00> : vector<2x8xf32>
    %4 = tpu.matmul %2, %3, %cst {dimension_numbers = #tpu.dot_dimension_numbers<[1], [0], [0], [1], [0, 0, 1, 1], [], []>} : vector<2x32xf32>, vector<32x8xf32>, vector<2x8xf32> -> vector<2x8xf32>
    %c1 = arith.constant 1 : index
    %c0_4 = arith.constant 0 : index
    %c0_5 = arith.constant 0 : index
    %5 = vector.load %arg0[%c1, %c0_4, %c0_5] : memref<2x2x32xf32, #tpu.memory_space<vmem>>, vector<1x2x32xf32>
    %6 = vector.shape_cast %5 : vector<1x2x32xf32> to vector<2x32xf32>
    %7 = vector.extract_strided_slice %0 {offsets = [32, 0], sizes = [32, 8], strides = [1, 1]} : vector<64x8xf32> to vector<32x8xf32>
    %cst_6 = arith.constant dense<0.000000e+00> : vector<2x8xf32>
    %8 = tpu.matmul %6, %7, %cst_6 {dimension_numbers = #tpu.dot_dimension_numbers<[1], [0], [0], [1], [0, 0, 1, 1], [], []>} : vector<2x32xf32>, vector<32x8xf32>, vector<2x8xf32> -> vector<2x8xf32>
    %9 = arith.addf %4, %8 : vector<2x8xf32>
    %c0_7 = arith.constant 0 : index
    %c0_8 = arith.constant 0 : index
    %10 = vector.load %arg2[%c0_7, %c0_8] : memref<1x8xf32, #tpu.memory_space<vmem>>, vector<1x8xf32>
    %11 = vector.broadcast %10 : vector<1x8xf32> to vector<2x8xf32>
    %12 = arith.addf %9, %11 : vector<2x8xf32>
    %c0_9 = arith.constant 0 : index
    %c0_10 = arith.constant 0 : index
    %13 = vector.load %arg3[%c0_9, %c0_10] : memref<2x8xf32, #tpu.memory_space<vmem>>, vector<2x8xf32>
    tpu.vector_store %arg3[%c0_9, %c0_10], %12 {strides = array<i32>} : memref<2x8xf32, #tpu.memory_space<vmem>>, vector<2x8xf32>,
    return
  }
}

module attributes {stable_mosaic.version = 11 : i64} {
  func.func @kernel(%arg0: i32, %arg1: memref<16x48xf32, #tpu.memory_space<vmem>>, %arg2: memref<1x48x128xbf16, #tpu.memory_space<vmem>>, %arg3: memref<1x32x128xbf16, #tpu.memory_space<vmem>>, %arg4: memref<1x1x128xf32, #tpu.memory_space<vmem>>, %arg5: memref<1x2x32xf32, #tpu.memory_space<vmem>>, %arg6: memref<1x2x32xf32, #tpu.memory_space<vmem>>, %arg7: memref<1x8x2x32xf32, #tpu.memory_space<vmem>>, %arg8: memref<1x2x32xf32, #tpu.memory_space<vmem>>, %arg9: memref<1x2x32xf32, #tpu.memory_space<vmem>>, %arg10: memref<8x2x128xf32, #tpu.memory_space<vmem>>) attributes {dimension_semantics = [#tpu.dimension_semantics<parallel>], iteration_bounds = array<i64: 2>, scalar_prefetch = 0 : i64, scratch_operands = 1 : i64, tpu.core_type = #tpu.core_type<tc>, window_params = [{pipeline_mode = #tpu.pipeline_mode<synchronous>, transform_indices = @transform_0, window_bounds = array<i64: 16, 48>}, {transform_indices = @transform_1, window_bounds = array<i64: 1, 48, 128>}, {transform_indices = @transform_2, window_bounds = array<i64: 1, 32, 128>}, {transform_indices = @transform_3, window_bounds = array<i64: 1, 1, 128>}, {transform_indices = @transform_4, window_bounds = array<i64: 1, 2, 32>}, {transform_indices = @transform_5, window_bounds = array<i64: 1, 2, 32>}, {transform_indices = @transform_6, window_bounds = array<i64: 1, 8, 2, 32>}, {transform_indices = @transform_7, window_bounds = array<i64: 1, 2, 32>}, {transform_indices = @transform_8, window_bounds = array<i64: 1, 2, 32>}]} {
    %cst = arith.constant 0.000000e+00 : f32
    %0 = vector.broadcast %cst : f32 to vector<16x128xf32>
    %c0 = arith.constant 0 : index
    %c0_0 = arith.constant 0 : index
    %c0_1 = arith.constant 0 : index
    %1 = vector.load %arg2[%c0, %c0_0, %c0_1] : memref<1x48x128xbf16, #tpu.memory_space<vmem>>, vector<1x48x128xbf16>
    %2 = vector.shape_cast %1 : vector<1x48x128xbf16> to vector<48x128xbf16>
    %c0_2 = arith.constant 0 : index
    %c0_3 = arith.constant 0 : index
    %3 = vector.load %arg1[%c0_2, %c0_3] : memref<16x48xf32, #tpu.memory_space<vmem>>, vector<16x48xf32>
    %4 = arith.truncf %3 : vector<16x48xf32> to vector<16x48xbf16>
    %cst_4 = arith.constant dense<0.000000e+00> : vector<16x128xf32>
    %5 = tpu.matmul %4, %2, %cst_4 {dimension_numbers = #tpu.dot_dimension_numbers<[1], [0], [0], [1], [0, 0, 1, 1], [], []>} : vector<16x48xbf16>, vector<48x128xbf16>, vector<16x128xf32> -> vector<16x128xf32>
    %6 = arith.addf %0, %5 : vector<16x128xf32>
    %c0_5 = arith.constant 0 : index
    %c0_6 = arith.constant 0 : index
    %c0_7 = arith.constant 0 : index
    %7 = vector.load %arg4[%c0_5, %c0_6, %c0_7] : memref<1x1x128xf32, #tpu.memory_space<vmem>>, vector<1x1x128xf32>
    %8 = vector.shape_cast %7 : vector<1x1x128xf32> to vector<1x128xf32>
    %9 = vector.broadcast %8 : vector<1x128xf32> to vector<16x128xf32>
    %10 = arith.addf %6, %9 : vector<16x128xf32>
    %11 = vector.extract_strided_slice %10 {offsets = [0, 0], sizes = [2, 128], strides = [1, 1]} : vector<16x128xf32> to vector<2x128xf32>
    %c0_8 = arith.constant 0 : index
    %c0_9 = arith.constant 0 : index
    %c0_10 = arith.constant 0 : index
    %12 = vector.load %arg10[%c0_8, %c0_9, %c0_10] : memref<8x2x128xf32, #tpu.memory_space<vmem>>, vector<1x2x128xf32>
    %13 = vector.shape_cast %12 : vector<1x2x128xf32> to vector<2x128xf32>
    %14 = vector.shape_cast %11 : vector<2x128xf32> to vector<1x2x128xf32>
    tpu.vector_store %arg10[%c0_8, %c0_9, %c0_10], %14 {strides = array<i32>} : memref<8x2x128xf32, #tpu.memory_space<vmem>>, vector<1x2x128xf32>,
    %15 = vector.extract_strided_slice %10 {offsets = [2, 0], sizes = [2, 128], strides = [1, 1]} : vector<16x128xf32> to vector<2x128xf32>
    %c1 = arith.constant 1 : index
    %c0_11 = arith.constant 0 : index
    %c0_12 = arith.constant 0 : index
    %16 = vector.load %arg10[%c1, %c0_11, %c0_12] : memref<8x2x128xf32, #tpu.memory_space<vmem>>, vector<1x2x128xf32>
    %17 = vector.shape_cast %16 : vector<1x2x128xf32> to vector<2x128xf32>
    %18 = vector.shape_cast %15 : vector<2x128xf32> to vector<1x2x128xf32>
    tpu.vector_store %arg10[%c1, %c0_11, %c0_12], %18 {strides = array<i32>} : memref<8x2x128xf32, #tpu.memory_space<vmem>>, vector<1x2x128xf32>,
    %19 = vector.extract_strided_slice %10 {offsets = [4, 0], sizes = [2, 128], strides = [1, 1]} : vector<16x128xf32> to vector<2x128xf32>
    %c2 = arith.constant 2 : index
    %c0_13 = arith.constant 0 : index
    %c0_14 = arith.constant 0 : index
    %20 = vector.load %arg10[%c2, %c0_13, %c0_14] : memref<8x2x128xf32, #tpu.memory_space<vmem>>, vector<1x2x128xf32>
    %21 = vector.shape_cast %20 : vector<1x2x128xf32> to vector<2x128xf32>
    %22 = vector.shape_cast %19 : vector<2x128xf32> to vector<1x2x128xf32>
    tpu.vector_store %arg10[%c2, %c0_13, %c0_14], %22 {strides = array<i32>} : memref<8x2x128xf32, #tpu.memory_space<vmem>>, vector<1x2x128xf32>,
    %23 = vector.extract_strided_slice %10 {offsets = [6, 0], sizes = [2, 128], strides = [1, 1]} : vector<16x128xf32> to vector<2x128xf32>
    %c3 = arith.constant 3 : index
    %c0_15 = arith.constant 0 : index
    %c0_16 = arith.constant 0 : index
    %24 = vector.load %arg10[%c3, %c0_15, %c0_16] : memref<8x2x128xf32, #tpu.memory_space<vmem>>, vector<1x2x128xf32>
    %25 = vector.shape_cast %24 : vector<1x2x128xf32> to vector<2x128xf32>
    %26 = vector.shape_cast %23 : vector<2x128xf32> to vector<1x2x128xf32>
    tpu.vector_store %arg10[%c3, %c0_15, %c0_16], %26 {strides = array<i32>} : memref<8x2x128xf32, #tpu.memory_space<vmem>>, vector<1x2x128xf32>,
    %27 = vector.extract_strided_slice %10 {offsets = [8, 0], sizes = [2, 128], strides = [1, 1]} : vector<16x128xf32> to vector<2x128xf32>
    %c4 = arith.constant 4 : index
    %c0_17 = arith.constant 0 : index
    %c0_18 = arith.constant 0 : index
    %28 = vector.load %arg10[%c4, %c0_17, %c0_18] : memref<8x2x128xf32, #tpu.memory_space<vmem>>, vector<1x2x128xf32>
    %29 = vector.shape_cast %28 : vector<1x2x128xf32> to vector<2x128xf32>
    %30 = vector.shape_cast %27 : vector<2x128xf32> to vector<1x2x128xf32>
    tpu.vector_store %arg10[%c4, %c0_17, %c0_18], %30 {strides = array<i32>} : memref<8x2x128xf32, #tpu.memory_space<vmem>>, vector<1x2x128xf32>,
    %31 = vector.extract_strided_slice %10 {offsets = [10, 0], sizes = [2, 128], strides = [1, 1]} : vector<16x128xf32> to vector<2x128xf32>
    %c5 = arith.constant 5 : index
    %c0_19 = arith.constant 0 : index
    %c0_20 = arith.constant 0 : index
    %32 = vector.load %arg10[%c5, %c0_19, %c0_20] : memref<8x2x128xf32, #tpu.memory_space<vmem>>, vector<1x2x128xf32>
    %33 = vector.shape_cast %32 : vector<1x2x128xf32> to vector<2x128xf32>
    %34 = vector.shape_cast %31 : vector<2x128xf32> to vector<1x2x128xf32>
    tpu.vector_store %arg10[%c5, %c0_19, %c0_20], %34 {strides = array<i32>} : memref<8x2x128xf32, #tpu.memory_space<vmem>>, vector<1x2x128xf32>,
    %35 = vector.extract_strided_slice %10 {offsets = [12, 0], sizes = [2, 128], strides = [1, 1]} : vector<16x128xf32> to vector<2x128xf32>
    %c6 = arith.constant 6 : index
    %c0_21 = arith.constant 0 : index
    %c0_22 = arith.constant 0 : index
    %36 = vector.load %arg10[%c6, %c0_21, %c0_22] : memref<8x2x128xf32, #tpu.memory_space<vmem>>, vector<1x2x128xf32>
    %37 = vector.shape_cast %36 : vector<1x2x128xf32> to vector<2x128xf32>
    %38 = vector.shape_cast %35 : vector<2x128xf32> to vector<1x2x128xf32>
    tpu.vector_store %arg10[%c6, %c0_21, %c0_22], %38 {strides = array<i32>} : memref<8x2x128xf32, #tpu.memory_space<vmem>>, vector<1x2x128xf32>,
    %39 = vector.extract_strided_slice %10 {offsets = [14, 0], sizes = [2, 128], strides = [1, 1]} : vector<16x128xf32> to vector<2x128xf32>
    %c7 = arith.constant 7 : index
    %c0_23 = arith.constant 0 : index
    %c0_24 = arith.constant 0 : index
    %40 = vector.load %arg10[%c7, %c0_23, %c0_24] : memref<8x2x128xf32, #tpu.memory_space<vmem>>, vector<1x2x128xf32>
    %41 = vector.shape_cast %40 : vector<1x2x128xf32> to vector<2x128xf32>
    %42 = vector.shape_cast %39 : vector<2x128xf32> to vector<1x2x128xf32>
    tpu.vector_store %arg10[%c7, %c0_23, %c0_24], %42 {strides = array<i32>} : memref<8x2x128xf32, #tpu.memory_space<vmem>>, vector<1x2x128xf32>,
    %c0_25 = arith.constant 0 : index
    %c0_26 = arith.constant 0 : index
    %c0_27 = arith.constant 0 : index
    %43 = vector.load %arg3[%c0_25, %c0_26, %c0_27] : memref<1x32x128xbf16, #tpu.memory_space<vmem>>, vector<1x32x128xbf16>
    %44 = vector.shape_cast %43 : vector<1x32x128xbf16> to vector<32x128xbf16>
    %c0_28 = arith.constant 0 : index
    %c0_29 = arith.constant 0 : index
    %c0_30 = arith.constant 0 : index
    %45 = vector.load %arg5[%c0_28, %c0_29, %c0_30] : memref<1x2x32xf32, #tpu.memory_space<vmem>>, vector<1x2x32xf32>
    %46 = vector.shape_cast %45 : vector<1x2x32xf32> to vector<2x32xf32>
    %c0_31 = arith.constant 0 : index
    %c0_32 = arith.constant 0 : index
    %c0_33 = arith.constant 0 : index
    %47 = vector.load %arg6[%c0_31, %c0_32, %c0_33] : memref<1x2x32xf32, #tpu.memory_space<vmem>>, vector<1x2x32xf32>
    %48 = vector.shape_cast %47 : vector<1x2x32xf32> to vector<2x32xf32>
    %c0_i32 = arith.constant 0 : i32
    %c2_i32 = arith.constant 2 : i32
    %49 = arith.muli %c2_i32, %c0_i32 : i32
    %c7_i32 = arith.constant 7 : i32
    %50 = arith.subi %c7_i32, %49 : i32
    %51 = arith.muli %arg0, %50 : i32
    %52 = arith.addi %c0_i32, %51 : i32
    %53 = arith.index_cast %52 : i32 to index
    %c0_34 = arith.constant 0 : index
    %c0_35 = arith.constant 0 : index
    %54 = vector.load %arg10[%53, %c0_34, %c0_35] : memref<8x2x128xf32, #tpu.memory_space<vmem>>, vector<1x2x128xf32>
    %55 = vector.shape_cast %54 : vector<1x2x128xf32> to vector<2x128xf32>
    %56 = arith.truncf %46 : vector<2x32xf32> to vector<2x32xbf16>
    %cst_36 = arith.constant dense<0.000000e+00> : vector<2x128xf32>
    %57 = tpu.matmul %56, %44, %cst_36 {dimension_numbers = #tpu.dot_dimension_numbers<[1], [0], [0], [1], [0, 0, 1, 1], [], []>} : vector<2x32xbf16>, vector<32x128xbf16>, vector<2x128xf32> -> vector<2x128xf32>
    %58 = arith.addf %55, %57 : vector<2x128xf32>
    %59 = vector.extract_strided_slice %58 {offsets = [0, 0], sizes = [2, 32], strides = [1, 1]} : vector<2x128xf32> to vector<2x32xf32>
    %60 = arith.negf %59 : vector<2x32xf32>
    %61 = math.exp %60 : vector<2x32xf32>
    %cst_37 = arith.constant 1.000000e+00 : f32
    %62 = vector.broadcast %cst_37 : f32 to vector<2x32xf32>
    %63 = arith.addf %62, %61 : vector<2x32xf32>
    %64 = arith.divf %62, %63 : vector<2x32xf32>
    %65 = vector.extract_strided_slice %58 {offsets = [0, 32], sizes = [2, 32], strides = [1, 1]} : vector<2x128xf32> to vector<2x32xf32>
    %66 = arith.negf %65 : vector<2x32xf32>
    %67 = math.exp %66 : vector<2x32xf32>
    %cst_38 = arith.constant 1.000000e+00 : f32
    %68 = vector.broadcast %cst_38 : f32 to vector<2x32xf32>
    %69 = arith.addf %68, %67 : vector<2x32xf32>
    %70 = arith.divf %68, %69 : vector<2x32xf32>
    %71 = vector.extract_strided_slice %58 {offsets = [0, 64], sizes = [2, 32], strides = [1, 1]} : vector<2x128xf32> to vector<2x32xf32>
    %72 = math.tanh %71 : vector<2x32xf32>
    %73 = vector.extract_strided_slice %58 {offsets = [0, 96], sizes = [2, 32], strides = [1, 1]} : vector<2x128xf32> to vector<2x32xf32>
    %74 = arith.negf %73 : vector<2x32xf32>
    %75 = math.exp %74 : vector<2x32xf32>
    %cst_39 = arith.constant 1.000000e+00 : f32
    %76 = vector.broadcast %cst_39 : f32 to vector<2x32xf32>
    %77 = arith.addf %76, %75 : vector<2x32xf32>
    %78 = arith.divf %76, %77 : vector<2x32xf32>
    %79 = arith.mulf %70, %48 : vector<2x32xf32>
    %80 = arith.mulf %64, %72 : vector<2x32xf32>
    %81 = arith.addf %79, %80 : vector<2x32xf32>
    %82 = math.tanh %81 : vector<2x32xf32>
    %83 = arith.mulf %78, %82 : vector<2x32xf32>
    %c0_40 = arith.constant 0 : index
    %84 = arith.index_cast %52 : i32 to index
    %c0_41 = arith.constant 0 : index
    %c0_42 = arith.constant 0 : index
    %85 = vector.load %arg7[%c0_40, %84, %c0_41, %c0_42] : memref<1x8x2x32xf32, #tpu.memory_space<vmem>>, vector<1x1x2x32xf32>
    %86 = vector.shape_cast %85 : vector<1x1x2x32xf32> to vector<2x32xf32>
    %87 = vector.shape_cast %83 : vector<2x32xf32> to vector<1x1x2x32xf32>
    tpu.vector_store %arg7[%c0_40, %84, %c0_41, %c0_42], %87 {strides = array<i32>} : memref<1x8x2x32xf32, #tpu.memory_space<vmem>>, vector<1x1x2x32xf32>,
    %c1_i32 = arith.constant 1 : i32
    %c2_i32_43 = arith.constant 2 : i32
    %88 = arith.muli %c2_i32_43, %c1_i32 : i32
    %c7_i32_44 = arith.constant 7 : i32
    %89 = arith.subi %c7_i32_44, %88 : i32
    %90 = arith.muli %arg0, %89 : i32
    %91 = arith.addi %c1_i32, %90 : i32
    %92 = arith.index_cast %91 : i32 to index
    %c0_45 = arith.constant 0 : index
    %c0_46 = arith.constant 0 : index
    %93 = vector.load %arg10[%92, %c0_45, %c0_46] : memref<8x2x128xf32, #tpu.memory_space<vmem>>, vector<1x2x128xf32>
    %94 = vector.shape_cast %93 : vector<1x2x128xf32> to vector<2x128xf32>
    %95 = arith.truncf %83 : vector<2x32xf32> to vector<2x32xbf16>
    %cst_47 = arith.constant dense<0.000000e+00> : vector<2x128xf32>
    %96 = tpu.matmul %95, %44, %cst_47 {dimension_numbers = #tpu.dot_dimension_numbers<[1], [0], [0], [1], [0, 0, 1, 1], [], []>} : vector<2x32xbf16>, vector<32x128xbf16>, vector<2x128xf32> -> vector<2x128xf32>
    %97 = arith.addf %94, %96 : vector<2x128xf32>
    %98 = vector.extract_strided_slice %97 {offsets = [0, 0], sizes = [2, 32], strides = [1, 1]} : vector<2x128xf32> to vector<2x32xf32>
    %99 = arith.negf %98 : vector<2x32xf32>
    %100 = math.exp %99 : vector<2x32xf32>
    %cst_48 = arith.constant 1.000000e+00 : f32
    %101 = vector.broadcast %cst_48 : f32 to vector<2x32xf32>
    %102 = arith.addf %101, %100 : vector<2x32xf32>
    %103 = arith.divf %101, %102 : vector<2x32xf32>
    %104 = vector.extract_strided_slice %97 {offsets = [0, 32], sizes = [2, 32], strides = [1, 1]} : vector<2x128xf32> to vector<2x32xf32>
    %105 = arith.negf %104 : vector<2x32xf32>
    %106 = math.exp %105 : vector<2x32xf32>
    %cst_49 = arith.constant 1.000000e+00 : f32
    %107 = vector.broadcast %cst_49 : f32 to vector<2x32xf32>
    %108 = arith.addf %107, %106 : vector<2x32xf32>
    %109 = arith.divf %107, %108 : vector<2x32xf32>
    %110 = vector.extract_strided_slice %97 {offsets = [0, 64], sizes = [2, 32], strides = [1, 1]} : vector<2x128xf32> to vector<2x32xf32>
    %111 = math.tanh %110 : vector<2x32xf32>
    %112 = vector.extract_strided_slice %97 {offsets = [0, 96], sizes = [2, 32], strides = [1, 1]} : vector<2x128xf32> to vector<2x32xf32>
    %113 = arith.negf %112 : vector<2x32xf32>
    %114 = math.exp %113 : vector<2x32xf32>
    %cst_50 = arith.constant 1.000000e+00 : f32
    %115 = vector.broadcast %cst_50 : f32 to vector<2x32xf32>
    %116 = arith.addf %115, %114 : vector<2x32xf32>
    %117 = arith.divf %115, %116 : vector<2x32xf32>
    %118 = arith.mulf %109, %81 : vector<2x32xf32>
    %119 = arith.mulf %103, %111 : vector<2x32xf32>
    %120 = arith.addf %118, %119 : vector<2x32xf32>
    %121 = math.tanh %120 : vector<2x32xf32>
    %122 = arith.mulf %117, %121 : vector<2x32xf32>
    %c0_51 = arith.constant 0 : index
    %123 = arith.index_cast %91 : i32 to index
    %c0_52 = arith.constant 0 : index
    %c0_53 = arith.constant 0 : index
    %124 = vector.load %arg7[%c0_51, %123, %c0_52, %c0_53] : memref<1x8x2x32xf32, #tpu.memory_space<vmem>>, vector<1x1x2x32xf32>
    %125 = vector.shape_cast %124 : vector<1x1x2x32xf32> to vector<2x32xf32>
    %126 = vector.shape_cast %122 : vector<2x32xf32> to vector<1x1x2x32xf32>
    tpu.vector_store %arg7[%c0_51, %123, %c0_52, %c0_53], %126 {strides = array<i32>} : memref<1x8x2x32xf32, #tpu.memory_space<vmem>>, vector<1x1x2x32xf32>,
    %c2_i32_54 = arith.constant 2 : i32
    %c2_i32_55 = arith.constant 2 : i32
    %127 = arith.muli %c2_i32_55, %c2_i32_54 : i32
    %c7_i32_56 = arith.constant 7 : i32
    %128 = arith.subi %c7_i32_56, %127 : i32
    %129 = arith.muli %arg0, %128 : i32
    %130 = arith.addi %c2_i32_54, %129 : i32
    %131 = arith.index_cast %130 : i32 to index
    %c0_57 = arith.constant 0 : index
    %c0_58 = arith.constant 0 : index
    %132 = vector.load %arg10[%131, %c0_57, %c0_58] : memref<8x2x128xf32, #tpu.memory_space<vmem>>, vector<1x2x128xf32>
    %133 = vector.shape_cast %132 : vector<1x2x128xf32> to vector<2x128xf32>
    %134 = arith.truncf %122 : vector<2x32xf32> to vector<2x32xbf16>
    %cst_59 = arith.constant dense<0.000000e+00> : vector<2x128xf32>
    %135 = tpu.matmul %134, %44, %cst_59 {dimension_numbers = #tpu.dot_dimension_numbers<[1], [0], [0], [1], [0, 0, 1, 1], [], []>} : vector<2x32xbf16>, vector<32x128xbf16>, vector<2x128xf32> -> vector<2x128xf32>
    %136 = arith.addf %133, %135 : vector<2x128xf32>
    %137 = vector.extract_strided_slice %136 {offsets = [0, 0], sizes = [2, 32], strides = [1, 1]} : vector<2x128xf32> to vector<2x32xf32>
    %138 = arith.negf %137 : vector<2x32xf32>
    %139 = math.exp %138 : vector<2x32xf32>
    %cst_60 = arith.constant 1.000000e+00 : f32
    %140 = vector.broadcast %cst_60 : f32 to vector<2x32xf32>
    %141 = arith.addf %140, %139 : vector<2x32xf32>
    %142 = arith.divf %140, %141 : vector<2x32xf32>
    %143 = vector.extract_strided_slice %136 {offsets = [0, 32], sizes = [2, 32], strides = [1, 1]} : vector<2x128xf32> to vector<2x32xf32>
    %144 = arith.negf %143 : vector<2x32xf32>
    %145 = math.exp %144 : vector<2x32xf32>
    %cst_61 = arith.constant 1.000000e+00 : f32
    %146 = vector.broadcast %cst_61 : f32 to vector<2x32xf32>
    %147 = arith.addf %146, %145 : vector<2x32xf32>
    %148 = arith.divf %146, %147 : vector<2x32xf32>
    %149 = vector.extract_strided_slice %136 {offsets = [0, 64], sizes = [2, 32], strides = [1, 1]} : vector<2x128xf32> to vector<2x32xf32>
    %150 = math.tanh %149 : vector<2x32xf32>
    %151 = vector.extract_strided_slice %136 {offsets = [0, 96], sizes = [2, 32], strides = [1, 1]} : vector<2x128xf32> to vector<2x32xf32>
    %152 = arith.negf %151 : vector<2x32xf32>
    %153 = math.exp %152 : vector<2x32xf32>
    %cst_62 = arith.constant 1.000000e+00 : f32
    %154 = vector.broadcast %cst_62 : f32 to vector<2x32xf32>
    %155 = arith.addf %154, %153 : vector<2x32xf32>
    %156 = arith.divf %154, %155 : vector<2x32xf32>
    %157 = arith.mulf %148, %120 : vector<2x32xf32>
    %158 = arith.mulf %142, %150 : vector<2x32xf32>
    %159 = arith.addf %157, %158 : vector<2x32xf32>
    %160 = math.tanh %159 : vector<2x32xf32>
    %161 = arith.mulf %156, %160 : vector<2x32xf32>
    %c0_63 = arith.constant 0 : index
    %162 = arith.index_cast %130 : i32 to index
    %c0_64 = arith.constant 0 : index
    %c0_65 = arith.constant 0 : index
    %163 = vector.load %arg7[%c0_63, %162, %c0_64, %c0_65] : memref<1x8x2x32xf32, #tpu.memory_space<vmem>>, vector<1x1x2x32xf32>
    %164 = vector.shape_cast %163 : vector<1x1x2x32xf32> to vector<2x32xf32>
    %165 = vector.shape_cast %161 : vector<2x32xf32> to vector<1x1x2x32xf32>
    tpu.vector_store %arg7[%c0_63, %162, %c0_64, %c0_65], %165 {strides = array<i32>} : memref<1x8x2x32xf32, #tpu.memory_space<vmem>>, vector<1x1x2x32xf32>,
    %c3_i32 = arith.constant 3 : i32
    %c2_i32_66 = arith.constant 2 : i32
    %166 = arith.muli %c2_i32_66, %c3_i32 : i32
    %c7_i32_67 = arith.constant 7 : i32
    %167 = arith.subi %c7_i32_67, %166 : i32
    %168 = arith.muli %arg0, %167 : i32
    %169 = arith.addi %c3_i32, %168 : i32
    %170 = arith.index_cast %169 : i32 to index
    %c0_68 = arith.constant 0 : index
    %c0_69 = arith.constant 0 : index
    %171 = vector.load %arg10[%170, %c0_68, %c0_69] : memref<8x2x128xf32, #tpu.memory_space<vmem>>, vector<1x2x128xf32>
    %172 = vector.shape_cast %171 : vector<1x2x128xf32> to vector<2x128xf32>
    %173 = arith.truncf %161 : vector<2x32xf32> to vector<2x32xbf16>
    %cst_70 = arith.constant dense<0.000000e+00> : vector<2x128xf32>
    %174 = tpu.matmul %173, %44, %cst_70 {dimension_numbers = #tpu.dot_dimension_numbers<[1], [0], [0], [1], [0, 0, 1, 1], [], []>} : vector<2x32xbf16>, vector<32x128xbf16>, vector<2x128xf32> -> vector<2x128xf32>
    %175 = arith.addf %172, %174 : vector<2x128xf32>
    %176 = vector.extract_strided_slice %175 {offsets = [0, 0], sizes = [2, 32], strides = [1, 1]} : vector<2x128xf32> to vector<2x32xf32>
    %177 = arith.negf %176 : vector<2x32xf32>
    %178 = math.exp %177 : vector<2x32xf32>
    %cst_71 = arith.constant 1.000000e+00 : f32
    %179 = vector.broadcast %cst_71 : f32 to vector<2x32xf32>
    %180 = arith.addf %179, %178 : vector<2x32xf32>
    %181 = arith.divf %179, %180 : vector<2x32xf32>
    %182 = vector.extract_strided_slice %175 {offsets = [0, 32], sizes = [2, 32], strides = [1, 1]} : vector<2x128xf32> to vector<2x32xf32>
    %183 = arith.negf %182 : vector<2x32xf32>
    %184 = math.exp %183 : vector<2x32xf32>
    %cst_72 = arith.constant 1.000000e+00 : f32
    %185 = vector.broadcast %cst_72 : f32 to vector<2x32xf32>
    %186 = arith.addf %185, %184 : vector<2x32xf32>
    %187 = arith.divf %185, %186 : vector<2x32xf32>
    %188 = vector.extract_strided_slice %175 {offsets = [0, 64], sizes = [2, 32], strides = [1, 1]} : vector<2x128xf32> to vector<2x32xf32>
    %189 = math.tanh %188 : vector<2x32xf32>
    %190 = vector.extract_strided_slice %175 {offsets = [0, 96], sizes = [2, 32], strides = [1, 1]} : vector<2x128xf32> to vector<2x32xf32>
    %191 = arith.negf %190 : vector<2x32xf32>
    %192 = math.exp %191 : vector<2x32xf32>
    %cst_73 = arith.constant 1.000000e+00 : f32
    %193 = vector.broadcast %cst_73 : f32 to vector<2x32xf32>
    %194 = arith.addf %193, %192 : vector<2x32xf32>
    %195 = arith.divf %193, %194 : vector<2x32xf32>
    %196 = arith.mulf %187, %159 : vector<2x32xf32>
    %197 = arith.mulf %181, %189 : vector<2x32xf32>
    %198 = arith.addf %196, %197 : vector<2x32xf32>
    %199 = math.tanh %198 : vector<2x32xf32>
    %200 = arith.mulf %195, %199 : vector<2x32xf32>
    %c0_74 = arith.constant 0 : index
    %201 = arith.index_cast %169 : i32 to index
    %c0_75 = arith.constant 0 : index
    %c0_76 = arith.constant 0 : index
    %202 = vector.load %arg7[%c0_74, %201, %c0_75, %c0_76] : memref<1x8x2x32xf32, #tpu.memory_space<vmem>>, vector<1x1x2x32xf32>
    %203 = vector.shape_cast %202 : vector<1x1x2x32xf32> to vector<2x32xf32>
    %204 = vector.shape_cast %200 : vector<2x32xf32> to vector<1x1x2x32xf32>
    tpu.vector_store %arg7[%c0_74, %201, %c0_75, %c0_76], %204 {strides = array<i32>} : memref<1x8x2x32xf32, #tpu.memory_space<vmem>>, vector<1x1x2x32xf32>,
    %c4_i32 = arith.constant 4 : i32
    %c2_i32_77 = arith.constant 2 : i32
    %205 = arith.muli %c2_i32_77, %c4_i32 : i32
    %c7_i32_78 = arith.constant 7 : i32
    %206 = arith.subi %c7_i32_78, %205 : i32
    %207 = arith.muli %arg0, %206 : i32
    %208 = arith.addi %c4_i32, %207 : i32
    %209 = arith.index_cast %208 : i32 to index
    %c0_79 = arith.constant 0 : index
    %c0_80 = arith.constant 0 : index
    %210 = vector.load %arg10[%209, %c0_79, %c0_80] : memref<8x2x128xf32, #tpu.memory_space<vmem>>, vector<1x2x128xf32>
    %211 = vector.shape_cast %210 : vector<1x2x128xf32> to vector<2x128xf32>
    %212 = arith.truncf %200 : vector<2x32xf32> to vector<2x32xbf16>
    %cst_81 = arith.constant dense<0.000000e+00> : vector<2x128xf32>
    %213 = tpu.matmul %212, %44, %cst_81 {dimension_numbers = #tpu.dot_dimension_numbers<[1], [0], [0], [1], [0, 0, 1, 1], [], []>} : vector<2x32xbf16>, vector<32x128xbf16>, vector<2x128xf32> -> vector<2x128xf32>
    %214 = arith.addf %211, %213 : vector<2x128xf32>
    %215 = vector.extract_strided_slice %214 {offsets = [0, 0], sizes = [2, 32], strides = [1, 1]} : vector<2x128xf32> to vector<2x32xf32>
    %216 = arith.negf %215 : vector<2x32xf32>
    %217 = math.exp %216 : vector<2x32xf32>
    %cst_82 = arith.constant 1.000000e+00 : f32
    %218 = vector.broadcast %cst_82 : f32 to vector<2x32xf32>
    %219 = arith.addf %218, %217 : vector<2x32xf32>
    %220 = arith.divf %218, %219 : vector<2x32xf32>
    %221 = vector.extract_strided_slice %214 {offsets = [0, 32], sizes = [2, 32], strides = [1, 1]} : vector<2x128xf32> to vector<2x32xf32>
    %222 = arith.negf %221 : vector<2x32xf32>
    %223 = math.exp %222 : vector<2x32xf32>
    %cst_83 = arith.constant 1.000000e+00 : f32
    %224 = vector.broadcast %cst_83 : f32 to vector<2x32xf32>
    %225 = arith.addf %224, %223 : vector<2x32xf32>
    %226 = arith.divf %224, %225 : vector<2x32xf32>
    %227 = vector.extract_strided_slice %214 {offsets = [0, 64], sizes = [2, 32], strides = [1, 1]} : vector<2x128xf32> to vector<2x32xf32>
    %228 = math.tanh %227 : vector<2x32xf32>
    %229 = vector.extract_strided_slice %214 {offsets = [0, 96], sizes = [2, 32], strides = [1, 1]} : vector<2x128xf32> to vector<2x32xf32>
    %230 = arith.negf %229 : vector<2x32xf32>
    %231 = math.exp %230 : vector<2x32xf32>
    %cst_84 = arith.constant 1.000000e+00 : f32
    %232 = vector.broadcast %cst_84 : f32 to vector<2x32xf32>
    %233 = arith.addf %232, %231 : vector<2x32xf32>
    %234 = arith.divf %232, %233 : vector<2x32xf32>
    %235 = arith.mulf %226, %198 : vector<2x32xf32>
    %236 = arith.mulf %220, %228 : vector<2x32xf32>
    %237 = arith.addf %235, %236 : vector<2x32xf32>
    %238 = math.tanh %237 : vector<2x32xf32>
    %239 = arith.mulf %234, %238 : vector<2x32xf32>
    %c0_85 = arith.constant 0 : index
    %240 = arith.index_cast %208 : i32 to index
    %c0_86 = arith.constant 0 : index
    %c0_87 = arith.constant 0 : index
    %241 = vector.load %arg7[%c0_85, %240, %c0_86, %c0_87] : memref<1x8x2x32xf32, #tpu.memory_space<vmem>>, vector<1x1x2x32xf32>
    %242 = vector.shape_cast %241 : vector<1x1x2x32xf32> to vector<2x32xf32>
    %243 = vector.shape_cast %239 : vector<2x32xf32> to vector<1x1x2x32xf32>
    tpu.vector_store %arg7[%c0_85, %240, %c0_86, %c0_87], %243 {strides = array<i32>} : memref<1x8x2x32xf32, #tpu.memory_space<vmem>>, vector<1x1x2x32xf32>,
    %c5_i32 = arith.constant 5 : i32
    %c2_i32_88 = arith.constant 2 : i32
    %244 = arith.muli %c2_i32_88, %c5_i32 : i32
    %c7_i32_89 = arith.constant 7 : i32
    %245 = arith.subi %c7_i32_89, %244 : i32
    %246 = arith.muli %arg0, %245 : i32
    %247 = arith.addi %c5_i32, %246 : i32
    %248 = arith.index_cast %247 : i32 to index
    %c0_90 = arith.constant 0 : index
    %c0_91 = arith.constant 0 : index
    %249 = vector.load %arg10[%248, %c0_90, %c0_91] : memref<8x2x128xf32, #tpu.memory_space<vmem>>, vector<1x2x128xf32>
    %250 = vector.shape_cast %249 : vector<1x2x128xf32> to vector<2x128xf32>
    %251 = arith.truncf %239 : vector<2x32xf32> to vector<2x32xbf16>
    %cst_92 = arith.constant dense<0.000000e+00> : vector<2x128xf32>
    %252 = tpu.matmul %251, %44, %cst_92 {dimension_numbers = #tpu.dot_dimension_numbers<[1], [0], [0], [1], [0, 0, 1, 1], [], []>} : vector<2x32xbf16>, vector<32x128xbf16>, vector<2x128xf32> -> vector<2x128xf32>
    %253 = arith.addf %250, %252 : vector<2x128xf32>
    %254 = vector.extract_strided_slice %253 {offsets = [0, 0], sizes = [2, 32], strides = [1, 1]} : vector<2x128xf32> to vector<2x32xf32>
    %255 = arith.negf %254 : vector<2x32xf32>
    %256 = math.exp %255 : vector<2x32xf32>
    %cst_93 = arith.constant 1.000000e+00 : f32
    %257 = vector.broadcast %cst_93 : f32 to vector<2x32xf32>
    %258 = arith.addf %257, %256 : vector<2x32xf32>
    %259 = arith.divf %257, %258 : vector<2x32xf32>
    %260 = vector.extract_strided_slice %253 {offsets = [0, 32], sizes = [2, 32], strides = [1, 1]} : vector<2x128xf32> to vector<2x32xf32>
    %261 = arith.negf %260 : vector<2x32xf32>
    %262 = math.exp %261 : vector<2x32xf32>
    %cst_94 = arith.constant 1.000000e+00 : f32
    %263 = vector.broadcast %cst_94 : f32 to vector<2x32xf32>
    %264 = arith.addf %263, %262 : vector<2x32xf32>
    %265 = arith.divf %263, %264 : vector<2x32xf32>
    %266 = vector.extract_strided_slice %253 {offsets = [0, 64], sizes = [2, 32], strides = [1, 1]} : vector<2x128xf32> to vector<2x32xf32>
    %267 = math.tanh %266 : vector<2x32xf32>
    %268 = vector.extract_strided_slice %253 {offsets = [0, 96], sizes = [2, 32], strides = [1, 1]} : vector<2x128xf32> to vector<2x32xf32>
    %269 = arith.negf %268 : vector<2x32xf32>
    %270 = math.exp %269 : vector<2x32xf32>
    %cst_95 = arith.constant 1.000000e+00 : f32
    %271 = vector.broadcast %cst_95 : f32 to vector<2x32xf32>
    %272 = arith.addf %271, %270 : vector<2x32xf32>
    %273 = arith.divf %271, %272 : vector<2x32xf32>
    %274 = arith.mulf %265, %237 : vector<2x32xf32>
    %275 = arith.mulf %259, %267 : vector<2x32xf32>
    %276 = arith.addf %274, %275 : vector<2x32xf32>
    %277 = math.tanh %276 : vector<2x32xf32>
    %278 = arith.mulf %273, %277 : vector<2x32xf32>
    %c0_96 = arith.constant 0 : index
    %279 = arith.index_cast %247 : i32 to index
    %c0_97 = arith.constant 0 : index
    %c0_98 = arith.constant 0 : index
    %280 = vector.load %arg7[%c0_96, %279, %c0_97, %c0_98] : memref<1x8x2x32xf32, #tpu.memory_space<vmem>>, vector<1x1x2x32xf32>
    %281 = vector.shape_cast %280 : vector<1x1x2x32xf32> to vector<2x32xf32>
    %282 = vector.shape_cast %278 : vector<2x32xf32> to vector<1x1x2x32xf32>
    tpu.vector_store %arg7[%c0_96, %279, %c0_97, %c0_98], %282 {strides = array<i32>} : memref<1x8x2x32xf32, #tpu.memory_space<vmem>>, vector<1x1x2x32xf32>,
    %c6_i32 = arith.constant 6 : i32
    %c2_i32_99 = arith.constant 2 : i32
    %283 = arith.muli %c2_i32_99, %c6_i32 : i32
    %c7_i32_100 = arith.constant 7 : i32
    %284 = arith.subi %c7_i32_100, %283 : i32
    %285 = arith.muli %arg0, %284 : i32
    %286 = arith.addi %c6_i32, %285 : i32
    %287 = arith.index_cast %286 : i32 to index
    %c0_101 = arith.constant 0 : index
    %c0_102 = arith.constant 0 : index
    %288 = vector.load %arg10[%287, %c0_101, %c0_102] : memref<8x2x128xf32, #tpu.memory_space<vmem>>, vector<1x2x128xf32>
    %289 = vector.shape_cast %288 : vector<1x2x128xf32> to vector<2x128xf32>
    %290 = arith.truncf %278 : vector<2x32xf32> to vector<2x32xbf16>
    %cst_103 = arith.constant dense<0.000000e+00> : vector<2x128xf32>
    %291 = tpu.matmul %290, %44, %cst_103 {dimension_numbers = #tpu.dot_dimension_numbers<[1], [0], [0], [1], [0, 0, 1, 1], [], []>} : vector<2x32xbf16>, vector<32x128xbf16>, vector<2x128xf32> -> vector<2x128xf32>
    %292 = arith.addf %289, %291 : vector<2x128xf32>
    %293 = vector.extract_strided_slice %292 {offsets = [0, 0], sizes = [2, 32], strides = [1, 1]} : vector<2x128xf32> to vector<2x32xf32>
    %294 = arith.negf %293 : vector<2x32xf32>
    %295 = math.exp %294 : vector<2x32xf32>
    %cst_104 = arith.constant 1.000000e+00 : f32
    %296 = vector.broadcast %cst_104 : f32 to vector<2x32xf32>
    %297 = arith.addf %296, %295 : vector<2x32xf32>
    %298 = arith.divf %296, %297 : vector<2x32xf32>
    %299 = vector.extract_strided_slice %292 {offsets = [0, 32], sizes = [2, 32], strides = [1, 1]} : vector<2x128xf32> to vector<2x32xf32>
    %300 = arith.negf %299 : vector<2x32xf32>
    %301 = math.exp %300 : vector<2x32xf32>
    %cst_105 = arith.constant 1.000000e+00 : f32
    %302 = vector.broadcast %cst_105 : f32 to vector<2x32xf32>
    %303 = arith.addf %302, %301 : vector<2x32xf32>
    %304 = arith.divf %302, %303 : vector<2x32xf32>
    %305 = vector.extract_strided_slice %292 {offsets = [0, 64], sizes = [2, 32], strides = [1, 1]} : vector<2x128xf32> to vector<2x32xf32>
    %306 = math.tanh %305 : vector<2x32xf32>
    %307 = vector.extract_strided_slice %292 {offsets = [0, 96], sizes = [2, 32], strides = [1, 1]} : vector<2x128xf32> to vector<2x32xf32>
    %308 = arith.negf %307 : vector<2x32xf32>
    %309 = math.exp %308 : vector<2x32xf32>
    %cst_106 = arith.constant 1.000000e+00 : f32
    %310 = vector.broadcast %cst_106 : f32 to vector<2x32xf32>
    %311 = arith.addf %310, %309 : vector<2x32xf32>
    %312 = arith.divf %310, %311 : vector<2x32xf32>
    %313 = arith.mulf %304, %276 : vector<2x32xf32>
    %314 = arith.mulf %298, %306 : vector<2x32xf32>
    %315 = arith.addf %313, %314 : vector<2x32xf32>
    %316 = math.tanh %315 : vector<2x32xf32>
    %317 = arith.mulf %312, %316 : vector<2x32xf32>
    %c0_107 = arith.constant 0 : index
    %318 = arith.index_cast %286 : i32 to index
    %c0_108 = arith.constant 0 : index
    %c0_109 = arith.constant 0 : index
    %319 = vector.load %arg7[%c0_107, %318, %c0_108, %c0_109] : memref<1x8x2x32xf32, #tpu.memory_space<vmem>>, vector<1x1x2x32xf32>
    %320 = vector.shape_cast %319 : vector<1x1x2x32xf32> to vector<2x32xf32>
    %321 = vector.shape_cast %317 : vector<2x32xf32> to vector<1x1x2x32xf32>
    tpu.vector_store %arg7[%c0_107, %318, %c0_108, %c0_109], %321 {strides = array<i32>} : memref<1x8x2x32xf32, #tpu.memory_space<vmem>>, vector<1x1x2x32xf32>,
    %c7_i32_110 = arith.constant 7 : i32
    %c2_i32_111 = arith.constant 2 : i32
    %322 = arith.muli %c2_i32_111, %c7_i32_110 : i32
    %c7_i32_112 = arith.constant 7 : i32
    %323 = arith.subi %c7_i32_112, %322 : i32
    %324 = arith.muli %arg0, %323 : i32
    %325 = arith.addi %c7_i32_110, %324 : i32
    %326 = arith.index_cast %325 : i32 to index
    %c0_113 = arith.constant 0 : index
    %c0_114 = arith.constant 0 : index
    %327 = vector.load %arg10[%326, %c0_113, %c0_114] : memref<8x2x128xf32, #tpu.memory_space<vmem>>, vector<1x2x128xf32>
    %328 = vector.shape_cast %327 : vector<1x2x128xf32> to vector<2x128xf32>
    %329 = arith.truncf %317 : vector<2x32xf32> to vector<2x32xbf16>
    %cst_115 = arith.constant dense<0.000000e+00> : vector<2x128xf32>
    %330 = tpu.matmul %329, %44, %cst_115 {dimension_numbers = #tpu.dot_dimension_numbers<[1], [0], [0], [1], [0, 0, 1, 1], [], []>} : vector<2x32xbf16>, vector<32x128xbf16>, vector<2x128xf32> -> vector<2x128xf32>
    %331 = arith.addf %328, %330 : vector<2x128xf32>
    %332 = vector.extract_strided_slice %331 {offsets = [0, 0], sizes = [2, 32], strides = [1, 1]} : vector<2x128xf32> to vector<2x32xf32>
    %333 = arith.negf %332 : vector<2x32xf32>
    %334 = math.exp %333 : vector<2x32xf32>
    %cst_116 = arith.constant 1.000000e+00 : f32
    %335 = vector.broadcast %cst_116 : f32 to vector<2x32xf32>
    %336 = arith.addf %335, %334 : vector<2x32xf32>
    %337 = arith.divf %335, %336 : vector<2x32xf32>
    %338 = vector.extract_strided_slice %331 {offsets = [0, 32], sizes = [2, 32], strides = [1, 1]} : vector<2x128xf32> to vector<2x32xf32>
    %339 = arith.negf %338 : vector<2x32xf32>
    %340 = math.exp %339 : vector<2x32xf32>
    %cst_117 = arith.constant 1.000000e+00 : f32
    %341 = vector.broadcast %cst_117 : f32 to vector<2x32xf32>
    %342 = arith.addf %341, %340 : vector<2x32xf32>
    %343 = arith.divf %341, %342 : vector<2x32xf32>
    %344 = vector.extract_strided_slice %331 {offsets = [0, 64], sizes = [2, 32], strides = [1, 1]} : vector<2x128xf32> to vector<2x32xf32>
    %345 = math.tanh %344 : vector<2x32xf32>
    %346 = vector.extract_strided_slice %331 {offsets = [0, 96], sizes = [2, 32], strides = [1, 1]} : vector<2x128xf32> to vector<2x32xf32>
    %347 = arith.negf %346 : vector<2x32xf32>
    %348 = math.exp %347 : vector<2x32xf32>
    %cst_118 = arith.constant 1.000000e+00 : f32
    %349 = vector.broadcast %cst_118 : f32 to vector<2x32xf32>
    %350 = arith.addf %349, %348 : vector<2x32xf32>
    %351 = arith.divf %349, %350 : vector<2x32xf32>
    %352 = arith.mulf %343, %315 : vector<2x32xf32>
    %353 = arith.mulf %337, %345 : vector<2x32xf32>
    %354 = arith.addf %352, %353 : vector<2x32xf32>
    %355 = math.tanh %354 : vector<2x32xf32>
    %356 = arith.mulf %351, %355 : vector<2x32xf32>
    %c0_119 = arith.constant 0 : index
    %357 = arith.index_cast %325 : i32 to index
    %c0_120 = arith.constant 0 : index
    %c0_121 = arith.constant 0 : index
    %358 = vector.load %arg7[%c0_119, %357, %c0_120, %c0_121] : memref<1x8x2x32xf32, #tpu.memory_space<vmem>>, vector<1x1x2x32xf32>
    %359 = vector.shape_cast %358 : vector<1x1x2x32xf32> to vector<2x32xf32>
    %360 = vector.shape_cast %356 : vector<2x32xf32> to vector<1x1x2x32xf32>
    tpu.vector_store %arg7[%c0_119, %357, %c0_120, %c0_121], %360 {strides = array<i32>} : memref<1x8x2x32xf32, #tpu.memory_space<vmem>>, vector<1x1x2x32xf32>,
    %c8_i32 = arith.constant 8 : i32
    %c0_122 = arith.constant 0 : index
    %c0_123 = arith.constant 0 : index
    %c0_124 = arith.constant 0 : index
    %361 = vector.load %arg8[%c0_122, %c0_123, %c0_124] : memref<1x2x32xf32, #tpu.memory_space<vmem>>, vector<1x2x32xf32>
    %362 = vector.shape_cast %361 : vector<1x2x32xf32> to vector<2x32xf32>
    %363 = vector.shape_cast %356 : vector<2x32xf32> to vector<1x2x32xf32>
    tpu.vector_store %arg8[%c0_122, %c0_123, %c0_124], %363 {strides = array<i32>} : memref<1x2x32xf32, #tpu.memory_space<vmem>>, vector<1x2x32xf32>,
    %c0_125 = arith.constant 0 : index
    %c0_126 = arith.constant 0 : index
    %c0_127 = arith.constant 0 : index
    %364 = vector.load %arg9[%c0_125, %c0_126, %c0_127] : memref<1x2x32xf32, #tpu.memory_space<vmem>>, vector<1x2x32xf32>
    %365 = vector.shape_cast %364 : vector<1x2x32xf32> to vector<2x32xf32>
    %366 = vector.shape_cast %354 : vector<2x32xf32> to vector<1x2x32xf32>
    tpu.vector_store %arg9[%c0_125, %c0_126, %c0_127], %366 {strides = array<i32>} : memref<1x2x32xf32, #tpu.memory_space<vmem>>, vector<1x2x32xf32>,
    return
  }
  func.func @transform_0(%arg0: i32) -> (i32, i32) {
    %c0_i32 = arith.constant 0 : i32
    %c0_i32_0 = arith.constant 0 : i32
    %c0_i32_1 = arith.constant 0 : i32
    return %c0_i32, %c0_i32_0 : i32, i32
  }
  func.func @transform_1(%arg0: i32) -> (i32, i32, i32) {
    %c0_i32 = arith.constant 0 : i32
    %c0_i32_0 = arith.constant 0 : i32
    %c0_i32_1 = arith.constant 0 : i32
    return %arg0, %c0_i32, %c0_i32_0 : i32, i32, i32
  }
  func.func @transform_2(%arg0: i32) -> (i32, i32, i32) {
    %c0_i32 = arith.constant 0 : i32
    %c0_i32_0 = arith.constant 0 : i32
    %c0_i32_1 = arith.constant 0 : i32
    return %arg0, %c0_i32, %c0_i32_0 : i32, i32, i32
  }
  func.func @transform_3(%arg0: i32) -> (i32, i32, i32) {
    %c0_i32 = arith.constant 0 : i32
    %c0_i32_0 = arith.constant 0 : i32
    %c0_i32_1 = arith.constant 0 : i32
    return %arg0, %c0_i32, %c0_i32_0 : i32, i32, i32
  }
  func.func @transform_4(%arg0: i32) -> (i32, i32, i32) {
    %c0_i32 = arith.constant 0 : i32
    %c0_i32_0 = arith.constant 0 : i32
    %c0_i32_1 = arith.constant 0 : i32
    return %arg0, %c0_i32, %c0_i32_0 : i32, i32, i32
  }
  func.func @transform_5(%arg0: i32) -> (i32, i32, i32) {
    %c0_i32 = arith.constant 0 : i32
    %c0_i32_0 = arith.constant 0 : i32
    %c0_i32_1 = arith.constant 0 : i32
    return %arg0, %c0_i32, %c0_i32_0 : i32, i32, i32
  }
  func.func @transform_6(%arg0: i32) -> (i32, i32, i32, i32) {
    %c0_i32 = arith.constant 0 : i32
    %c0_i32_0 = arith.constant 0 : i32
    %c0_i32_1 = arith.constant 0 : i32
    %c0_i32_2 = arith.constant 0 : i32
    return %arg0, %c0_i32, %c0_i32_0, %c0_i32_1 : i32, i32, i32, i32
  }
  func.func @transform_7(%arg0: i32) -> (i32, i32, i32) {
    %c0_i32 = arith.constant 0 : i32
    %c0_i32_0 = arith.constant 0 : i32
    %c0_i32_1 = arith.constant 0 : i32
    return %arg0, %c0_i32, %c0_i32_0 : i32, i32, i32
  }
  func.func @transform_8(%arg0: i32) -> (i32, i32, i32) {
    %c0_i32 = arith.constant 0 : i32
    %c0_i32_0 = arith.constant 0 : i32
    %c0_i32_1 = arith.constant 0 : i32
    return %arg0, %c0_i32, %c0_i32_0 : i32, i32, i32
  }
}

module attributes {stable_mosaic.version = 11 : i64} {
  func.func @kernel(%arg0: i32, %arg1: memref<2x16x32xf32, #tpu.memory_space<vmem>>, %arg2: memref<16x48xf32, #tpu.memory_space<vmem>>, %arg3: memref<1x64x128xbf16, #tpu.memory_space<vmem>>, %arg4: memref<1x48x128xbf16, #tpu.memory_space<vmem>>, %arg5: memref<1x32x128xbf16, #tpu.memory_space<vmem>>, %arg6: memref<1x1x128xf32, #tpu.memory_space<vmem>>, %arg7: memref<1x2x32xf32, #tpu.memory_space<vmem>>, %arg8: memref<1x2x32xf32, #tpu.memory_space<vmem>>, %arg9: memref<1x8x2x32xf32, #tpu.memory_space<vmem>>, %arg10: memref<1x2x32xf32, #tpu.memory_space<vmem>>, %arg11: memref<1x2x32xf32, #tpu.memory_space<vmem>>, %arg12: memref<8x2x128xf32, #tpu.memory_space<vmem>>) attributes {dimension_semantics = [#tpu.dimension_semantics<parallel>], iteration_bounds = array<i64: 2>, scalar_prefetch = 0 : i64, scratch_operands = 1 : i64, tpu.core_type = #tpu.core_type<tc>, window_params = [{pipeline_mode = #tpu.pipeline_mode<synchronous>, transform_indices = @transform_0, window_bounds = array<i64: 2, 16, 32>}, {pipeline_mode = #tpu.pipeline_mode<synchronous>, transform_indices = @transform_1, window_bounds = array<i64: 16, 48>}, {transform_indices = @transform_2, window_bounds = array<i64: 1, 64, 128>}, {transform_indices = @transform_3, window_bounds = array<i64: 1, 48, 128>}, {transform_indices = @transform_4, window_bounds = array<i64: 1, 32, 128>}, {transform_indices = @transform_5, window_bounds = array<i64: 1, 1, 128>}, {transform_indices = @transform_6, window_bounds = array<i64: 1, 2, 32>}, {transform_indices = @transform_7, window_bounds = array<i64: 1, 2, 32>}, {transform_indices = @transform_8, window_bounds = array<i64: 1, 8, 2, 32>}, {transform_indices = @transform_9, window_bounds = array<i64: 1, 2, 32>}, {transform_indices = @transform_10, window_bounds = array<i64: 1, 2, 32>}]} {
    %cst = arith.constant 0.000000e+00 : f32
    %0 = vector.broadcast %cst : f32 to vector<16x128xf32>
    %c0 = arith.constant 0 : index
    %c0_0 = arith.constant 0 : index
    %c0_1 = arith.constant 0 : index
    %1 = vector.load %arg3[%c0, %c0_0, %c0_1] : memref<1x64x128xbf16, #tpu.memory_space<vmem>>, vector<1x64x128xbf16>
    %2 = vector.shape_cast %1 : vector<1x64x128xbf16> to vector<64x128xbf16>
    %c0_2 = arith.constant 0 : index
    %c0_3 = arith.constant 0 : index
    %c0_4 = arith.constant 0 : index
    %3 = vector.load %arg1[%c0_2, %c0_3, %c0_4] : memref<2x16x32xf32, #tpu.memory_space<vmem>>, vector<1x16x32xf32>
    %4 = vector.shape_cast %3 : vector<1x16x32xf32> to vector<16x32xf32>
    %5 = arith.truncf %4 : vector<16x32xf32> to vector<16x32xbf16>
    %6 = vector.extract_strided_slice %2 {offsets = [0, 0], sizes = [32, 128], strides = [1, 1]} : vector<64x128xbf16> to vector<32x128xbf16>
    %cst_5 = arith.constant dense<0.000000e+00> : vector<16x128xf32>
    %7 = tpu.matmul %5, %6, %cst_5 {dimension_numbers = #tpu.dot_dimension_numbers<[1], [0], [0], [1], [0, 0, 1, 1], [], []>} : vector<16x32xbf16>, vector<32x128xbf16>, vector<16x128xf32> -> vector<16x128xf32>
    %8 = arith.addf %0, %7 : vector<16x128xf32>
    %c1 = arith.constant 1 : index
    %c0_6 = arith.constant 0 : index
    %c0_7 = arith.constant 0 : index
    %9 = vector.load %arg1[%c1, %c0_6, %c0_7] : memref<2x16x32xf32, #tpu.memory_space<vmem>>, vector<1x16x32xf32>
    %10 = vector.shape_cast %9 : vector<1x16x32xf32> to vector<16x32xf32>
    %11 = arith.truncf %10 : vector<16x32xf32> to vector<16x32xbf16>
    %12 = vector.extract_strided_slice %2 {offsets = [32, 0], sizes = [32, 128], strides = [1, 1]} : vector<64x128xbf16> to vector<32x128xbf16>
    %cst_8 = arith.constant dense<0.000000e+00> : vector<16x128xf32>
    %13 = tpu.matmul %11, %12, %cst_8 {dimension_numbers = #tpu.dot_dimension_numbers<[1], [0], [0], [1], [0, 0, 1, 1], [], []>} : vector<16x32xbf16>, vector<32x128xbf16>, vector<16x128xf32> -> vector<16x128xf32>
    %14 = arith.addf %8, %13 : vector<16x128xf32>
    %c0_9 = arith.constant 0 : index
    %c0_10 = arith.constant 0 : index
    %c0_11 = arith.constant 0 : index
    %15 = vector.load %arg4[%c0_9, %c0_10, %c0_11] : memref<1x48x128xbf16, #tpu.memory_space<vmem>>, vector<1x48x128xbf16>
    %16 = vector.shape_cast %15 : vector<1x48x128xbf16> to vector<48x128xbf16>
    %c0_12 = arith.constant 0 : index
    %c0_13 = arith.constant 0 : index
    %17 = vector.load %arg2[%c0_12, %c0_13] : memref<16x48xf32, #tpu.memory_space<vmem>>, vector<16x48xf32>
    %18 = arith.truncf %17 : vector<16x48xf32> to vector<16x48xbf16>
    %cst_14 = arith.constant dense<0.000000e+00> : vector<16x128xf32>
    %19 = tpu.matmul %18, %16, %cst_14 {dimension_numbers = #tpu.dot_dimension_numbers<[1], [0], [0], [1], [0, 0, 1, 1], [], []>} : vector<16x48xbf16>, vector<48x128xbf16>, vector<16x128xf32> -> vector<16x128xf32>
    %20 = arith.addf %14, %19 : vector<16x128xf32>
    %c0_15 = arith.constant 0 : index
    %c0_16 = arith.constant 0 : index
    %c0_17 = arith.constant 0 : index
    %21 = vector.load %arg6[%c0_15, %c0_16, %c0_17] : memref<1x1x128xf32, #tpu.memory_space<vmem>>, vector<1x1x128xf32>
    %22 = vector.shape_cast %21 : vector<1x1x128xf32> to vector<1x128xf32>
    %23 = vector.broadcast %22 : vector<1x128xf32> to vector<16x128xf32>
    %24 = arith.addf %20, %23 : vector<16x128xf32>
    %25 = vector.extract_strided_slice %24 {offsets = [0, 0], sizes = [2, 128], strides = [1, 1]} : vector<16x128xf32> to vector<2x128xf32>
    %c0_18 = arith.constant 0 : index
    %c0_19 = arith.constant 0 : index
    %c0_20 = arith.constant 0 : index
    %26 = vector.load %arg12[%c0_18, %c0_19, %c0_20] : memref<8x2x128xf32, #tpu.memory_space<vmem>>, vector<1x2x128xf32>
    %27 = vector.shape_cast %26 : vector<1x2x128xf32> to vector<2x128xf32>
    %28 = vector.shape_cast %25 : vector<2x128xf32> to vector<1x2x128xf32>
    tpu.vector_store %arg12[%c0_18, %c0_19, %c0_20], %28 {strides = array<i32>} : memref<8x2x128xf32, #tpu.memory_space<vmem>>, vector<1x2x128xf32>,
    %29 = vector.extract_strided_slice %24 {offsets = [2, 0], sizes = [2, 128], strides = [1, 1]} : vector<16x128xf32> to vector<2x128xf32>
    %c1_21 = arith.constant 1 : index
    %c0_22 = arith.constant 0 : index
    %c0_23 = arith.constant 0 : index
    %30 = vector.load %arg12[%c1_21, %c0_22, %c0_23] : memref<8x2x128xf32, #tpu.memory_space<vmem>>, vector<1x2x128xf32>
    %31 = vector.shape_cast %30 : vector<1x2x128xf32> to vector<2x128xf32>
    %32 = vector.shape_cast %29 : vector<2x128xf32> to vector<1x2x128xf32>
    tpu.vector_store %arg12[%c1_21, %c0_22, %c0_23], %32 {strides = array<i32>} : memref<8x2x128xf32, #tpu.memory_space<vmem>>, vector<1x2x128xf32>,
    %33 = vector.extract_strided_slice %24 {offsets = [4, 0], sizes = [2, 128], strides = [1, 1]} : vector<16x128xf32> to vector<2x128xf32>
    %c2 = arith.constant 2 : index
    %c0_24 = arith.constant 0 : index
    %c0_25 = arith.constant 0 : index
    %34 = vector.load %arg12[%c2, %c0_24, %c0_25] : memref<8x2x128xf32, #tpu.memory_space<vmem>>, vector<1x2x128xf32>
    %35 = vector.shape_cast %34 : vector<1x2x128xf32> to vector<2x128xf32>
    %36 = vector.shape_cast %33 : vector<2x128xf32> to vector<1x2x128xf32>
    tpu.vector_store %arg12[%c2, %c0_24, %c0_25], %36 {strides = array<i32>} : memref<8x2x128xf32, #tpu.memory_space<vmem>>, vector<1x2x128xf32>,
    %37 = vector.extract_strided_slice %24 {offsets = [6, 0], sizes = [2, 128], strides = [1, 1]} : vector<16x128xf32> to vector<2x128xf32>
    %c3 = arith.constant 3 : index
    %c0_26 = arith.constant 0 : index
    %c0_27 = arith.constant 0 : index
    %38 = vector.load %arg12[%c3, %c0_26, %c0_27] : memref<8x2x128xf32, #tpu.memory_space<vmem>>, vector<1x2x128xf32>
    %39 = vector.shape_cast %38 : vector<1x2x128xf32> to vector<2x128xf32>
    %40 = vector.shape_cast %37 : vector<2x128xf32> to vector<1x2x128xf32>
    tpu.vector_store %arg12[%c3, %c0_26, %c0_27], %40 {strides = array<i32>} : memref<8x2x128xf32, #tpu.memory_space<vmem>>, vector<1x2x128xf32>,
    %41 = vector.extract_strided_slice %24 {offsets = [8, 0], sizes = [2, 128], strides = [1, 1]} : vector<16x128xf32> to vector<2x128xf32>
    %c4 = arith.constant 4 : index
    %c0_28 = arith.constant 0 : index
    %c0_29 = arith.constant 0 : index
    %42 = vector.load %arg12[%c4, %c0_28, %c0_29] : memref<8x2x128xf32, #tpu.memory_space<vmem>>, vector<1x2x128xf32>
    %43 = vector.shape_cast %42 : vector<1x2x128xf32> to vector<2x128xf32>
    %44 = vector.shape_cast %41 : vector<2x128xf32> to vector<1x2x128xf32>
    tpu.vector_store %arg12[%c4, %c0_28, %c0_29], %44 {strides = array<i32>} : memref<8x2x128xf32, #tpu.memory_space<vmem>>, vector<1x2x128xf32>,
    %45 = vector.extract_strided_slice %24 {offsets = [10, 0], sizes = [2, 128], strides = [1, 1]} : vector<16x128xf32> to vector<2x128xf32>
    %c5 = arith.constant 5 : index
    %c0_30 = arith.constant 0 : index
    %c0_31 = arith.constant 0 : index
    %46 = vector.load %arg12[%c5, %c0_30, %c0_31] : memref<8x2x128xf32, #tpu.memory_space<vmem>>, vector<1x2x128xf32>
    %47 = vector.shape_cast %46 : vector<1x2x128xf32> to vector<2x128xf32>
    %48 = vector.shape_cast %45 : vector<2x128xf32> to vector<1x2x128xf32>
    tpu.vector_store %arg12[%c5, %c0_30, %c0_31], %48 {strides = array<i32>} : memref<8x2x128xf32, #tpu.memory_space<vmem>>, vector<1x2x128xf32>,
    %49 = vector.extract_strided_slice %24 {offsets = [12, 0], sizes = [2, 128], strides = [1, 1]} : vector<16x128xf32> to vector<2x128xf32>
    %c6 = arith.constant 6 : index
    %c0_32 = arith.constant 0 : index
    %c0_33 = arith.constant 0 : index
    %50 = vector.load %arg12[%c6, %c0_32, %c0_33] : memref<8x2x128xf32, #tpu.memory_space<vmem>>, vector<1x2x128xf32>
    %51 = vector.shape_cast %50 : vector<1x2x128xf32> to vector<2x128xf32>
    %52 = vector.shape_cast %49 : vector<2x128xf32> to vector<1x2x128xf32>
    tpu.vector_store %arg12[%c6, %c0_32, %c0_33], %52 {strides = array<i32>} : memref<8x2x128xf32, #tpu.memory_space<vmem>>, vector<1x2x128xf32>,
    %53 = vector.extract_strided_slice %24 {offsets = [14, 0], sizes = [2, 128], strides = [1, 1]} : vector<16x128xf32> to vector<2x128xf32>
    %c7 = arith.constant 7 : index
    %c0_34 = arith.constant 0 : index
    %c0_35 = arith.constant 0 : index
    %54 = vector.load %arg12[%c7, %c0_34, %c0_35] : memref<8x2x128xf32, #tpu.memory_space<vmem>>, vector<1x2x128xf32>
    %55 = vector.shape_cast %54 : vector<1x2x128xf32> to vector<2x128xf32>
    %56 = vector.shape_cast %53 : vector<2x128xf32> to vector<1x2x128xf32>
    tpu.vector_store %arg12[%c7, %c0_34, %c0_35], %56 {strides = array<i32>} : memref<8x2x128xf32, #tpu.memory_space<vmem>>, vector<1x2x128xf32>,
    %c0_36 = arith.constant 0 : index
    %c0_37 = arith.constant 0 : index
    %c0_38 = arith.constant 0 : index
    %57 = vector.load %arg5[%c0_36, %c0_37, %c0_38] : memref<1x32x128xbf16, #tpu.memory_space<vmem>>, vector<1x32x128xbf16>
    %58 = vector.shape_cast %57 : vector<1x32x128xbf16> to vector<32x128xbf16>
    %c0_39 = arith.constant 0 : index
    %c0_40 = arith.constant 0 : index
    %c0_41 = arith.constant 0 : index
    %59 = vector.load %arg7[%c0_39, %c0_40, %c0_41] : memref<1x2x32xf32, #tpu.memory_space<vmem>>, vector<1x2x32xf32>
    %60 = vector.shape_cast %59 : vector<1x2x32xf32> to vector<2x32xf32>
    %c0_42 = arith.constant 0 : index
    %c0_43 = arith.constant 0 : index
    %c0_44 = arith.constant 0 : index
    %61 = vector.load %arg8[%c0_42, %c0_43, %c0_44] : memref<1x2x32xf32, #tpu.memory_space<vmem>>, vector<1x2x32xf32>
    %62 = vector.shape_cast %61 : vector<1x2x32xf32> to vector<2x32xf32>
    %c0_i32 = arith.constant 0 : i32
    %c2_i32 = arith.constant 2 : i32
    %63 = arith.muli %c2_i32, %c0_i32 : i32
    %c7_i32 = arith.constant 7 : i32
    %64 = arith.subi %c7_i32, %63 : i32
    %65 = arith.muli %arg0, %64 : i32
    %66 = arith.addi %c0_i32, %65 : i32
    %67 = arith.index_cast %66 : i32 to index
    %c0_45 = arith.constant 0 : index
    %c0_46 = arith.constant 0 : index
    %68 = vector.load %arg12[%67, %c0_45, %c0_46] : memref<8x2x128xf32, #tpu.memory_space<vmem>>, vector<1x2x128xf32>
    %69 = vector.shape_cast %68 : vector<1x2x128xf32> to vector<2x128xf32>
    %70 = arith.truncf %60 : vector<2x32xf32> to vector<2x32xbf16>
    %cst_47 = arith.constant dense<0.000000e+00> : vector<2x128xf32>
    %71 = tpu.matmul %70, %58, %cst_47 {dimension_numbers = #tpu.dot_dimension_numbers<[1], [0], [0], [1], [0, 0, 1, 1], [], []>} : vector<2x32xbf16>, vector<32x128xbf16>, vector<2x128xf32> -> vector<2x128xf32>
    %72 = arith.addf %69, %71 : vector<2x128xf32>
    %73 = vector.extract_strided_slice %72 {offsets = [0, 0], sizes = [2, 32], strides = [1, 1]} : vector<2x128xf32> to vector<2x32xf32>
    %74 = arith.negf %73 : vector<2x32xf32>
    %75 = math.exp %74 : vector<2x32xf32>
    %cst_48 = arith.constant 1.000000e+00 : f32
    %76 = vector.broadcast %cst_48 : f32 to vector<2x32xf32>
    %77 = arith.addf %76, %75 : vector<2x32xf32>
    %78 = arith.divf %76, %77 : vector<2x32xf32>
    %79 = vector.extract_strided_slice %72 {offsets = [0, 32], sizes = [2, 32], strides = [1, 1]} : vector<2x128xf32> to vector<2x32xf32>
    %80 = arith.negf %79 : vector<2x32xf32>
    %81 = math.exp %80 : vector<2x32xf32>
    %cst_49 = arith.constant 1.000000e+00 : f32
    %82 = vector.broadcast %cst_49 : f32 to vector<2x32xf32>
    %83 = arith.addf %82, %81 : vector<2x32xf32>
    %84 = arith.divf %82, %83 : vector<2x32xf32>
    %85 = vector.extract_strided_slice %72 {offsets = [0, 64], sizes = [2, 32], strides = [1, 1]} : vector<2x128xf32> to vector<2x32xf32>
    %86 = math.tanh %85 : vector<2x32xf32>
    %87 = vector.extract_strided_slice %72 {offsets = [0, 96], sizes = [2, 32], strides = [1, 1]} : vector<2x128xf32> to vector<2x32xf32>
    %88 = arith.negf %87 : vector<2x32xf32>
    %89 = math.exp %88 : vector<2x32xf32>
    %cst_50 = arith.constant 1.000000e+00 : f32
    %90 = vector.broadcast %cst_50 : f32 to vector<2x32xf32>
    %91 = arith.addf %90, %89 : vector<2x32xf32>
    %92 = arith.divf %90, %91 : vector<2x32xf32>
    %93 = arith.mulf %84, %62 : vector<2x32xf32>
    %94 = arith.mulf %78, %86 : vector<2x32xf32>
    %95 = arith.addf %93, %94 : vector<2x32xf32>
    %96 = math.tanh %95 : vector<2x32xf32>
    %97 = arith.mulf %92, %96 : vector<2x32xf32>
    %c0_51 = arith.constant 0 : index
    %98 = arith.index_cast %66 : i32 to index
    %c0_52 = arith.constant 0 : index
    %c0_53 = arith.constant 0 : index
    %99 = vector.load %arg9[%c0_51, %98, %c0_52, %c0_53] : memref<1x8x2x32xf32, #tpu.memory_space<vmem>>, vector<1x1x2x32xf32>
    %100 = vector.shape_cast %99 : vector<1x1x2x32xf32> to vector<2x32xf32>
    %101 = vector.shape_cast %97 : vector<2x32xf32> to vector<1x1x2x32xf32>
    tpu.vector_store %arg9[%c0_51, %98, %c0_52, %c0_53], %101 {strides = array<i32>} : memref<1x8x2x32xf32, #tpu.memory_space<vmem>>, vector<1x1x2x32xf32>,
    %c1_i32 = arith.constant 1 : i32
    %c2_i32_54 = arith.constant 2 : i32
    %102 = arith.muli %c2_i32_54, %c1_i32 : i32
    %c7_i32_55 = arith.constant 7 : i32
    %103 = arith.subi %c7_i32_55, %102 : i32
    %104 = arith.muli %arg0, %103 : i32
    %105 = arith.addi %c1_i32, %104 : i32
    %106 = arith.index_cast %105 : i32 to index
    %c0_56 = arith.constant 0 : index
    %c0_57 = arith.constant 0 : index
    %107 = vector.load %arg12[%106, %c0_56, %c0_57] : memref<8x2x128xf32, #tpu.memory_space<vmem>>, vector<1x2x128xf32>
    %108 = vector.shape_cast %107 : vector<1x2x128xf32> to vector<2x128xf32>
    %109 = arith.truncf %97 : vector<2x32xf32> to vector<2x32xbf16>
    %cst_58 = arith.constant dense<0.000000e+00> : vector<2x128xf32>
    %110 = tpu.matmul %109, %58, %cst_58 {dimension_numbers = #tpu.dot_dimension_numbers<[1], [0], [0], [1], [0, 0, 1, 1], [], []>} : vector<2x32xbf16>, vector<32x128xbf16>, vector<2x128xf32> -> vector<2x128xf32>
    %111 = arith.addf %108, %110 : vector<2x128xf32>
    %112 = vector.extract_strided_slice %111 {offsets = [0, 0], sizes = [2, 32], strides = [1, 1]} : vector<2x128xf32> to vector<2x32xf32>
    %113 = arith.negf %112 : vector<2x32xf32>
    %114 = math.exp %113 : vector<2x32xf32>
    %cst_59 = arith.constant 1.000000e+00 : f32
    %115 = vector.broadcast %cst_59 : f32 to vector<2x32xf32>
    %116 = arith.addf %115, %114 : vector<2x32xf32>
    %117 = arith.divf %115, %116 : vector<2x32xf32>
    %118 = vector.extract_strided_slice %111 {offsets = [0, 32], sizes = [2, 32], strides = [1, 1]} : vector<2x128xf32> to vector<2x32xf32>
    %119 = arith.negf %118 : vector<2x32xf32>
    %120 = math.exp %119 : vector<2x32xf32>
    %cst_60 = arith.constant 1.000000e+00 : f32
    %121 = vector.broadcast %cst_60 : f32 to vector<2x32xf32>
    %122 = arith.addf %121, %120 : vector<2x32xf32>
    %123 = arith.divf %121, %122 : vector<2x32xf32>
    %124 = vector.extract_strided_slice %111 {offsets = [0, 64], sizes = [2, 32], strides = [1, 1]} : vector<2x128xf32> to vector<2x32xf32>
    %125 = math.tanh %124 : vector<2x32xf32>
    %126 = vector.extract_strided_slice %111 {offsets = [0, 96], sizes = [2, 32], strides = [1, 1]} : vector<2x128xf32> to vector<2x32xf32>
    %127 = arith.negf %126 : vector<2x32xf32>
    %128 = math.exp %127 : vector<2x32xf32>
    %cst_61 = arith.constant 1.000000e+00 : f32
    %129 = vector.broadcast %cst_61 : f32 to vector<2x32xf32>
    %130 = arith.addf %129, %128 : vector<2x32xf32>
    %131 = arith.divf %129, %130 : vector<2x32xf32>
    %132 = arith.mulf %123, %95 : vector<2x32xf32>
    %133 = arith.mulf %117, %125 : vector<2x32xf32>
    %134 = arith.addf %132, %133 : vector<2x32xf32>
    %135 = math.tanh %134 : vector<2x32xf32>
    %136 = arith.mulf %131, %135 : vector<2x32xf32>
    %c0_62 = arith.constant 0 : index
    %137 = arith.index_cast %105 : i32 to index
    %c0_63 = arith.constant 0 : index
    %c0_64 = arith.constant 0 : index
    %138 = vector.load %arg9[%c0_62, %137, %c0_63, %c0_64] : memref<1x8x2x32xf32, #tpu.memory_space<vmem>>, vector<1x1x2x32xf32>
    %139 = vector.shape_cast %138 : vector<1x1x2x32xf32> to vector<2x32xf32>
    %140 = vector.shape_cast %136 : vector<2x32xf32> to vector<1x1x2x32xf32>
    tpu.vector_store %arg9[%c0_62, %137, %c0_63, %c0_64], %140 {strides = array<i32>} : memref<1x8x2x32xf32, #tpu.memory_space<vmem>>, vector<1x1x2x32xf32>,
    %c2_i32_65 = arith.constant 2 : i32
    %c2_i32_66 = arith.constant 2 : i32
    %141 = arith.muli %c2_i32_66, %c2_i32_65 : i32
    %c7_i32_67 = arith.constant 7 : i32
    %142 = arith.subi %c7_i32_67, %141 : i32
    %143 = arith.muli %arg0, %142 : i32
    %144 = arith.addi %c2_i32_65, %143 : i32
    %145 = arith.index_cast %144 : i32 to index
    %c0_68 = arith.constant 0 : index
    %c0_69 = arith.constant 0 : index
    %146 = vector.load %arg12[%145, %c0_68, %c0_69] : memref<8x2x128xf32, #tpu.memory_space<vmem>>, vector<1x2x128xf32>
    %147 = vector.shape_cast %146 : vector<1x2x128xf32> to vector<2x128xf32>
    %148 = arith.truncf %136 : vector<2x32xf32> to vector<2x32xbf16>
    %cst_70 = arith.constant dense<0.000000e+00> : vector<2x128xf32>
    %149 = tpu.matmul %148, %58, %cst_70 {dimension_numbers = #tpu.dot_dimension_numbers<[1], [0], [0], [1], [0, 0, 1, 1], [], []>} : vector<2x32xbf16>, vector<32x128xbf16>, vector<2x128xf32> -> vector<2x128xf32>
    %150 = arith.addf %147, %149 : vector<2x128xf32>
    %151 = vector.extract_strided_slice %150 {offsets = [0, 0], sizes = [2, 32], strides = [1, 1]} : vector<2x128xf32> to vector<2x32xf32>
    %152 = arith.negf %151 : vector<2x32xf32>
    %153 = math.exp %152 : vector<2x32xf32>
    %cst_71 = arith.constant 1.000000e+00 : f32
    %154 = vector.broadcast %cst_71 : f32 to vector<2x32xf32>
    %155 = arith.addf %154, %153 : vector<2x32xf32>
    %156 = arith.divf %154, %155 : vector<2x32xf32>
    %157 = vector.extract_strided_slice %150 {offsets = [0, 32], sizes = [2, 32], strides = [1, 1]} : vector<2x128xf32> to vector<2x32xf32>
    %158 = arith.negf %157 : vector<2x32xf32>
    %159 = math.exp %158 : vector<2x32xf32>
    %cst_72 = arith.constant 1.000000e+00 : f32
    %160 = vector.broadcast %cst_72 : f32 to vector<2x32xf32>
    %161 = arith.addf %160, %159 : vector<2x32xf32>
    %162 = arith.divf %160, %161 : vector<2x32xf32>
    %163 = vector.extract_strided_slice %150 {offsets = [0, 64], sizes = [2, 32], strides = [1, 1]} : vector<2x128xf32> to vector<2x32xf32>
    %164 = math.tanh %163 : vector<2x32xf32>
    %165 = vector.extract_strided_slice %150 {offsets = [0, 96], sizes = [2, 32], strides = [1, 1]} : vector<2x128xf32> to vector<2x32xf32>
    %166 = arith.negf %165 : vector<2x32xf32>
    %167 = math.exp %166 : vector<2x32xf32>
    %cst_73 = arith.constant 1.000000e+00 : f32
    %168 = vector.broadcast %cst_73 : f32 to vector<2x32xf32>
    %169 = arith.addf %168, %167 : vector<2x32xf32>
    %170 = arith.divf %168, %169 : vector<2x32xf32>
    %171 = arith.mulf %162, %134 : vector<2x32xf32>
    %172 = arith.mulf %156, %164 : vector<2x32xf32>
    %173 = arith.addf %171, %172 : vector<2x32xf32>
    %174 = math.tanh %173 : vector<2x32xf32>
    %175 = arith.mulf %170, %174 : vector<2x32xf32>
    %c0_74 = arith.constant 0 : index
    %176 = arith.index_cast %144 : i32 to index
    %c0_75 = arith.constant 0 : index
    %c0_76 = arith.constant 0 : index
    %177 = vector.load %arg9[%c0_74, %176, %c0_75, %c0_76] : memref<1x8x2x32xf32, #tpu.memory_space<vmem>>, vector<1x1x2x32xf32>
    %178 = vector.shape_cast %177 : vector<1x1x2x32xf32> to vector<2x32xf32>
    %179 = vector.shape_cast %175 : vector<2x32xf32> to vector<1x1x2x32xf32>
    tpu.vector_store %arg9[%c0_74, %176, %c0_75, %c0_76], %179 {strides = array<i32>} : memref<1x8x2x32xf32, #tpu.memory_space<vmem>>, vector<1x1x2x32xf32>,
    %c3_i32 = arith.constant 3 : i32
    %c2_i32_77 = arith.constant 2 : i32
    %180 = arith.muli %c2_i32_77, %c3_i32 : i32
    %c7_i32_78 = arith.constant 7 : i32
    %181 = arith.subi %c7_i32_78, %180 : i32
    %182 = arith.muli %arg0, %181 : i32
    %183 = arith.addi %c3_i32, %182 : i32
    %184 = arith.index_cast %183 : i32 to index
    %c0_79 = arith.constant 0 : index
    %c0_80 = arith.constant 0 : index
    %185 = vector.load %arg12[%184, %c0_79, %c0_80] : memref<8x2x128xf32, #tpu.memory_space<vmem>>, vector<1x2x128xf32>
    %186 = vector.shape_cast %185 : vector<1x2x128xf32> to vector<2x128xf32>
    %187 = arith.truncf %175 : vector<2x32xf32> to vector<2x32xbf16>
    %cst_81 = arith.constant dense<0.000000e+00> : vector<2x128xf32>
    %188 = tpu.matmul %187, %58, %cst_81 {dimension_numbers = #tpu.dot_dimension_numbers<[1], [0], [0], [1], [0, 0, 1, 1], [], []>} : vector<2x32xbf16>, vector<32x128xbf16>, vector<2x128xf32> -> vector<2x128xf32>
    %189 = arith.addf %186, %188 : vector<2x128xf32>
    %190 = vector.extract_strided_slice %189 {offsets = [0, 0], sizes = [2, 32], strides = [1, 1]} : vector<2x128xf32> to vector<2x32xf32>
    %191 = arith.negf %190 : vector<2x32xf32>
    %192 = math.exp %191 : vector<2x32xf32>
    %cst_82 = arith.constant 1.000000e+00 : f32
    %193 = vector.broadcast %cst_82 : f32 to vector<2x32xf32>
    %194 = arith.addf %193, %192 : vector<2x32xf32>
    %195 = arith.divf %193, %194 : vector<2x32xf32>
    %196 = vector.extract_strided_slice %189 {offsets = [0, 32], sizes = [2, 32], strides = [1, 1]} : vector<2x128xf32> to vector<2x32xf32>
    %197 = arith.negf %196 : vector<2x32xf32>
    %198 = math.exp %197 : vector<2x32xf32>
    %cst_83 = arith.constant 1.000000e+00 : f32
    %199 = vector.broadcast %cst_83 : f32 to vector<2x32xf32>
    %200 = arith.addf %199, %198 : vector<2x32xf32>
    %201 = arith.divf %199, %200 : vector<2x32xf32>
    %202 = vector.extract_strided_slice %189 {offsets = [0, 64], sizes = [2, 32], strides = [1, 1]} : vector<2x128xf32> to vector<2x32xf32>
    %203 = math.tanh %202 : vector<2x32xf32>
    %204 = vector.extract_strided_slice %189 {offsets = [0, 96], sizes = [2, 32], strides = [1, 1]} : vector<2x128xf32> to vector<2x32xf32>
    %205 = arith.negf %204 : vector<2x32xf32>
    %206 = math.exp %205 : vector<2x32xf32>
    %cst_84 = arith.constant 1.000000e+00 : f32
    %207 = vector.broadcast %cst_84 : f32 to vector<2x32xf32>
    %208 = arith.addf %207, %206 : vector<2x32xf32>
    %209 = arith.divf %207, %208 : vector<2x32xf32>
    %210 = arith.mulf %201, %173 : vector<2x32xf32>
    %211 = arith.mulf %195, %203 : vector<2x32xf32>
    %212 = arith.addf %210, %211 : vector<2x32xf32>
    %213 = math.tanh %212 : vector<2x32xf32>
    %214 = arith.mulf %209, %213 : vector<2x32xf32>
    %c0_85 = arith.constant 0 : index
    %215 = arith.index_cast %183 : i32 to index
    %c0_86 = arith.constant 0 : index
    %c0_87 = arith.constant 0 : index
    %216 = vector.load %arg9[%c0_85, %215, %c0_86, %c0_87] : memref<1x8x2x32xf32, #tpu.memory_space<vmem>>, vector<1x1x2x32xf32>
    %217 = vector.shape_cast %216 : vector<1x1x2x32xf32> to vector<2x32xf32>
    %218 = vector.shape_cast %214 : vector<2x32xf32> to vector<1x1x2x32xf32>
    tpu.vector_store %arg9[%c0_85, %215, %c0_86, %c0_87], %218 {strides = array<i32>} : memref<1x8x2x32xf32, #tpu.memory_space<vmem>>, vector<1x1x2x32xf32>,
    %c4_i32 = arith.constant 4 : i32
    %c2_i32_88 = arith.constant 2 : i32
    %219 = arith.muli %c2_i32_88, %c4_i32 : i32
    %c7_i32_89 = arith.constant 7 : i32
    %220 = arith.subi %c7_i32_89, %219 : i32
    %221 = arith.muli %arg0, %220 : i32
    %222 = arith.addi %c4_i32, %221 : i32
    %223 = arith.index_cast %222 : i32 to index
    %c0_90 = arith.constant 0 : index
    %c0_91 = arith.constant 0 : index
    %224 = vector.load %arg12[%223, %c0_90, %c0_91] : memref<8x2x128xf32, #tpu.memory_space<vmem>>, vector<1x2x128xf32>
    %225 = vector.shape_cast %224 : vector<1x2x128xf32> to vector<2x128xf32>
    %226 = arith.truncf %214 : vector<2x32xf32> to vector<2x32xbf16>
    %cst_92 = arith.constant dense<0.000000e+00> : vector<2x128xf32>
    %227 = tpu.matmul %226, %58, %cst_92 {dimension_numbers = #tpu.dot_dimension_numbers<[1], [0], [0], [1], [0, 0, 1, 1], [], []>} : vector<2x32xbf16>, vector<32x128xbf16>, vector<2x128xf32> -> vector<2x128xf32>
    %228 = arith.addf %225, %227 : vector<2x128xf32>
    %229 = vector.extract_strided_slice %228 {offsets = [0, 0], sizes = [2, 32], strides = [1, 1]} : vector<2x128xf32> to vector<2x32xf32>
    %230 = arith.negf %229 : vector<2x32xf32>
    %231 = math.exp %230 : vector<2x32xf32>
    %cst_93 = arith.constant 1.000000e+00 : f32
    %232 = vector.broadcast %cst_93 : f32 to vector<2x32xf32>
    %233 = arith.addf %232, %231 : vector<2x32xf32>
    %234 = arith.divf %232, %233 : vector<2x32xf32>
    %235 = vector.extract_strided_slice %228 {offsets = [0, 32], sizes = [2, 32], strides = [1, 1]} : vector<2x128xf32> to vector<2x32xf32>
    %236 = arith.negf %235 : vector<2x32xf32>
    %237 = math.exp %236 : vector<2x32xf32>
    %cst_94 = arith.constant 1.000000e+00 : f32
    %238 = vector.broadcast %cst_94 : f32 to vector<2x32xf32>
    %239 = arith.addf %238, %237 : vector<2x32xf32>
    %240 = arith.divf %238, %239 : vector<2x32xf32>
    %241 = vector.extract_strided_slice %228 {offsets = [0, 64], sizes = [2, 32], strides = [1, 1]} : vector<2x128xf32> to vector<2x32xf32>
    %242 = math.tanh %241 : vector<2x32xf32>
    %243 = vector.extract_strided_slice %228 {offsets = [0, 96], sizes = [2, 32], strides = [1, 1]} : vector<2x128xf32> to vector<2x32xf32>
    %244 = arith.negf %243 : vector<2x32xf32>
    %245 = math.exp %244 : vector<2x32xf32>
    %cst_95 = arith.constant 1.000000e+00 : f32
    %246 = vector.broadcast %cst_95 : f32 to vector<2x32xf32>
    %247 = arith.addf %246, %245 : vector<2x32xf32>
    %248 = arith.divf %246, %247 : vector<2x32xf32>
    %249 = arith.mulf %240, %212 : vector<2x32xf32>
    %250 = arith.mulf %234, %242 : vector<2x32xf32>
    %251 = arith.addf %249, %250 : vector<2x32xf32>
    %252 = math.tanh %251 : vector<2x32xf32>
    %253 = arith.mulf %248, %252 : vector<2x32xf32>
    %c0_96 = arith.constant 0 : index
    %254 = arith.index_cast %222 : i32 to index
    %c0_97 = arith.constant 0 : index
    %c0_98 = arith.constant 0 : index
    %255 = vector.load %arg9[%c0_96, %254, %c0_97, %c0_98] : memref<1x8x2x32xf32, #tpu.memory_space<vmem>>, vector<1x1x2x32xf32>
    %256 = vector.shape_cast %255 : vector<1x1x2x32xf32> to vector<2x32xf32>
    %257 = vector.shape_cast %253 : vector<2x32xf32> to vector<1x1x2x32xf32>
    tpu.vector_store %arg9[%c0_96, %254, %c0_97, %c0_98], %257 {strides = array<i32>} : memref<1x8x2x32xf32, #tpu.memory_space<vmem>>, vector<1x1x2x32xf32>,
    %c5_i32 = arith.constant 5 : i32
    %c2_i32_99 = arith.constant 2 : i32
    %258 = arith.muli %c2_i32_99, %c5_i32 : i32
    %c7_i32_100 = arith.constant 7 : i32
    %259 = arith.subi %c7_i32_100, %258 : i32
    %260 = arith.muli %arg0, %259 : i32
    %261 = arith.addi %c5_i32, %260 : i32
    %262 = arith.index_cast %261 : i32 to index
    %c0_101 = arith.constant 0 : index
    %c0_102 = arith.constant 0 : index
    %263 = vector.load %arg12[%262, %c0_101, %c0_102] : memref<8x2x128xf32, #tpu.memory_space<vmem>>, vector<1x2x128xf32>
    %264 = vector.shape_cast %263 : vector<1x2x128xf32> to vector<2x128xf32>
    %265 = arith.truncf %253 : vector<2x32xf32> to vector<2x32xbf16>
    %cst_103 = arith.constant dense<0.000000e+00> : vector<2x128xf32>
    %266 = tpu.matmul %265, %58, %cst_103 {dimension_numbers = #tpu.dot_dimension_numbers<[1], [0], [0], [1], [0, 0, 1, 1], [], []>} : vector<2x32xbf16>, vector<32x128xbf16>, vector<2x128xf32> -> vector<2x128xf32>
    %267 = arith.addf %264, %266 : vector<2x128xf32>
    %268 = vector.extract_strided_slice %267 {offsets = [0, 0], sizes = [2, 32], strides = [1, 1]} : vector<2x128xf32> to vector<2x32xf32>
    %269 = arith.negf %268 : vector<2x32xf32>
    %270 = math.exp %269 : vector<2x32xf32>
    %cst_104 = arith.constant 1.000000e+00 : f32
    %271 = vector.broadcast %cst_104 : f32 to vector<2x32xf32>
    %272 = arith.addf %271, %270 : vector<2x32xf32>
    %273 = arith.divf %271, %272 : vector<2x32xf32>
    %274 = vector.extract_strided_slice %267 {offsets = [0, 32], sizes = [2, 32], strides = [1, 1]} : vector<2x128xf32> to vector<2x32xf32>
    %275 = arith.negf %274 : vector<2x32xf32>
    %276 = math.exp %275 : vector<2x32xf32>
    %cst_105 = arith.constant 1.000000e+00 : f32
    %277 = vector.broadcast %cst_105 : f32 to vector<2x32xf32>
    %278 = arith.addf %277, %276 : vector<2x32xf32>
    %279 = arith.divf %277, %278 : vector<2x32xf32>
    %280 = vector.extract_strided_slice %267 {offsets = [0, 64], sizes = [2, 32], strides = [1, 1]} : vector<2x128xf32> to vector<2x32xf32>
    %281 = math.tanh %280 : vector<2x32xf32>
    %282 = vector.extract_strided_slice %267 {offsets = [0, 96], sizes = [2, 32], strides = [1, 1]} : vector<2x128xf32> to vector<2x32xf32>
    %283 = arith.negf %282 : vector<2x32xf32>
    %284 = math.exp %283 : vector<2x32xf32>
    %cst_106 = arith.constant 1.000000e+00 : f32
    %285 = vector.broadcast %cst_106 : f32 to vector<2x32xf32>
    %286 = arith.addf %285, %284 : vector<2x32xf32>
    %287 = arith.divf %285, %286 : vector<2x32xf32>
    %288 = arith.mulf %279, %251 : vector<2x32xf32>
    %289 = arith.mulf %273, %281 : vector<2x32xf32>
    %290 = arith.addf %288, %289 : vector<2x32xf32>
    %291 = math.tanh %290 : vector<2x32xf32>
    %292 = arith.mulf %287, %291 : vector<2x32xf32>
    %c0_107 = arith.constant 0 : index
    %293 = arith.index_cast %261 : i32 to index
    %c0_108 = arith.constant 0 : index
    %c0_109 = arith.constant 0 : index
    %294 = vector.load %arg9[%c0_107, %293, %c0_108, %c0_109] : memref<1x8x2x32xf32, #tpu.memory_space<vmem>>, vector<1x1x2x32xf32>
    %295 = vector.shape_cast %294 : vector<1x1x2x32xf32> to vector<2x32xf32>
    %296 = vector.shape_cast %292 : vector<2x32xf32> to vector<1x1x2x32xf32>
    tpu.vector_store %arg9[%c0_107, %293, %c0_108, %c0_109], %296 {strides = array<i32>} : memref<1x8x2x32xf32, #tpu.memory_space<vmem>>, vector<1x1x2x32xf32>,
    %c6_i32 = arith.constant 6 : i32
    %c2_i32_110 = arith.constant 2 : i32
    %297 = arith.muli %c2_i32_110, %c6_i32 : i32
    %c7_i32_111 = arith.constant 7 : i32
    %298 = arith.subi %c7_i32_111, %297 : i32
    %299 = arith.muli %arg0, %298 : i32
    %300 = arith.addi %c6_i32, %299 : i32
    %301 = arith.index_cast %300 : i32 to index
    %c0_112 = arith.constant 0 : index
    %c0_113 = arith.constant 0 : index
    %302 = vector.load %arg12[%301, %c0_112, %c0_113] : memref<8x2x128xf32, #tpu.memory_space<vmem>>, vector<1x2x128xf32>
    %303 = vector.shape_cast %302 : vector<1x2x128xf32> to vector<2x128xf32>
    %304 = arith.truncf %292 : vector<2x32xf32> to vector<2x32xbf16>
    %cst_114 = arith.constant dense<0.000000e+00> : vector<2x128xf32>
    %305 = tpu.matmul %304, %58, %cst_114 {dimension_numbers = #tpu.dot_dimension_numbers<[1], [0], [0], [1], [0, 0, 1, 1], [], []>} : vector<2x32xbf16>, vector<32x128xbf16>, vector<2x128xf32> -> vector<2x128xf32>
    %306 = arith.addf %303, %305 : vector<2x128xf32>
    %307 = vector.extract_strided_slice %306 {offsets = [0, 0], sizes = [2, 32], strides = [1, 1]} : vector<2x128xf32> to vector<2x32xf32>
    %308 = arith.negf %307 : vector<2x32xf32>
    %309 = math.exp %308 : vector<2x32xf32>
    %cst_115 = arith.constant 1.000000e+00 : f32
    %310 = vector.broadcast %cst_115 : f32 to vector<2x32xf32>
    %311 = arith.addf %310, %309 : vector<2x32xf32>
    %312 = arith.divf %310, %311 : vector<2x32xf32>
    %313 = vector.extract_strided_slice %306 {offsets = [0, 32], sizes = [2, 32], strides = [1, 1]} : vector<2x128xf32> to vector<2x32xf32>
    %314 = arith.negf %313 : vector<2x32xf32>
    %315 = math.exp %314 : vector<2x32xf32>
    %cst_116 = arith.constant 1.000000e+00 : f32
    %316 = vector.broadcast %cst_116 : f32 to vector<2x32xf32>
    %317 = arith.addf %316, %315 : vector<2x32xf32>
    %318 = arith.divf %316, %317 : vector<2x32xf32>
    %319 = vector.extract_strided_slice %306 {offsets = [0, 64], sizes = [2, 32], strides = [1, 1]} : vector<2x128xf32> to vector<2x32xf32>
    %320 = math.tanh %319 : vector<2x32xf32>
    %321 = vector.extract_strided_slice %306 {offsets = [0, 96], sizes = [2, 32], strides = [1, 1]} : vector<2x128xf32> to vector<2x32xf32>
    %322 = arith.negf %321 : vector<2x32xf32>
    %323 = math.exp %322 : vector<2x32xf32>
    %cst_117 = arith.constant 1.000000e+00 : f32
    %324 = vector.broadcast %cst_117 : f32 to vector<2x32xf32>
    %325 = arith.addf %324, %323 : vector<2x32xf32>
    %326 = arith.divf %324, %325 : vector<2x32xf32>
    %327 = arith.mulf %318, %290 : vector<2x32xf32>
    %328 = arith.mulf %312, %320 : vector<2x32xf32>
    %329 = arith.addf %327, %328 : vector<2x32xf32>
    %330 = math.tanh %329 : vector<2x32xf32>
    %331 = arith.mulf %326, %330 : vector<2x32xf32>
    %c0_118 = arith.constant 0 : index
    %332 = arith.index_cast %300 : i32 to index
    %c0_119 = arith.constant 0 : index
    %c0_120 = arith.constant 0 : index
    %333 = vector.load %arg9[%c0_118, %332, %c0_119, %c0_120] : memref<1x8x2x32xf32, #tpu.memory_space<vmem>>, vector<1x1x2x32xf32>
    %334 = vector.shape_cast %333 : vector<1x1x2x32xf32> to vector<2x32xf32>
    %335 = vector.shape_cast %331 : vector<2x32xf32> to vector<1x1x2x32xf32>
    tpu.vector_store %arg9[%c0_118, %332, %c0_119, %c0_120], %335 {strides = array<i32>} : memref<1x8x2x32xf32, #tpu.memory_space<vmem>>, vector<1x1x2x32xf32>,
    %c7_i32_121 = arith.constant 7 : i32
    %c2_i32_122 = arith.constant 2 : i32
    %336 = arith.muli %c2_i32_122, %c7_i32_121 : i32
    %c7_i32_123 = arith.constant 7 : i32
    %337 = arith.subi %c7_i32_123, %336 : i32
    %338 = arith.muli %arg0, %337 : i32
    %339 = arith.addi %c7_i32_121, %338 : i32
    %340 = arith.index_cast %339 : i32 to index
    %c0_124 = arith.constant 0 : index
    %c0_125 = arith.constant 0 : index
    %341 = vector.load %arg12[%340, %c0_124, %c0_125] : memref<8x2x128xf32, #tpu.memory_space<vmem>>, vector<1x2x128xf32>
    %342 = vector.shape_cast %341 : vector<1x2x128xf32> to vector<2x128xf32>
    %343 = arith.truncf %331 : vector<2x32xf32> to vector<2x32xbf16>
    %cst_126 = arith.constant dense<0.000000e+00> : vector<2x128xf32>
    %344 = tpu.matmul %343, %58, %cst_126 {dimension_numbers = #tpu.dot_dimension_numbers<[1], [0], [0], [1], [0, 0, 1, 1], [], []>} : vector<2x32xbf16>, vector<32x128xbf16>, vector<2x128xf32> -> vector<2x128xf32>
    %345 = arith.addf %342, %344 : vector<2x128xf32>
    %346 = vector.extract_strided_slice %345 {offsets = [0, 0], sizes = [2, 32], strides = [1, 1]} : vector<2x128xf32> to vector<2x32xf32>
    %347 = arith.negf %346 : vector<2x32xf32>
    %348 = math.exp %347 : vector<2x32xf32>
    %cst_127 = arith.constant 1.000000e+00 : f32
    %349 = vector.broadcast %cst_127 : f32 to vector<2x32xf32>
    %350 = arith.addf %349, %348 : vector<2x32xf32>
    %351 = arith.divf %349, %350 : vector<2x32xf32>
    %352 = vector.extract_strided_slice %345 {offsets = [0, 32], sizes = [2, 32], strides = [1, 1]} : vector<2x128xf32> to vector<2x32xf32>
    %353 = arith.negf %352 : vector<2x32xf32>
    %354 = math.exp %353 : vector<2x32xf32>
    %cst_128 = arith.constant 1.000000e+00 : f32
    %355 = vector.broadcast %cst_128 : f32 to vector<2x32xf32>
    %356 = arith.addf %355, %354 : vector<2x32xf32>
    %357 = arith.divf %355, %356 : vector<2x32xf32>
    %358 = vector.extract_strided_slice %345 {offsets = [0, 64], sizes = [2, 32], strides = [1, 1]} : vector<2x128xf32> to vector<2x32xf32>
    %359 = math.tanh %358 : vector<2x32xf32>
    %360 = vector.extract_strided_slice %345 {offsets = [0, 96], sizes = [2, 32], strides = [1, 1]} : vector<2x128xf32> to vector<2x32xf32>
    %361 = arith.negf %360 : vector<2x32xf32>
    %362 = math.exp %361 : vector<2x32xf32>
    %cst_129 = arith.constant 1.000000e+00 : f32
    %363 = vector.broadcast %cst_129 : f32 to vector<2x32xf32>
    %364 = arith.addf %363, %362 : vector<2x32xf32>
    %365 = arith.divf %363, %364 : vector<2x32xf32>
    %366 = arith.mulf %357, %329 : vector<2x32xf32>
    %367 = arith.mulf %351, %359 : vector<2x32xf32>
    %368 = arith.addf %366, %367 : vector<2x32xf32>
    %369 = math.tanh %368 : vector<2x32xf32>
    %370 = arith.mulf %365, %369 : vector<2x32xf32>
    %c0_130 = arith.constant 0 : index
    %371 = arith.index_cast %339 : i32 to index
    %c0_131 = arith.constant 0 : index
    %c0_132 = arith.constant 0 : index
    %372 = vector.load %arg9[%c0_130, %371, %c0_131, %c0_132] : memref<1x8x2x32xf32, #tpu.memory_space<vmem>>, vector<1x1x2x32xf32>
    %373 = vector.shape_cast %372 : vector<1x1x2x32xf32> to vector<2x32xf32>
    %374 = vector.shape_cast %370 : vector<2x32xf32> to vector<1x1x2x32xf32>
    tpu.vector_store %arg9[%c0_130, %371, %c0_131, %c0_132], %374 {strides = array<i32>} : memref<1x8x2x32xf32, #tpu.memory_space<vmem>>, vector<1x1x2x32xf32>,
    %c8_i32 = arith.constant 8 : i32
    %c0_133 = arith.constant 0 : index
    %c0_134 = arith.constant 0 : index
    %c0_135 = arith.constant 0 : index
    %375 = vector.load %arg10[%c0_133, %c0_134, %c0_135] : memref<1x2x32xf32, #tpu.memory_space<vmem>>, vector<1x2x32xf32>
    %376 = vector.shape_cast %375 : vector<1x2x32xf32> to vector<2x32xf32>
    %377 = vector.shape_cast %370 : vector<2x32xf32> to vector<1x2x32xf32>
    tpu.vector_store %arg10[%c0_133, %c0_134, %c0_135], %377 {strides = array<i32>} : memref<1x2x32xf32, #tpu.memory_space<vmem>>, vector<1x2x32xf32>,
    %c0_136 = arith.constant 0 : index
    %c0_137 = arith.constant 0 : index
    %c0_138 = arith.constant 0 : index
    %378 = vector.load %arg11[%c0_136, %c0_137, %c0_138] : memref<1x2x32xf32, #tpu.memory_space<vmem>>, vector<1x2x32xf32>
    %379 = vector.shape_cast %378 : vector<1x2x32xf32> to vector<2x32xf32>
    %380 = vector.shape_cast %368 : vector<2x32xf32> to vector<1x2x32xf32>
    tpu.vector_store %arg11[%c0_136, %c0_137, %c0_138], %380 {strides = array<i32>} : memref<1x2x32xf32, #tpu.memory_space<vmem>>, vector<1x2x32xf32>,
    return
  }
  func.func @transform_0(%arg0: i32) -> (i32, i32, i32) {
    %c0_i32 = arith.constant 0 : i32
    %c0_i32_0 = arith.constant 0 : i32
    %c0_i32_1 = arith.constant 0 : i32
    %c0_i32_2 = arith.constant 0 : i32
    return %c0_i32, %c0_i32_0, %c0_i32_1 : i32, i32, i32
  }
  func.func @transform_1(%arg0: i32) -> (i32, i32) {
    %c0_i32 = arith.constant 0 : i32
    %c0_i32_0 = arith.constant 0 : i32
    %c0_i32_1 = arith.constant 0 : i32
    return %c0_i32, %c0_i32_0 : i32, i32
  }
  func.func @transform_2(%arg0: i32) -> (i32, i32, i32) {
    %c0_i32 = arith.constant 0 : i32
    %c0_i32_0 = arith.constant 0 : i32
    %c0_i32_1 = arith.constant 0 : i32
    return %arg0, %c0_i32, %c0_i32_0 : i32, i32, i32
  }
  func.func @transform_3(%arg0: i32) -> (i32, i32, i32) {
    %c0_i32 = arith.constant 0 : i32
    %c0_i32_0 = arith.constant 0 : i32
    %c0_i32_1 = arith.constant 0 : i32
    return %arg0, %c0_i32, %c0_i32_0 : i32, i32, i32
  }
  func.func @transform_4(%arg0: i32) -> (i32, i32, i32) {
    %c0_i32 = arith.constant 0 : i32
    %c0_i32_0 = arith.constant 0 : i32
    %c0_i32_1 = arith.constant 0 : i32
    return %arg0, %c0_i32, %c0_i32_0 : i32, i32, i32
  }
  func.func @transform_5(%arg0: i32) -> (i32, i32, i32) {
    %c0_i32 = arith.constant 0 : i32
    %c0_i32_0 = arith.constant 0 : i32
    %c0_i32_1 = arith.constant 0 : i32
    return %arg0, %c0_i32, %c0_i32_0 : i32, i32, i32
  }
  func.func @transform_6(%arg0: i32) -> (i32, i32, i32) {
    %c0_i32 = arith.constant 0 : i32
    %c0_i32_0 = arith.constant 0 : i32
    %c0_i32_1 = arith.constant 0 : i32
    return %arg0, %c0_i32, %c0_i32_0 : i32, i32, i32
  }
  func.func @transform_7(%arg0: i32) -> (i32, i32, i32) {
    %c0_i32 = arith.constant 0 : i32
    %c0_i32_0 = arith.constant 0 : i32
    %c0_i32_1 = arith.constant 0 : i32
    return %arg0, %c0_i32, %c0_i32_0 : i32, i32, i32
  }
  func.func @transform_8(%arg0: i32) -> (i32, i32, i32, i32) {
    %c0_i32 = arith.constant 0 : i32
    %c0_i32_0 = arith.constant 0 : i32
    %c0_i32_1 = arith.constant 0 : i32
    %c0_i32_2 = arith.constant 0 : i32
    return %arg0, %c0_i32, %c0_i32_0, %c0_i32_1 : i32, i32, i32, i32
  }
  func.func @transform_9(%arg0: i32) -> (i32, i32, i32) {
    %c0_i32 = arith.constant 0 : i32
    %c0_i32_0 = arith.constant 0 : i32
    %c0_i32_1 = arith.constant 0 : i32
    return %arg0, %c0_i32, %c0_i32_0 : i32, i32, i32
  }
  func.func @transform_10(%arg0: i32) -> (i32, i32, i32) {
    %c0_i32 = arith.constant 0 : i32
    %c0_i32_0 = arith.constant 0 : i32
    %c0_i32_1 = arith.constant 0 : i32
    return %arg0, %c0_i32, %c0_i32_0 : i32, i32, i32
  }
}

</mosaic_0001>

<llo_original>
// kernel: dc_bilstm_forward.7
$region0: #{dc_bilstm_forward.7}
  #allocation0 [shape = 'u32[]', space=smem, size = 0x4, offset = 0x4, fixed_abs, tag = 'smem constant byte address 0x4 - core index']
  #allocation1 [shape = 'u32[72,128]{1,0:T(1,128)}', space=vmem, size = 0x9000, scoped, tag = 'internal scratch']
  %s0 = inlined_call_operand.vmem [shape: f32[2,2,32], index: 0, kind: input, shape index: {}]
  %s1 = inlined_call_operand.vmem [shape: f32[64,8], index: 1, kind: input, shape index: {}]
  %s2 = inlined_call_operand.vmem [shape: f32[1,8], index: 2, kind: input, shape index: {}]
  %s3 = inlined_call_operand.hbm [shape: f32[2,8], index: 3, kind: output, shape index: {}]
  %s4 = sld [smem:[#allocation0]]
  $region22: #{dc_bilstm_forward.7} parent=0
    _
  %s6 = ssub.s32 1, %s4
  %s7 = scalar_select 0, %s6, %s4
  $region1: #{dc_bilstm_forward.7} parent=0
    #allocation2 [shape = 'u8[1024]{0}', space=vmem, size = 0x400, scoped, tag = 'output window, operand 0, single buffered']
    #allocation3 [shape = 's32[1]{0}', space=sflag, size = 0x4, scoped, tag = 'scoped memory for dc_bilstm_forward.7']
    %8 = vsyncpa [#allocation3], 0
    // Predicated region
    $region2: #{dc_bilstm_forward.7} parent=1 // pred_check
      _
    $region3: #{dc_bilstm_forward.7} parent=1 // pred_check_branch
      %10 = sbr.rel (0) target = $region5
    $region4: #{dc_bilstm_forward.7} parent=1 // pred_region
      _
    $region5: #{dc_bilstm_forward.7} parent=1 // pred_fallthru
      _
    // Predicated region
    $region6: #{dc_bilstm_forward.7} parent=1 // pred_check
      _
    $region7: #{dc_bilstm_forward.7} parent=1 // pred_check_branch
      %12 = sbr.rel (0) target = $region9
    $region8: #{dc_bilstm_forward.7} parent=1 // pred_region
      _
    $region9: #{dc_bilstm_forward.7} parent=1 // pred_fallthru
      _
    // Predicated region
    $region10: #{dc_bilstm_forward.7} parent=1 // pred_check
      _
    $region11: #{dc_bilstm_forward.7} parent=1 // pred_check_branch
      %14 = sbr.rel (0) target = $region13
    $region12: #{dc_bilstm_forward.7} parent=1 // pred_region
      _
    $region13: #{dc_bilstm_forward.7} parent=1 // pred_fallthru
      _
    %v15 = vld [vmem:[%s1] sm:$0xff]
    %v16 = vld [vmem:[%s1 + $0x8] sm:$0xff]
    %v17 = vld [vmem:[%s1 + $0x10] sm:$0xff]
    %v18 = vld [vmem:[%s1 + $0x18] sm:$0xff]
    %v19 = vld [vmem:[%s1 + $0x20] sm:$0xff]
    %v20 = vld [vmem:[%s1 + $0x28] sm:$0xff]
    %v21 = vld [vmem:[%s1 + $0x30] sm:$0xff]
    %v22 = vld [vmem:[%s1 + $0x38] sm:$0xff]
    %v23 = vld [vmem:[%s0] sm:$0x3]
    %s24 = scalar_lea.vmem %s0, 2
    %v25 = vld [vmem:[%s24] sm:$0x3]
    %vm26 = vcmask 261120
    %v28 = vsel %vm26, %v25, 0
    %30 = vmatpush.msra.mxu0 0.0
    %31 = vmatpush.msra.mxu0 0.0
    %32 = vmatpush.msra.mxu0 0.0
    %33 = vmatpush.msra.mxu0 0.0
    %34 = vmatpush.msra.mxu0 0.0
    %35 = vmatpush.msra.mxu0 0.0
    %36 = vmatpush.msra.mxu0 0.0
    %37 = vmatpush.msra.mxu0 0.0
    %38 = vmatpush.msra.mxu0 0.0
    %39 = vmatpush.msra.mxu0 0.0
    %40 = vmatpush.msra.mxu0 0.0
    %41 = vmatpush.msra.mxu0 0.0
    %42 = vmatpush.msra.mxu0 %v22
    %43 = vmatpush.msra.mxu0 %v21
    %44 = vmatpush.msra.mxu0 %v20
    %45 = vmatpush.msra.mxu0 %v19
    %46 = vmatmul.f32.gmra.mxu0 %v28
    %v47 = vpop.f32.mrf.mxu0
    %v48 = vadd.f32 0.0, %v47
    %49 = vdwg.mxu0
    %v51 = vsel %vm26, %v23, 0
    %53 = vmatpush.msra.mxu0 0.0
    %54 = vmatpush.msra.mxu0 0.0
    %55 = vmatpush.msra.mxu0 0.0
    %56 = vmatpush.msra.mxu0 0.0
    %57 = vmatpush.msra.mxu0 0.0
    %58 = vmatpush.msra.mxu0 0.0
    %59 = vmatpush.msra.mxu0 0.0
    %60 = vmatpush.msra.mxu0 0.0
    %61 = vmatpush.msra.mxu0 0.0
    %62 = vmatpush.msra.mxu0 0.0
    %63 = vmatpush.msra.mxu0 0.0
    %64 = vmatpush.msra.mxu0 0.0
    %65 = vmatpush.msra.mxu0 %v18
    %66 = vmatpush.msra.mxu0 %v17
    %67 = vmatpush.msra.mxu0 %v16
    %68 = vmatpush.msra.mxu0 %v15
    %69 = vmatmul.f32.gmra.mxu0 %v51
    %v70 = vpop.f32.mrf.mxu0
    %v71 = vadd.f32 %v48, %v70
    %72 = vdwg.mxu0
    %v73 = vld [vmem:[%s2] sm:$0x1]
    %v75 = vperm.slane %v73, 0
    %v77 = vadd.f32 %v71, %v75
    %vm78 = vcmask 58368
    %79 = vst.msk [vmem:[#allocation2] sm:$0x3] %vm78, %v77
    // Predicated region
    $region14: #{dc_bilstm_forward.7} parent=1 // pred_check
      _
    $region15: #{dc_bilstm_forward.7} parent=1 // pred_check_branch
      %81 = sbr.rel (0) target = $region17
    $region16: #{dc_bilstm_forward.7} parent=1 // pred_region
      %83 = vsyncadd [#allocation3], 0
      %s85 = sshll.u32 [#allocation2], 4
      %s86 = int_to_ptr.vmem [resolvable:$true] %s85
      %s87 = sshll.u32 %s3, 4
      %s88 = int_to_ptr.hbm [resolvable:$true] %s87
      %90 = dma.vmem_to_hbm [thread:$0]  %s86, 32, %s88, [#allocation3]
    $region17: #{dc_bilstm_forward.7} parent=1 // pred_fallthru
      _
    // Predicated region
    $region18: #{dc_bilstm_forward.7} parent=1 // pred_check
      _
    $region19: #{dc_bilstm_forward.7} parent=1 // pred_check_branch
      %92 = sbr.rel (0) target = $region21
    $region20: #{dc_bilstm_forward.7} parent=1 // pred_region
      %94 = dma.done [#allocation3], 32
    $region21: #{dc_bilstm_forward.7} parent=1 // pred_fallthru
      _
    %95 = vsyncpa [#allocation3], 1

// kernel: dc_bilstm_forward.6
$region0: #{dc_bilstm_forward.6}
  #allocation0 [shape = 'u32[]', space=smem, size = 0x4, offset = 0x4, fixed_abs, tag = 'smem constant byte address 0x4 - core index']
  #allocation1 [shape = 'u32[72,128]{1,0:T(1,128)}', space=vmem, size = 0x9000, scoped, tag = 'internal scratch']
  #allocation2 [shape = 'f32[8,2,128]{2,1,0:T(2,128)}', space=vmem, size = 0x2000, scoped, tag = 'scratch operand']
  %s0 = inlined_call_operand.vmem [shape: f32[2,16,32], index: 0, kind: input, shape index: {}]
  %s1 = inlined_call_operand.vmem [shape: f32[2,16,32], index: 1, kind: input, shape index: {}]
  %s2 = inlined_call_operand.vmem [shape: f32[16,48], index: 2, kind: input, shape index: {}]
  %s3 = inlined_call_operand.vmem [shape: bf16[2,64,128], index: 3, kind: input, shape index: {}]
  %s4 = inlined_call_operand.vmem [shape: bf16[2,64,128], index: 4, kind: input, shape index: {}]
  %s5 = inlined_call_operand.vmem [shape: bf16[2,48,128], index: 5, kind: input, shape index: {}]
  %s6 = inlined_call_operand.vmem [shape: bf16[2,32,128], index: 6, kind: input, shape index: {}]
  %s7 = inlined_call_operand.vmem [shape: f32[2,1,128], index: 7, kind: input, shape index: {}]
  %s8 = inlined_call_operand.vmem [shape: f32[2,2,32], index: 8, kind: input, shape index: {}]
  %s9 = inlined_call_operand.vmem [shape: f32[2,2,32], index: 9, kind: input, shape index: {}]
  %s10 = inlined_call_operand.vmem [shape: f32[2,2,32], index: 10, kind: output, shape index: {}]
  %s11 = sld [smem:[#allocation0]]
  $region73: #{dc_bilstm_forward.6} parent=0
    _
  %s13 = ssub.s32 1, %s11
  %s14 = scalar_select 0, %s13, %s11
  loop: start=0, step=1, limit=4
  $region2: #{dc_bilstm_forward.6} parent=0 // loop_pre_header
    _
  $region3: #{dc_bilstm_forward.6} parent=0 // loop_header
    %s16 = sphi 0, %s20
    %p17 = scmp.ge.s32.totalorder %s16, 4
    %s24 = sphi 0, %s24
    %s26 = sphi 0, %s24
    %s27 = sphi 0, %s26
    %s41 = sphi 0, %s27
    %s45 = sphi 0, %s45
    %s47 = sphi 0, %s45
    %s48 = sphi 0, %s47
    %s62 = sphi 0, %s48
    %s66 = sphi 0, %s66
    %s68 = sphi 0, %s66
    %s69 = sphi 0, %s68
    %s83 = sphi 0, %s69
    %s89 = sphi 0, %s91
    %s92 = sphi 0, %s89
    %s93 = sphi 0, %s92
    %s109 = sphi 0, %s93
    %s115 = sphi 0, %s117
    %s118 = sphi 0, %s115
    %s119 = sphi 0, %s118
    %s135 = sphi 0, %s119
    %s141 = sphi 0, %s143
    %s144 = sphi 0, %s141
    %s145 = sphi 0, %s144
    %s161 = sphi 0, %s145
    %s167 = sphi 0, %s169
    %s170 = sphi 0, %s167
    %s171 = sphi 0, %s170
    %s187 = sphi 0, %s171
    %s193 = sphi 0, %s195
    %s196 = sphi 0, %s193
    %s197 = sphi 0, %s196
    %s213 = sphi 0, %s197
    %s219 = sphi 0, %s221
    %s222 = sphi 0, %s219
    %s223 = sphi 0, %s222
    %s239 = sphi 0, %s223
    %s245 = sphi 0, %s247
    %s248 = sphi 0, %s245
    %s249 = sphi 0, %s248
    %s265 = sphi 0, %s249
    %s271 = sphi 0, %s273
    %s274 = sphi 0, %s271
    %s275 = sphi 0, %s274
    %s291 = sphi 0, %s275
  $region4: #{dc_bilstm_forward.6} parent=0 // loop_header_branch
    %19 = sbr.rel (%p17) target = $region8
  $region5: #{dc_bilstm_forward.6} parent=0 // loop_body
    %s21 = ssub.s32 %s16, 1
    %s22 = ssub.s32 %s16, 2
    %s23 = sadd.s32 %s16, 1
    %s25 = sadd.s32 %s24, 1
    %p28 = scmp.eq.s32.totalorder %s16, 1
    %p29 = scmp.ne.s32.totalorder %s24, %s26
    %p30 = scmp.eq.s32.totalorder %s16, 0
    %p31 = por %p29, %p30
    %p32 = scmp.ne.s32.totalorder %s24, %s26
    %p33 = scmp.eq.s32.totalorder %s21, 1
    %p34 = por %p32, %p33
    %p35 = scmp.ne.s32.totalorder %s26, %s27
    %p36 = scmp.eq.s32.totalorder %s21, 0
    %p37 = por %p35, %p36
    %p38 = scmp.ne.s32.totalorder %s26, %s27
    %p39 = scmp.eq.s32.totalorder %s22, 1
    %p40 = por %p38, %p39
    %p42 = scmp.ne.s32.totalorder %s27, %s41
    %p43 = scmp.eq.s32.totalorder %s22, 0
    %p44 = por %p42, %p43
    %s46 = sadd.s32 %s45, 1
    %p49 = scmp.eq.s32.totalorder %s16, 1
    %p50 = scmp.ne.s32.totalorder %s45, %s47
    %p51 = scmp.eq.s32.totalorder %s16, 0
    %p52 = por %p50, %p51
    %p53 = scmp.ne.s32.totalorder %s45, %s47
    %p54 = scmp.eq.s32.totalorder %s21, 1
    %p55 = por %p53, %p54
    %p56 = scmp.ne.s32.totalorder %s47, %s48
    %p57 = scmp.eq.s32.totalorder %s21, 0
    %p58 = por %p56, %p57
    %p59 = scmp.ne.s32.totalorder %s47, %s48
    %p60 = scmp.eq.s32.totalorder %s22, 1
    %p61 = por %p59, %p60
    %p63 = scmp.ne.s32.totalorder %s48, %s62
    %p64 = scmp.eq.s32.totalorder %s22, 0
    %p65 = por %p63, %p64
    %s67 = sadd.s32 %s66, 1
    %p70 = scmp.eq.s32.totalorder %s16, 1
    %p71 = scmp.ne.s32.totalorder %s66, %s68
    %p72 = scmp.eq.s32.totalorder %s16, 0
    %p73 = por %p71, %p72
    %p74 = scmp.ne.s32.totalorder %s66, %s68
    %p75 = scmp.eq.s32.totalorder %s21, 1
    %p76 = por %p74, %p75
    %p77 = scmp.ne.s32.totalorder %s68, %s69
    %p78 = scmp.eq.s32.totalorder %s21, 0
    %p79 = por %p77, %p78
    %p80 = scmp.ne.s32.totalorder %s68, %s69
    %p81 = scmp.eq.s32.totalorder %s22, 1
    %p82 = por %p80, %p81
    %p84 = scmp.ne.s32.totalorder %s69, %s83
    %p85 = scmp.eq.s32.totalorder %s22, 0
    %p86 = por %p84, %p85
    %s87 = ssub.s32 %s16, %s23
    %p88 = scmp.eq.s32.totalorder %s87, 0
    %s90 = sadd.s32 %s89, 1
    %s91 = scalar_select %p88, %s89, %s90
    %p94 = pneg %p88
    %p95 = scmp.eq.s32.totalorder %s16, 1
    %p96 = por %p94, %p95
    %p97 = scmp.ne.s32.totalorder %s89, %s92
    %p98 = scmp.eq.s32.totalorder %s16, 0
    %p99 = por %p97, %p98
    %p100 = scmp.ne.s32.totalorder %s89, %s92
    %p101 = scmp.eq.s32.totalorder %s21, 1
    %p102 = por %p100, %p101
    %p103 = scmp.ne.s32.totalorder %s92, %s93
    %p104 = scmp.eq.s32.totalorder %s21, 0
    %p105 = por %p103, %p104
    %p106 = scmp.ne.s32.totalorder %s92, %s93
    %p107 = scmp.eq.s32.totalorder %s22, 1
    %p108 = por %p106, %p107
    %p110 = scmp.ne.s32.totalorder %s93, %s109
    %p111 = scmp.eq.s32.totalorder %s22, 0
    %p112 = por %p110, %p111
    %s113 = ssub.s32 %s16, %s23
    %p114 = scmp.eq.s32.totalorder %s113, 0
    %s116 = sadd.s32 %s115, 1
    %s117 = scalar_select %p114, %s115, %s116
    %p120 = pneg %p114
    %p121 = scmp.eq.s32.totalorder %s16, 1
    %p122 = por %p120, %p121
    %p123 = scmp.ne.s32.totalorder %s115, %s118
    %p124 = scmp.eq.s32.totalorder %s16, 0
    %p125 = por %p123, %p124
    %p126 = scmp.ne.s32.totalorder %s115, %s118
    %p127 = scmp.eq.s32.totalorder %s21, 1
    %p128 = por %p126, %p127
    %p129 = scmp.ne.s32.totalorder %s118, %s119
    %p130 = scmp.eq.s32.totalorder %s21, 0
    %p131 = por %p129, %p130
    %p132 = scmp.ne.s32.totalorder %s118, %s119
    %p133 = scmp.eq.s32.totalorder %s22, 1
    %p134 = por %p132, %p133
    %p136 = scmp.ne.s32.totalorder %s119, %s135
    %p137 = scmp.eq.s32.totalorder %s22, 0
    %p138 = por %p136, %p137
    %s139 = ssub.s32 %s16, %s23
    %p140 = scmp.eq.s32.totalorder %s139, 0
    %s142 = sadd.s32 %s141, 1
    %s143 = scalar_select %p140, %s141, %s142
    %p146 = pneg %p140
    %p147 = scmp.eq.s32.totalorder %s16, 1
    %p148 = por %p146, %p147
    %p149 = scmp.ne.s32.totalorder %s141, %s144
    %p150 = scmp.eq.s32.totalorder %s16, 0
    %p151 = por %p149, %p150
    %p152 = scmp.ne.s32.totalorder %s141, %s144
    %p153 = scmp.eq.s32.totalorder %s21, 1
    %p154 = por %p152, %p153
    %p155 = scmp.ne.s32.totalorder %s144, %s145
    %p156 = scmp.eq.s32.totalorder %s21, 0
    %p157 = por %p155, %p156
    %p158 = scmp.ne.s32.totalorder %s144, %s145
    %p159 = scmp.eq.s32.totalorder %s22, 1
    %p160 = por %p158, %p159
    %p162 = scmp.ne.s32.totalorder %s145, %s161
    %p163 = scmp.eq.s32.totalorder %s22, 0
    %p164 = por %p162, %p163
    %s165 = ssub.s32 %s16, %s23
    %p166 = scmp.eq.s32.totalorder %s165, 0
    %s168 = sadd.s32 %s167, 1
    %s169 = scalar_select %p166, %s167, %s168
    %p172 = pneg %p166
    %p173 = scmp.eq.s32.totalorder %s16, 1
    %p174 = por %p172, %p173
    %p175 = scmp.ne.s32.totalorder %s167, %s170
    %p176 = scmp.eq.s32.totalorder %s16, 0
    %p177 = por %p175, %p176
    %p178 = scmp.ne.s32.totalorder %s167, %s170
    %p179 = scmp.eq.s32.totalorder %s21, 1
    %p180 = por %p178, %p179
    %p181 = scmp.ne.s32.totalorder %s170, %s171
    %p182 = scmp.eq.s32.totalorder %s21, 0
    %p183 = por %p181, %p182
    %p184 = scmp.ne.s32.totalorder %s170, %s171
    %p185 = scmp.eq.s32.totalorder %s22, 1
    %p186 = por %p184, %p185
    %p188 = scmp.ne.s32.totalorder %s171, %s187
    %p189 = scmp.eq.s32.totalorder %s22, 0
    %p190 = por %p188, %p189
    %s191 = ssub.s32 %s16, %s23
    %p192 = scmp.eq.s32.totalorder %s191, 0
    %s194 = sadd.s32 %s193, 1
    %s195 = scalar_select %p192, %s193, %s194
    %p198 = pneg %p192
    %p199 = scmp.eq.s32.totalorder %s16, 1
    %p200 = por %p198, %p199
    %p201 = scmp.ne.s32.totalorder %s193, %s196
    %p202 = scmp.eq.s32.totalorder %s16, 0
    %p203 = por %p201, %p202
    %p204 = scmp.ne.s32.totalorder %s193, %s196
    %p205 = scmp.eq.s32.totalorder %s21, 1
    %p206 = por %p204, %p205
    %p207 = scmp.ne.s32.totalorder %s196, %s197
    %p208 = scmp.eq.s32.totalorder %s21, 0
    %p209 = por %p207, %p208
    %p210 = scmp.ne.s32.totalorder %s196, %s197
    %p211 = scmp.eq.s32.totalorder %s22, 1
    %p212 = por %p210, %p211
    %p214 = scmp.ne.s32.totalorder %s197, %s213
    %p215 = scmp.eq.s32.totalorder %s22, 0
    %p216 = por %p214, %p215
    %s217 = ssub.s32 %s16, %s23
    %p218 = scmp.eq.s32.totalorder %s217, 0
    %s220 = sadd.s32 %s219, 1
    %s221 = scalar_select %p218, %s219, %s220
    %p224 = pneg %p218
    %p225 = scmp.eq.s32.totalorder %s16, 1
    %p226 = por %p224, %p225
    %p227 = scmp.ne.s32.totalorder %s219, %s222
    %p228 = scmp.eq.s32.totalorder %s16, 0
    %p229 = por %p227, %p228
    %p230 = scmp.ne.s32.totalorder %s219, %s222
    %p231 = scmp.eq.s32.totalorder %s21, 1
    %p232 = por %p230, %p231
    %p233 = scmp.ne.s32.totalorder %s222, %s223
    %p234 = scmp.eq.s32.totalorder %s21, 0
    %p235 = por %p233, %p234
    %p236 = scmp.ne.s32.totalorder %s222, %s223
    %p237 = scmp.eq.s32.totalorder %s22, 1
    %p238 = por %p236, %p237
    %p240 = scmp.ne.s32.totalorder %s223, %s239
    %p241 = scmp.eq.s32.totalorder %s22, 0
    %p242 = por %p240, %p241
    %s243 = ssub.s32 %s16, %s23
    %p244 = scmp.eq.s32.totalorder %s243, 0
    %s246 = sadd.s32 %s245, 1
    %s247 = scalar_select %p244, %s245, %s246
    %p250 = pneg %p244
    %p251 = scmp.eq.s32.totalorder %s16, 1
    %p252 = por %p250, %p251
    %p253 = scmp.ne.s32.totalorder %s245, %s248
    %p254 = scmp.eq.s32.totalorder %s16, 0
    %p255 = por %p253, %p254
    %p256 = scmp.ne.s32.totalorder %s245, %s248
    %p257 = scmp.eq.s32.totalorder %s21, 1
    %p258 = por %p256, %p257
    %p259 = scmp.ne.s32.totalorder %s248, %s249
    %p260 = scmp.eq.s32.totalorder %s21, 0
    %p261 = por %p259, %p260
    %p262 = scmp.ne.s32.totalorder %s248, %s249
    %p263 = scmp.eq.s32.totalorder %s22, 1
    %p264 = por %p262, %p263
    %p266 = scmp.ne.s32.totalorder %s249, %s265
    %p267 = scmp.eq.s32.totalorder %s22, 0
    %p268 = por %p266, %p267
    %s269 = ssub.s32 %s16, %s23
    %p270 = scmp.eq.s32.totalorder %s269, 0
    %s272 = sadd.s32 %s271, 1
    %s273 = scalar_select %p270, %s271, %s272
    %p276 = pneg %p270
    %p277 = scmp.eq.s32.totalorder %s16, 1
    %p278 = por %p276, %p277
    %p279 = scmp.ne.s32.totalorder %s271, %s274
    %p280 = scmp.eq.s32.totalorder %s16, 0
    %p281 = por %p279, %p280
    %p282 = scmp.ne.s32.totalorder %s271, %s274
    %p283 = scmp.eq.s32.totalorder %s21, 1
    %p284 = por %p282, %p283
    %p285 = scmp.ne.s32.totalorder %s274, %s275
    %p286 = scmp.eq.s32.totalorder %s21, 0
    %p287 = por %p285, %p286
    %p288 = scmp.ne.s32.totalorder %s274, %s275
    %p289 = scmp.eq.s32.totalorder %s22, 1
    %p290 = por %p288, %p289
    %p292 = scmp.ne.s32.totalorder %s275, %s291
    %p293 = scmp.eq.s32.totalorder %s22, 0
    %p294 = por %p292, %p293
    %p295 = scmp.le.s32.totalorder 1, %s16
    %p296 = scmp.lt.s32.totalorder %s16, 3
    %p297 = pnand %p295, %p296
    %p298 = pneg %p297
    // Predicated region
    $region9: #{dc_bilstm_forward.6} parent=5 // pred_check
      _
    $region10: #{dc_bilstm_forward.6} parent=5 // pred_check_branch
      %300 = sbr.rel (%p297) target = $region12
    $region11: #{dc_bilstm_forward.6} parent=5 // pred_region
      %s301 = ssub.s32 %s16, 1
      // Predicated region
      $region13: #{dc_bilstm_forward.6} parent=11 // pred_check
        %p302 = pneg %p37
      $region14: #{dc_bilstm_forward.6} parent=11 // pred_check_branch
        %304 = sbr.rel (%p302) target = $region16
      $region15: #{dc_bilstm_forward.6} parent=11 // pred_region
        _
      $region16: #{dc_bilstm_forward.6} parent=11 // pred_fallthru
        _
      // Predicated region
      $region17: #{dc_bilstm_forward.6} parent=11 // pred_check
        %p305 = pneg %p58
      $region18: #{dc_bilstm_forward.6} parent=11 // pred_check_branch
        %307 = sbr.rel (%p305) target = $region20
      $region19: #{dc_bilstm_forward.6} parent=11 // pred_region
        _
      $region20: #{dc_bilstm_forward.6} parent=11 // pred_fallthru
        _
      // Predicated region
      $region21: #{dc_bilstm_forward.6} parent=11 // pred_check
        %p308 = pneg %p79
      $region22: #{dc_bilstm_forward.6} parent=11 // pred_check_branch
        %310 = sbr.rel (%p308) target = $region24
      $region23: #{dc_bilstm_forward.6} parent=11 // pred_region
        _
      $region24: #{dc_bilstm_forward.6} parent=11 // pred_fallthru
        _
    $region12: #{dc_bilstm_forward.6} parent=5 // pred_fallthru
      _
    %p311 = scmp.lt.s32.totalorder %s16, 2
    // Predicated region
    $region25: #{dc_bilstm_forward.6} parent=5 // pred_check
      %p312 = pneg %p311
    $region26: #{dc_bilstm_forward.6} parent=5 // pred_check_branch
      %314 = sbr.rel (%p312) target = $region28
    $region27: #{dc_bilstm_forward.6} parent=5 // pred_region
      // Predicated region
      $region29: #{dc_bilstm_forward.6} parent=27 // pred_check
        %p315 = pneg %p99
      $region30: #{dc_bilstm_forward.6} parent=27 // pred_check_branch
        %317 = sbr.rel (%p315) target = $region32
      $region31: #{dc_bilstm_forward.6} parent=27 // pred_region
        %p318 = scmp.lt.s32.totalorder %s16, 1
        %s319 = scalar_select %p318, %s16, 1
        %s320 = smul.addr %s319, 8
        %s321 = smul.addr %s320, 4
        %s322 = scalar_lea.vmem %s3, %s321
      $region32: #{dc_bilstm_forward.6} parent=27 // pred_fallthru
        _
      // Predicated region
      $region33: #{dc_bilstm_forward.6} parent=27 // pred_check
        %p323 = pneg %p125
      $region34: #{dc_bilstm_forward.6} parent=27 // pred_check_branch
        %325 = sbr.rel (%p323) target = $region36
      $region35: #{dc_bilstm_forward.6} parent=27 // pred_region
        %p326 = scmp.lt.s32.totalorder %s16, 1
        %s327 = scalar_select %p326, %s16, 1
        %s328 = smul.addr %s327, 8
        %s329 = smul.addr %s328, 4
        %s330 = scalar_lea.vmem %s4, %s329
      $region36: #{dc_bilstm_forward.6} parent=27 // pred_fallthru
        _
      // Predicated region
      $region37: #{dc_bilstm_forward.6} parent=27 // pred_check
        %p331 = pneg %p151
      $region38: #{dc_bilstm_forward.6} parent=27 // pred_check_branch
        %333 = sbr.rel (%p331) target = $region40
      $region39: #{dc_bilstm_forward.6} parent=27 // pred_region
        %p334 = scmp.lt.s32.totalorder %s16, 1
        %s335 = scalar_select %p334, %s16, 1
        %s336 = smul.addr %s335, 6
        %s337 = smul.addr %s336, 4
        %s338 = scalar_lea.vmem %s5, %s337
      $region40: #{dc_bilstm_forward.6} parent=27 // pred_fallthru
        _
      // Predicated region
      $region41: #{dc_bilstm_forward.6} parent=27 // pred_check
        %p339 = pneg %p177
      $region42: #{dc_bilstm_forward.6} parent=27 // pred_check_branch
        %341 = sbr.rel (%p339) target = $region44
      $region43: #{dc_bilstm_forward.6} parent=27 // pred_region
        %p342 = scmp.lt.s32.totalorder %s16, 1
        %s343 = scalar_select %p342, %s16, 1
        %s344 = smul.addr %s343, 4
        %s345 = smul.addr %s344, 4
        %s346 = scalar_lea.vmem %s6, %s345
      $region44: #{dc_bilstm_forward.6} parent=27 // pred_fallthru
        _
      // Predicated region
      $region45: #{dc_bilstm_forward.6} parent=27 // pred_check
        %p347 = pneg %p203
      $region46: #{dc_bilstm_forward.6} parent=27 // pred_check_branch
        %349 = sbr.rel (%p347) target = $region48
      $region47: #{dc_bilstm_forward.6} parent=27 // pred_region
        %p350 = scmp.lt.s32.totalorder %s16, 1
        %s351 = scalar_select %p350, %s16, 1
        %s352 = scalar_lea.vmem %s7, %s351
      $region48: #{dc_bilstm_forward.6} parent=27 // pred_fallthru
        _
      // Predicated region
      $region49: #{dc_bilstm_forward.6} parent=27 // pred_check
        %p353 = pneg %p229
      $region50: #{dc_bilstm_forward.6} parent=27 // pred_check_branch
        %355 = sbr.rel (%p353) target = $region52
      $region51: #{dc_bilstm_forward.6} parent=27 // pred_region
        %p356 = scmp.lt.s32.totalorder %s16, 1
        %s357 = scalar_select %p356, %s16, 1
        %s358 = smul.addr %s357, 2
        %s359 = scalar_lea.vmem %s8, %s358
      $region52: #{dc_bilstm_forward.6} parent=27 // pred_fallthru
        _
      // Predicated region
      $region53: #{dc_bilstm_forward.6} parent=27 // pred_check
        %p360 = pneg %p255
      $region54: #{dc_bilstm_forward.6} parent=27 // pred_check_branch
        %362 = sbr.rel (%p360) target = $region56
      $region55: #{dc_bilstm_forward.6} parent=27 // pred_region
        %p363 = scmp.lt.s32.totalorder %s16, 1
        %s364 = scalar_select %p363, %s16, 1
        %s365 = smul.addr %s364, 2
        %s366 = scalar_lea.vmem %s9, %s365
      $region56: #{dc_bilstm_forward.6} parent=27 // pred_fallthru
        _
    $region28: #{dc_bilstm_forward.6} parent=5 // pred_fallthru
      _
    %p367 = scmp.le.s32.totalorder 1, %s16
    %p368 = scmp.lt.s32.totalorder %s16, 3
    %p369 = pnand %p367, %p368
    %p370 = pneg %p369
    // Predicated region
    $region57: #{dc_bilstm_forward.6} parent=5 // pred_check
      _
    $region58: #{dc_bilstm_forward.6} parent=5 // pred_check_branch
      %372 = sbr.rel (%p369) target = $region60
    $region59: #{dc_bilstm_forward.6} parent=5 // pred_region
      %s373 = ssub.s32 %s16, 1
      %p374 = pneg %p37
      %p375 = pneg %p34
      %p376 = pneg %p58
      %p377 = pneg %p55
      %p378 = pneg %p79
      %p379 = pneg %p76
      %p380 = scmp.lt.s32.totalorder %s21, 1
      %s381 = scalar_select %p380, %s21, 1
      %s382 = smul.addr %s381, 8
      %s383 = smul.addr %s382, 4
      %s384 = scalar_lea.vmem %s3, %s383
      %p385 = pneg %p105
      %p386 = pneg %p102
      %p387 = scmp.lt.s32.totalorder %s21, 1
      %s388 = scalar_select %p387, %s21, 1
      %s389 = smul.addr %s388, 8
      %s390 = smul.addr %s389, 4
      %s391 = scalar_lea.vmem %s4, %s390
      %p392 = pneg %p131
      %p393 = pneg %p128
      %p394 = scmp.lt.s32.totalorder %s21, 1
      %s395 = scalar_select %p394, %s21, 1
      %s396 = smul.addr %s395, 6
      %s397 = smul.addr %s396, 4
      %s398 = scalar_lea.vmem %s5, %s397
      %p399 = pneg %p157
      %p400 = pneg %p154
      %p401 = scmp.lt.s32.totalorder %s21, 1
      %s402 = scalar_select %p401, %s21, 1
      %s403 = smul.addr %s402, 4
      %s404 = smul.addr %s403, 4
      %s405 = scalar_lea.vmem %s6, %s404
      %p406 = pneg %p183
      %p407 = pneg %p180
      %p408 = scmp.lt.s32.totalorder %s21, 1
      %s409 = scalar_select %p408, %s21, 1
      %s410 = scalar_lea.vmem %s7, %s409
      %p411 = pneg %p209
      %p412 = pneg %p206
      %p413 = scmp.lt.s32.totalorder %s21, 1
      %s414 = scalar_select %p413, %s21, 1
      %s415 = smul.addr %s414, 2
      %s416 = scalar_lea.vmem %s8, %s415
      %p417 = pneg %p235
      %p418 = pneg %p232
      %p419 = scmp.lt.s32.totalorder %s21, 1
      %s420 = scalar_select %p419, %s21, 1
      %s421 = smul.addr %s420, 2
      %s422 = scalar_lea.vmem %s9, %s421
      %p423 = pneg %p261
      %p424 = pneg %p258
      %p425 = pneg %p287
      %p426 = pneg %p284
      %p427 = scmp.lt.s32.totalorder %s21, 1
      %s428 = scalar_select %p427, %s21, 1
      %s429 = smul.addr %s428, 2
      %s430 = scalar_lea.vmem %s10, %s429
      %p431 = scmp.lt.s32.totalorder %s21, 1
      %s432 = scalar_select %p431, %s21, 1
      %s433 = smul.addr %s432, 8
      %s434 = smul.addr %s433, 4
      %s435 = scalar_lea.vmem %s3, %s434
      %p436 = scmp.lt.s32.totalorder %s21, 1
      %s437 = scalar_select %p436, %s21, 1
      %s438 = smul.addr %s437, 8
      %s439 = smul.addr %s438, 4
      %s440 = scalar_lea.vmem %s4, %s439
      %p441 = scmp.lt.s32.totalorder %s21, 1
      %s442 = scalar_select %p441, %s21, 1
      %s443 = smul.addr %s442, 6
      %s444 = smul.addr %s443, 4
      %s445 = scalar_lea.vmem %s5, %s444
      %p446 = scmp.lt.s32.totalorder %s21, 1
      %s447 = scalar_select %p446, %s21, 1
      %s448 = smul.addr %s447, 4
      %s449 = smul.addr %s448, 4
      %s450 = scalar_lea.vmem %s6, %s449
      %p451 = scmp.lt.s32.totalorder %s21, 1
      %s452 = scalar_select %p451, %s21, 1
      %s453 = scalar_lea.vmem %s7, %s452
      %p454 = scmp.lt.s32.totalorder %s21, 1
      %s455 = scalar_select %p454, %s21, 1
      %s456 = smul.addr %s455, 2
      %s457 = scalar_lea.vmem %s8, %s456
      %p458 = scmp.lt.s32.totalorder %s21, 1
      %s459 = scalar_select %p458, %s21, 1
      %s460 = smul.addr %s459, 2
      %s461 = scalar_lea.vmem %s9, %s460
      %p462 = scmp.lt.s32.totalorder %s21, 1
      %s463 = scalar_select %p462, %s21, 1
      %s464 = smul.addr %s463, 2
      %s465 = scalar_lea.vmem %s10, %s464
      %v467 = vld [vmem:[%s435] sm:$0xf]
      %v468 = vld [vmem:[%s435 + $0x4] sm:$0xf]
      %v469 = vld [vmem:[%s435 + $0x8] sm:$0xf]
      %v470 = vld [vmem:[%s435 + $0xc] sm:$0xf]
      %v471 = vld [vmem:[%s435 + $0x10] sm:$0xf]
      %v472 = vld [vmem:[%s435 + $0x14] sm:$0xf]
      %v473 = vld [vmem:[%s435 + $0x18] sm:$0xf]
      %v474 = vld [vmem:[%s435 + $0x1c] sm:$0xf]
      %v475 = vld [vmem:[%s0] sm:$0xff]
      %v476 = vld [vmem:[%s0 + $0x8] sm:$0xff]
      %v477 = vpack.c.bf16 %v476, %v475
      %s478 = scalar_lea.vmem %s0, 16
      %v479 = vld [vmem:[%s478] sm:$0xff]
      %v480 = vld [vmem:[%s478 + $0x8] sm:$0xff]
      %v481 = vpack.c.bf16 %v480, %v479
      %v486 = vunpack.c.l.b16 %v471
      %v487 = vunpack.c.l.b16 %v472
      %v488 = vunpack.c.l.b16 %v473
      %v489 = vunpack.c.l.b16 %v474
      %v490 = vpack.c.b16 %v487, %v486
      %v491 = vpack.c.b16 %v489, %v488
      %vm494 = vcmask 261120
      %v496 = vsel %vm494, %v481, 0
      %498 = vmatpush.bf16.msra.mxu0 0
      %499 = vmatpush.bf16.msra.mxu0 0
      %500 = vmatpush.bf16.msra.mxu0 0
      %501 = vmatpush.bf16.msra.mxu0 0
      %502 = vmatpush.bf16.msra.mxu0 0
      %503 = vmatpush.bf16.msra.mxu0 0
      %504 = vmatpush.bf16.msra.mxu0 %v491
      %505 = vmatpush.bf16.msra.mxu0 %v490
      %506 = vmatmul.bf16.gmra.mxu0 %v496
      %v507 = vpop.f32.mrf.mxu0
      %v508 = vadd.f32 0.0, %v507
      %v509 = vpop.f32.mrf.mxu0
      %v510 = vadd.f32 0.0, %v509
      %511 = vdwg.mxu0
      %v516 = vunpack.c.l.b16 %v467
      %v517 = vunpack.c.l.b16 %v468
      %v518 = vunpack.c.l.b16 %v469
      %v519 = vunpack.c.l.b16 %v470
      %v520 = vpack.c.b16 %v517, %v516
      %v521 = vpack.c.b16 %v519, %v518
      %v525 = vsel %vm494, %v477, 0
      %527 = vmatpush.bf16.msra.mxu0 0
      %528 = vmatpush.bf16.msra.mxu0 0
      %529 = vmatpush.bf16.msra.mxu0 0
      %530 = vmatpush.bf16.msra.mxu0 0
      %531 = vmatpush.bf16.msra.mxu0 0
      %532 = vmatpush.bf16.msra.mxu0 0
      %533 = vmatpush.bf16.msra.mxu0 %v521
      %534 = vmatpush.bf16.msra.mxu0 %v520
      %535 = vmatmul.bf16.gmra.mxu0 %v525
      %v536 = vpop.f32.mrf.mxu0
      %v537 = vadd.f32 %v508, %v536
      %v538 = vpop.f32.mrf.mxu0
      %v539 = vadd.f32 %v510, %v538
      %540 = vdwg.mxu0
      %v541 = vld [vmem:[%s440] sm:$0xf]
      %v542 = vld [vmem:[%s440 + $0x4] sm:$0xf]
      %v543 = vld [vmem:[%s440 + $0x8] sm:$0xf]
      %v544 = vld [vmem:[%s440 + $0xc] sm:$0xf]
      %v545 = vld [vmem:[%s440 + $0x10] sm:$0xf]
      %v546 = vld [vmem:[%s440 + $0x14] sm:$0xf]
      %v547 = vld [vmem:[%s440 + $0x18] sm:$0xf]
      %v548 = vld [vmem:[%s440 + $0x1c] sm:$0xf]
      %v549 = vld [vmem:[%s1] sm:$0xff]
      %v550 = vld [vmem:[%s1 + $0x8] sm:$0xff]
      %v551 = vpack.c.bf16 %v550, %v549
      %v556 = vunpack.c.l.b16 %v541
      %v557 = vunpack.c.l.b16 %v542
      %v558 = vunpack.c.l.b16 %v543
      %v559 = vunpack.c.l.b16 %v544
      %v560 = vpack.c.b16 %v557, %v556
      %v561 = vpack.c.b16 %v559, %v558
      %v565 = vsel %vm494, %v551, 0
      %567 = vmatpush.bf16.msra.mxu0 0
      %568 = vmatpush.bf16.msra.mxu0 0
      %569 = vmatpush.bf16.msra.mxu0 0
      %570 = vmatpush.bf16.msra.mxu0 0
      %571 = vmatpush.bf16.msra.mxu0 0
      %572 = vmatpush.bf16.msra.mxu0 0
      %573 = vmatpush.bf16.msra.mxu0 %v561
      %574 = vmatpush.bf16.msra.mxu0 %v560
      %575 = vmatmul.bf16.gmra.mxu0 %v565
      %v576 = vpop.f32.mrf.mxu0
      %v577 = vadd.f32 0.0, %v576
      %v578 = vpop.f32.mrf.mxu0
      %v579 = vadd.f32 0.0, %v578
      %580 = vdwg.mxu0
      %v581 = vadd.f32 %v537, %v577
      %v582 = vadd.f32 %v539, %v579
      %s583 = scalar_lea.vmem %s1, 16
      %v584 = vld [vmem:[%s583] sm:$0xff]
      %v585 = vld [vmem:[%s583 + $0x8] sm:$0xff]
      %v586 = vpack.c.bf16 %v585, %v584
      %v591 = vunpack.c.l.b16 %v545
      %v592 = vunpack.c.l.b16 %v546
      %v593 = vunpack.c.l.b16 %v547
      %v594 = vunpack.c.l.b16 %v548
      %v595 = vpack.c.b16 %v592, %v591
      %v596 = vpack.c.b16 %v594, %v593
      %v600 = vsel %vm494, %v586, 0
      %602 = vmatpush.bf16.msra.mxu0 0
      %603 = vmatpush.bf16.msra.mxu0 0
      %604 = vmatpush.bf16.msra.mxu0 0
      %605 = vmatpush.bf16.msra.mxu0 0
      %606 = vmatpush.bf16.msra.mxu0 0
      %607 = vmatpush.bf16.msra.mxu0 0
      %608 = vmatpush.bf16.msra.mxu0 %v596
      %609 = vmatpush.bf16.msra.mxu0 %v595
      %610 = vmatmul.bf16.gmra.mxu0 %v600
      %v611 = vpop.f32.mrf.mxu0
      %v612 = vadd.f32 0.0, %v611
      %v613 = vpop.f32.mrf.mxu0
      %v614 = vadd.f32 0.0, %v613
      %615 = vdwg.mxu0
      %v616 = vadd.f32 %v581, %v612
      %v617 = vadd.f32 %v582, %v614
      %v618 = vld [vmem:[%s445] sm:$0xf]
      %v619 = vld [vmem:[%s445 + $0x4] sm:$0xf]
      %v620 = vld [vmem:[%s445 + $0x8] sm:$0xf]
      %v621 = vld [vmem:[%s445 + $0xc] sm:$0xf]
      %v622 = vld [vmem:[%s445 + $0x10] sm:$0xf]
      %v623 = vld [vmem:[%s445 + $0x14] sm:$0xf]
      %v624 = vld [vmem:[%s2] sm:$0xff]
      %v625 = vld [vmem:[%s2 + $0x8] sm:$0xff]
      %v626 = vpack.c.bf16 %v625, %v624
      %v633 = vunpack.c.l.b16 %v618
      %v634 = vunpack.c.l.b16 %v619
      %v635 = vunpack.c.l.b16 %v620
      %v636 = vunpack.c.l.b16 %v621
      %v637 = vunpack.c.l.b16 %v622
      %v638 = vunpack.c.l.b16 %v623
      %v639 = vpack.c.b16 %v634, %v633
      %v640 = vpack.c.b16 %v636, %v635
      %v641 = vpack.c.b16 %v638, %v637
      %vm645 = vcmask 392192
      %v647 = vsel %vm645, %v626, 0
      %649 = vmatpush.bf16.msra.mxu0 0
      %650 = vmatpush.bf16.msra.mxu0 0
      %651 = vmatpush.bf16.msra.mxu0 0
      %652 = vmatpush.bf16.msra.mxu0 0
      %653 = vmatpush.bf16.msra.mxu0 0
      %654 = vmatpush.bf16.msra.mxu0 %v641
      %655 = vmatpush.bf16.msra.mxu0 %v640
      %656 = vmatpush.bf16.msra.mxu0 %v639
      %657 = vmatmul.bf16.gmra.mxu0 %v647
      %v658 = vpop.f32.mrf.mxu0
      %v659 = vadd.f32 0.0, %v658
      %v660 = vpop.f32.mrf.mxu0
      %v661 = vadd.f32 0.0, %v660
      %662 = vdwg.mxu0
      %v663 = vadd.f32 %v616, %v659
      %v664 = vadd.f32 %v617, %v661
      %v665 = vld [vmem:[%s453] sm:$0x1]
      %v667 = vperm.slane %v665, 0
      %v669 = vadd.f32 %v663, %v667
      %v670 = vadd.f32 %v664, %v667
      %671 = vst [vmem:[#allocation2] sm:$0x3] %v669
      %s672 = scalar_lea.vmem [#allocation2], 2
      %673 = vst [vmem:[%s672 - $0x2] sm:$0xc] %v669
      %s674 = scalar_lea.vmem [#allocation2], 4
      %675 = vst [vmem:[%s674 - $0x4] sm:$0x30] %v669
      %s676 = scalar_lea.vmem [#allocation2], 6
      %677 = vst [vmem:[%s676 - $0x6] sm:$0xc0] %v669
      %s678 = scalar_lea.vmem [#allocation2], 8
      %679 = vst [vmem:[%s678] sm:$0x3] %v670
      %s680 = scalar_lea.vmem [#allocation2], 10
      %681 = vst [vmem:[%s680 - $0x2] sm:$0xc] %v670
      %s682 = scalar_lea.vmem [#allocation2], 12
      %683 = vst [vmem:[%s682 - $0x4] sm:$0x30] %v670
      %s684 = scalar_lea.vmem [#allocation2], 14
      %685 = vst [vmem:[%s684 - $0x6] sm:$0xc0] %v670
      %v686 = vld [vmem:[%s450] sm:$0xf]
      %v687 = vld [vmem:[%s450 + $0x4] sm:$0xf]
      %v688 = vld [vmem:[%s450 + $0x8] sm:$0xf]
      %v689 = vld [vmem:[%s450 + $0xc] sm:$0xf]
      %v690 = vld [vmem:[%s457] sm:$0x3]
      %v691 = vld [vmem:[%s461] sm:$0x3]
      %s692 = smul.u32 %s21, 7
      %s693 = smul.u32 %s692, 2
      %s694 = scalar_lea.vmem [#allocation2], %s693
      %v695 = vld [vmem:[%s694] sm:$0x3]
      %v696 = vpack.c.bf16 %v690, %v690
      %v701 = vunpack.c.l.b16 %v686
      %v702 = vunpack.c.l.b16 %v687
      %v703 = vunpack.c.l.b16 %v688
      %v704 = vunpack.c.l.b16 %v689
      %v705 = vpack.c.b16 %v702, %v701
      %v706 = vpack.c.b16 %v704, %v703
      %v710 = vsel %vm494, %v696, 0
      %712 = vmatpush.bf16.msra.mxu0 0
      %713 = vmatpush.bf16.msra.mxu0 0
      %714 = vmatpush.bf16.msra.mxu0 0
      %715 = vmatpush.bf16.msra.mxu0 0
      %716 = vmatpush.bf16.msra.mxu0 0
      %717 = vmatpush.bf16.msra.mxu0 0
      %718 = vmatpush.bf16.msra.mxu0 %v706
      %719 = vmatpush.bf16.msra.mxu0 %v705
      %720 = vmatmul.bf16.gmra.mxu0 %v710
      %v721 = vpop.f32.mrf.mxu0
      %v722 = vadd.f32 0.0, %v721
      %v723 = vpop.f32.mrf.mxu0
      %724 = vdwg.mxu0
      %v725 = vadd.f32 %v695, %v722
      %v726 = vxor.u32 %v725, 2147483648
      %v727 = vmul.f32 %v726, 1.442695
      %v728 = vpow.pop %v727
      %v729 = vadd.f32 %v728, 1.0
      %v730 = vrcp.pop %v729
      %v731 = vmul.f32 %v729, %v730
      %v732 = vsub.f32 1.0, %v731
      %v733 = vmul.f32 %v730, %v732
      %v734 = vadd.f32 %v730, %v733
      %vm735 = vweird.f32 %v729
      %vm736 = vweird.f32 %v730
      %vm737 = vmor %vm735, %vm736
      %v738 = vsel %vm737, %v730, %v734
      %v739 = vand.u32 2147483647, %v729
      %vm740 = vcmp.eq.f32.partialorder %v739, 8.507059e+37
      %v741 = vand.u32 %v729, 2147483648
      %v742 = vor.u32 1.1754944e-38, %v741
      %v743 = vsel %vm740, %v742, %v738
      %v744 = vmul.f32 1.0, %v743
      %v745 = vtanh.pop %v725
      %747 = vrot.lane.b32.xlu0 %v691, 32
      %v748 = vpop.permute.xlu0 %747
      %v750 = vmul.f32 %v744, %v748
      %752 = vrot.lane.b32.xlu0 %v745, 64
      %v753 = vpop.permute.xlu0 %752
      %v755 = vmul.f32 %v744, %v753
      %757 = vrot.lane.b32.xlu0 %v755, 32
      %v758 = vpop.permute.xlu0 %757
      %v760 = vadd.f32 %v750, %v758
      %v761 = vtanh.pop %v760
      %763 = vrot.lane.b32.xlu0 %v761, 64
      %v764 = vpop.permute.xlu0 %763
      %v766 = vmul.f32 %v744, %v764
      %v767 = vadd.f32 %v766, 0.0
      %s768 = smul.u32 %s21, 5
      %s769 = sadd.s32 %s768, 1
      %s770 = smul.u32 %s769, 2
      %s771 = scalar_lea.vmem [#allocation2], %s770
      %v772 = vld [vmem:[%s771] sm:$0x3]
      %v773 = vpack.c.bf16 %v766, %v766
      %775 = vrot.lane.b32.xlu0 %v773, 32
      %v776 = vpop.permute.xlu0 %775
      %v778 = vsel %vm494, %v776, 0
      %780 = vmatpush.bf16.msra.mxu0 0
      %781 = vmatpush.bf16.msra.mxu0 0
      %782 = vmatpush.bf16.msra.mxu0 0
      %783 = vmatpush.bf16.msra.mxu0 0
      %784 = vmatpush.bf16.msra.mxu0 0
      %785 = vmatpush.bf16.msra.mxu0 0
      %786 = vmatpush.bf16.msra.mxu0 %v706
      %787 = vmatpush.bf16.msra.mxu0 %v705
      %788 = vmatmul.bf16.gmra.mxu0 %v778
      %v789 = vpop.f32.mrf.mxu0
      %v790 = vadd.f32 0.0, %v789
      %v791 = vpop.f32.mrf.mxu0
      %792 = vdwg.mxu0
      %v793 = vadd.f32 %v772, %v790
      %v794 = vxor.u32 %v793, 2147483648
      %v795 = vmul.f32 %v794, 1.442695
      %v796 = vpow.pop %v795
      %v797 = vadd.f32 %v796, 1.0
      %v798 = vrcp.pop %v797
      %v799 = vmul.f32 %v797, %v798
      %v800 = vsub.f32 1.0, %v799
      %v801 = vmul.f32 %v798, %v800
      %v802 = vadd.f32 %v798, %v801
      %vm803 = vweird.f32 %v797
      %vm804 = vweird.f32 %v798
      %vm805 = vmor %vm803, %vm804
      %v806 = vsel %vm805, %v798, %v802
      %v807 = vand.u32 2147483647, %v797
      %vm808 = vcmp.eq.f32.partialorder %v807, 8.507059e+37
      %v809 = vand.u32 %v797, 2147483648
      %v810 = vor.u32 1.1754944e-38, %v809
      %v811 = vsel %vm808, %v810, %v806
      %v812 = vmul.f32 1.0, %v811
      %v813 = vtanh.pop %v793
      %v814 = vmul.f32 %v812, %v760
      %816 = vrot.lane.b32.xlu0 %v813, 64
      %v817 = vpop.permute.xlu0 %816
      %v819 = vmul.f32 %v812, %v817
      %821 = vrot.lane.b32.xlu0 %v819, 32
      %v822 = vpop.permute.xlu0 %821
      %v824 = vadd.f32 %v814, %v822
      %v825 = vtanh.pop %v824
      %827 = vrot.lane.b32.xlu0 %v825, 64
      %v828 = vpop.permute.xlu0 %827
      %v830 = vmul.f32 %v812, %v828
      %v831 = vadd.f32 %v767, %v830
      %s832 = smul.u32 %s21, 3
      %s833 = sadd.s32 %s832, 2
      %s834 = smul.u32 %s833, 2
      %s835 = scalar_lea.vmem [#allocation2], %s834
      %v836 = vld [vmem:[%s835] sm:$0x3]
      %v837 = vpack.c.bf16 %v830, %v830
      %839 = vrot.lane.b32.xlu0 %v837, 32
      %v840 = vpop.permute.xlu0 %839
      %v842 = vsel %vm494, %v840, 0
      %844 = vmatpush.bf16.msra.mxu0 0
      %845 = vmatpush.bf16.msra.mxu0 0
      %846 = vmatpush.bf16.msra.mxu0 0
      %847 = vmatpush.bf16.msra.mxu0 0
      %848 = vmatpush.bf16.msra.mxu0 0
      %849 = vmatpush.bf16.msra.mxu0 0
      %850 = vmatpush.bf16.msra.mxu0 %v706
      %851 = vmatpush.bf16.msra.mxu0 %v705
      %852 = vmatmul.bf16.gmra.mxu0 %v842
      %v853 = vpop.f32.mrf.mxu0
      %v854 = vadd.f32 0.0, %v853
      %v855 = vpop.f32.mrf.mxu0
      %856 = vdwg.mxu0
      %v857 = vadd.f32 %v836, %v854
      %v858 = vxor.u32 %v857, 2147483648
      %v859 = vmul.f32 %v858, 1.442695
      %v860 = vpow.pop %v859
      %v861 = vadd.f32 %v860, 1.0
      %v862 = vrcp.pop %v861
      %v863 = vmul.f32 %v861, %v862
      %v864 = vsub.f32 1.0, %v863
      %v865 = vmul.f32 %v862, %v864
      %v866 = vadd.f32 %v862, %v865
      %vm867 = vweird.f32 %v861
      %vm868 = vweird.f32 %v862
      %vm869 = vmor %vm867, %vm868
      %v870 = vsel %vm869, %v862, %v866
      %v871 = vand.u32 2147483647, %v861
      %vm872 = vcmp.eq.f32.partialorder %v871, 8.507059e+37
      %v873 = vand.u32 %v861, 2147483648
      %v874 = vor.u32 1.1754944e-38, %v873
      %v875 = vsel %vm872, %v874, %v870
      %v876 = vmul.f32 1.0, %v875
      %v877 = vtanh.pop %v857
      %v878 = vmul.f32 %v876, %v824
      %880 = vrot.lane.b32.xlu0 %v877, 64
      %v881 = vpop.permute.xlu0 %880
      %v883 = vmul.f32 %v876, %v881
      %885 = vrot.lane.b32.xlu0 %v883, 32
      %v886 = vpop.permute.xlu0 %885
      %v888 = vadd.f32 %v878, %v886
      %v889 = vtanh.pop %v888
      %891 = vrot.lane.b32.xlu0 %v889, 64
      %v892 = vpop.permute.xlu0 %891
      %v894 = vmul.f32 %v876, %v892
      %v895 = vadd.f32 %v831, %v894
      %s896 = sadd.s32 %s21, 3
      %s897 = smul.u32 %s896, 2
      %s898 = scalar_lea.vmem [#allocation2], %s897
      %v899 = vld [vmem:[%s898] sm:$0x3]
      %v900 = vpack.c.bf16 %v894, %v894
      %902 = vrot.lane.b32.xlu0 %v900, 32
      %v903 = vpop.permute.xlu0 %902
      %v905 = vsel %vm494, %v903, 0
      %907 = vmatpush.bf16.msra.mxu0 0
      %908 = vmatpush.bf16.msra.mxu0 0
      %909 = vmatpush.bf16.msra.mxu0 0
      %910 = vmatpush.bf16.msra.mxu0 0
      %911 = vmatpush.bf16.msra.mxu0 0
      %912 = vmatpush.bf16.msra.mxu0 0
      %913 = vmatpush.bf16.msra.mxu0 %v706
      %914 = vmatpush.bf16.msra.mxu0 %v705
      %915 = vmatmul.bf16.gmra.mxu0 %v905
      %v916 = vpop.f32.mrf.mxu0
      %v917 = vadd.f32 0.0, %v916
      %v918 = vpop.f32.mrf.mxu0
      %919 = vdwg.mxu0
      %v920 = vadd.f32 %v899, %v917
      %v921 = vxor.u32 %v920, 2147483648
      %v922 = vmul.f32 %v921, 1.442695
      %v923 = vpow.pop %v922
      %v924 = vadd.f32 %v923, 1.0
      %v925 = vrcp.pop %v924
      %v926 = vmul.f32 %v924, %v925
      %v927 = vsub.f32 1.0, %v926
      %v928 = vmul.f32 %v925, %v927
      %v929 = vadd.f32 %v925, %v928
      %vm930 = vweird.f32 %v924
      %vm931 = vweird.f32 %v925
      %vm932 = vmor %vm930, %vm931
      %v933 = vsel %vm932, %v925, %v929
      %v934 = vand.u32 2147483647, %v924
      %vm935 = vcmp.eq.f32.partialorder %v934, 8.507059e+37
      %v936 = vand.u32 %v924, 2147483648
      %v937 = vor.u32 1.1754944e-38, %v936
      %v938 = vsel %vm935, %v937, %v933
      %v939 = vmul.f32 1.0, %v938
      %v940 = vtanh.pop %v920
      %v941 = vmul.f32 %v939, %v888
      %943 = vrot.lane.b32.xlu0 %v940, 64
      %v944 = vpop.permute.xlu0 %943
      %v946 = vmul.f32 %v939, %v944
      %948 = vrot.lane.b32.xlu0 %v946, 32
      %v949 = vpop.permute.xlu0 %948
      %v951 = vadd.f32 %v941, %v949
      %v952 = vtanh.pop %v951
      %954 = vrot.lane.b32.xlu0 %v952, 64
      %v955 = vpop.permute.xlu0 %954
      %v957 = vmul.f32 %v939, %v955
      %v958 = vadd.f32 %v895, %v957
      %s959 = ssub.s32 4, %s21
      %s960 = smul.u32 %s959, 2
      %s961 = scalar_lea.vmem [#allocation2], %s960
      %v962 = vld [vmem:[%s961] sm:$0x3]
      %v963 = vpack.c.bf16 %v957, %v957
      %965 = vrot.lane.b32.xlu0 %v963, 32
      %v966 = vpop.permute.xlu0 %965
      %v968 = vsel %vm494, %v966, 0
      %970 = vmatpush.bf16.msra.mxu0 0
      %971 = vmatpush.bf16.msra.mxu0 0
      %972 = vmatpush.bf16.msra.mxu0 0
      %973 = vmatpush.bf16.msra.mxu0 0
      %974 = vmatpush.bf16.msra.mxu0 0
      %975 = vmatpush.bf16.msra.mxu0 0
      %976 = vmatpush.bf16.msra.mxu0 %v706
      %977 = vmatpush.bf16.msra.mxu0 %v705
      %978 = vmatmul.bf16.gmra.mxu0 %v968
      %v979 = vpop.f32.mrf.mxu0
      %v980 = vadd.f32 0.0, %v979
      %v981 = vpop.f32.mrf.mxu0
      %982 = vdwg.mxu0
      %v983 = vadd.f32 %v962, %v980
      %v984 = vxor.u32 %v983, 2147483648
      %v985 = vmul.f32 %v984, 1.442695
      %v986 = vpow.pop %v985
      %v987 = vadd.f32 %v986, 1.0
      %v988 = vrcp.pop %v987
      %v989 = vmul.f32 %v987, %v988
      %v990 = vsub.f32 1.0, %v989
      %v991 = vmul.f32 %v988, %v990
      %v992 = vadd.f32 %v988, %v991
      %vm993 = vweird.f32 %v987
      %vm994 = vweird.f32 %v988
      %vm995 = vmor %vm993, %vm994
      %v996 = vsel %vm995, %v988, %v992
      %v997 = vand.u32 2147483647, %v987
      %vm998 = vcmp.eq.f32.partialorder %v997, 8.507059e+37
      %v999 = vand.u32 %v987, 2147483648
      %v1000 = vor.u32 1.1754944e-38, %v999
      %v1001 = vsel %vm998, %v1000, %v996
      %v1002 = vmul.f32 1.0, %v1001
      %v1003 = vtanh.pop %v983
      %v1004 = vmul.f32 %v1002, %v951
      %1006 = vrot.lane.b32.xlu0 %v1003, 64
      %v1007 = vpop.permute.xlu0 %1006
      %v1009 = vmul.f32 %v1002, %v1007
      %1011 = vrot.lane.b32.xlu0 %v1009, 32
      %v1012 = vpop.permute.xlu0 %1011
      %v1014 = vadd.f32 %v1004, %v1012
      %v1015 = vtanh.pop %v1014
      %1017 = vrot.lane.b32.xlu0 %v1015, 64
      %v1018 = vpop.permute.xlu0 %1017
      %v1020 = vmul.f32 %v1002, %v1018
      %v1021 = vadd.f32 %v958, %v1020
      %s1022 = smul.u32 %s21, 4294967293
      %s1023 = sadd.s32 %s1022, 5
      %s1024 = smul.u32 %s1023, 2
      %s1025 = scalar_lea.vmem [#allocation2], %s1024
      %v1026 = vld [vmem:[%s1025] sm:$0x3]
      %v1027 = vpack.c.bf16 %v1020, %v1020
      %1029 = vrot.lane.b32.xlu0 %v1027, 32
      %v1030 = vpop.permute.xlu0 %1029
      %v1032 = vsel %vm494, %v1030, 0
      %1034 = vmatpush.bf16.msra.mxu0 0
      %1035 = vmatpush.bf16.msra.mxu0 0
      %1036 = vmatpush.bf16.msra.mxu0 0
      %1037 = vmatpush.bf16.msra.mxu0 0
      %1038 = vmatpush.bf16.msra.mxu0 0
      %1039 = vmatpush.bf16.msra.mxu0 0
      %1040 = vmatpush.bf16.msra.mxu0 %v706
      %1041 = vmatpush.bf16.msra.mxu0 %v705
      %1042 = vmatmul.bf16.gmra.mxu0 %v1032
      %v1043 = vpop.f32.mrf.mxu0
      %v1044 = vadd.f32 0.0, %v1043
      %v1045 = vpop.f32.mrf.mxu0
      %1046 = vdwg.mxu0
      %v1047 = vadd.f32 %v1026, %v1044
      %v1048 = vxor.u32 %v1047, 2147483648
      %v1049 = vmul.f32 %v1048, 1.442695
      %v1050 = vpow.pop %v1049
      %v1051 = vadd.f32 %v1050, 1.0
      %v1052 = vrcp.pop %v1051
      %v1053 = vmul.f32 %v1051, %v1052
      %v1054 = vsub.f32 1.0, %v1053
      %v1055 = vmul.f32 %v1052, %v1054
      %v1056 = vadd.f32 %v1052, %v1055
      %vm1057 = vweird.f32 %v1051
      %vm1058 = vweird.f32 %v1052
      %vm1059 = vmor %vm1057, %vm1058
      %v1060 = vsel %vm1059, %v1052, %v1056
      %v1061 = vand.u32 2147483647, %v1051
      %vm1062 = vcmp.eq.f32.partialorder %v1061, 8.507059e+37
      %v1063 = vand.u32 %v1051, 2147483648
      %v1064 = vor.u32 1.1754944e-38, %v1063
      %v1065 = vsel %vm1062, %v1064, %v1060
      %v1066 = vmul.f32 1.0, %v1065
      %v1067 = vtanh.pop %v1047
      %v1068 = vmul.f32 %v1066, %v1014
      %1070 = vrot.lane.b32.xlu0 %v1067, 64
      %v1071 = vpop.permute.xlu0 %1070
      %v1073 = vmul.f32 %v1066, %v1071
      %1075 = vrot.lane.b32.xlu0 %v1073, 32
      %v1076 = vpop.permute.xlu0 %1075
      %v1078 = vadd.f32 %v1068, %v1076
      %v1079 = vtanh.pop %v1078
      %1081 = vrot.lane.b32.xlu0 %v1079, 64
      %v1082 = vpop.permute.xlu0 %1081
      %v1084 = vmul.f32 %v1066, %v1082
      %v1085 = vadd.f32 %v1021, %v1084
      %s1086 = smul.u32 %s21, 4294967291
      %s1087 = sadd.s32 %s1086, 6
      %s1088 = smul.u32 %s1087, 2
      %s1089 = scalar_lea.vmem [#allocation2], %s1088
      %v1090 = vld [vmem:[%s1089] sm:$0x3]
      %v1091 = vpack.c.bf16 %v1084, %v1084
      %1093 = vrot.lane.b32.xlu0 %v1091, 32
      %v1094 = vpop.permute.xlu0 %1093
      %v1096 = vsel %vm494, %v1094, 0
      %1098 = vmatpush.bf16.msra.mxu0 0
      %1099 = vmatpush.bf16.msra.mxu0 0
      %1100 = vmatpush.bf16.msra.mxu0 0
      %1101 = vmatpush.bf16.msra.mxu0 0
      %1102 = vmatpush.bf16.msra.mxu0 0
      %1103 = vmatpush.bf16.msra.mxu0 0
      %1104 = vmatpush.bf16.msra.mxu0 %v706
      %1105 = vmatpush.bf16.msra.mxu0 %v705
      %1106 = vmatmul.bf16.gmra.mxu0 %v1096
      %v1107 = vpop.f32.mrf.mxu0
      %v1108 = vadd.f32 0.0, %v1107
      %v1109 = vpop.f32.mrf.mxu0
      %1110 = vdwg.mxu0
      %v1111 = vadd.f32 %v1090, %v1108
      %v1112 = vxor.u32 %v1111, 2147483648
      %v1113 = vmul.f32 %v1112, 1.442695
      %v1114 = vpow.pop %v1113
      %v1115 = vadd.f32 %v1114, 1.0
      %v1116 = vrcp.pop %v1115
      %v1117 = vmul.f32 %v1115, %v1116
      %v1118 = vsub.f32 1.0, %v1117
      %v1119 = vmul.f32 %v1116, %v1118
      %v1120 = vadd.f32 %v1116, %v1119
      %vm1121 = vweird.f32 %v1115
      %vm1122 = vweird.f32 %v1116
      %vm1123 = vmor %vm1121, %vm1122
      %v1124 = vsel %vm1123, %v1116, %v1120
      %v1125 = vand.u32 2147483647, %v1115
      %vm1126 = vcmp.eq.f32.partialorder %v1125, 8.507059e+37
      %v1127 = vand.u32 %v1115, 2147483648
      %v1128 = vor.u32 1.1754944e-38, %v1127
      %v1129 = vsel %vm1126, %v1128, %v1124
      %v1130 = vmul.f32 1.0, %v1129
      %v1131 = vtanh.pop %v1111
      %v1132 = vmul.f32 %v1130, %v1078
      %1134 = vrot.lane.b32.xlu0 %v1131, 64
      %v1135 = vpop.permute.xlu0 %1134
      %v1137 = vmul.f32 %v1130, %v1135
      %1139 = vrot.lane.b32.xlu0 %v1137, 32
      %v1140 = vpop.permute.xlu0 %1139
      %v1142 = vadd.f32 %v1132, %v1140
      %v1143 = vtanh.pop %v1142
      %1145 = vrot.lane.b32.xlu0 %v1143, 64
      %v1146 = vpop.permute.xlu0 %1145
      %v1148 = vmul.f32 %v1130, %v1146
      %v1149 = vadd.f32 %v1085, %v1148
      %s1150 = smul.u32 %s21, 4294967289
      %s1151 = sadd.s32 %s1150, 7
      %s1152 = smul.u32 %s1151, 2
      %s1153 = scalar_lea.vmem [#allocation2], %s1152
      %v1154 = vld [vmem:[%s1153] sm:$0x3]
      %v1155 = vpack.c.bf16 %v1148, %v1148
      %1157 = vrot.lane.b32.xlu0 %v1155, 32
      %v1158 = vpop.permute.xlu0 %1157
      %v1160 = vsel %vm494, %v1158, 0
      %1162 = vmatpush.bf16.msra.mxu0 0
      %1163 = vmatpush.bf16.msra.mxu0 0
      %1164 = vmatpush.bf16.msra.mxu0 0
      %1165 = vmatpush.bf16.msra.mxu0 0
      %1166 = vmatpush.bf16.msra.mxu0 0
      %1167 = vmatpush.bf16.msra.mxu0 0
      %1168 = vmatpush.bf16.msra.mxu0 %v706
      %1169 = vmatpush.bf16.msra.mxu0 %v705
      %1170 = vmatmul.bf16.gmra.mxu0 %v1160
      %v1171 = vpop.f32.mrf.mxu0
      %v1172 = vadd.f32 0.0, %v1171
      %v1173 = vpop.f32.mrf.mxu0
      %1174 = vdwg.mxu0
      %v1175 = vadd.f32 %v1154, %v1172
      %v1176 = vxor.u32 %v1175, 2147483648
      %v1177 = vmul.f32 %v1176, 1.442695
      %v1178 = vpow.pop %v1177
      %v1179 = vadd.f32 %v1178, 1.0
      %v1180 = vrcp.pop %v1179
      %v1181 = vmul.f32 %v1179, %v1180
      %v1182 = vsub.f32 1.0, %v1181
      %v1183 = vmul.f32 %v1180, %v1182
      %v1184 = vadd.f32 %v1180, %v1183
      %vm1185 = vweird.f32 %v1179
      %vm1186 = vweird.f32 %v1180
      %vm1187 = vmor %vm1185, %vm1186
      %v1188 = vsel %vm1187, %v1180, %v1184
      %v1189 = vand.u32 2147483647, %v1179
      %vm1190 = vcmp.eq.f32.partialorder %v1189, 8.507059e+37
      %v1191 = vand.u32 %v1179, 2147483648
      %v1192 = vor.u32 1.1754944e-38, %v1191
      %v1193 = vsel %vm1190, %v1192, %v1188
      %v1194 = vmul.f32 1.0, %v1193
      %v1195 = vtanh.pop %v1175
      %v1196 = vmul.f32 %v1194, %v1142
      %1198 = vrot.lane.b32.xlu0 %v1195, 64
      %v1199 = vpop.permute.xlu0 %1198
      %v1201 = vmul.f32 %v1194, %v1199
      %1203 = vrot.lane.b32.xlu0 %v1201, 32
      %v1204 = vpop.permute.xlu0 %1203
      %v1206 = vadd.f32 %v1196, %v1204
      %v1207 = vtanh.pop %v1206
      %1209 = vrot.lane.b32.xlu0 %v1207, 64
      %v1210 = vpop.permute.xlu0 %1209
      %v1212 = vmul.f32 %v1194, %v1210
      %v1213 = vadd.f32 %v1149, %v1212
      %v1214 = vmul.f32 %v1213, 0.125
      %1216 = vrot.lane.b32.xlu0 %v1214, 32
      %v1217 = vpop.permute.xlu0 %1216
      %vm1219 = vcmask 254976
      %1220 = vst.msk [vmem:[%s465] sm:$0x3] %vm1219, %v1217
      %p1221 = scmp.lt.s32.totalorder %s21, 1
      %s1222 = scalar_select %p1221, %s21, 1
      %s1223 = smul.addr %s1222, 2
      %s1224 = scalar_lea.vmem %s10, %s1223
      // Predicated region
      $region61: #{dc_bilstm_forward.6} parent=59 // pred_check
        %p1225 = pneg %p284
      $region62: #{dc_bilstm_forward.6} parent=59 // pred_check_branch
        %1227 = sbr.rel (%p1225) target = $region64
      $region63: #{dc_bilstm_forward.6} parent=59 // pred_region
        _
      $region64: #{dc_bilstm_forward.6} parent=59 // pred_fallthru
        _
    $region60: #{dc_bilstm_forward.6} parent=5 // pred_fallthru
      _
    %p1228 = scmp.le.s32.totalorder 2, %s16
    // Predicated region
    $region65: #{dc_bilstm_forward.6} parent=5 // pred_check
      %p1229 = pneg %p1228
    $region66: #{dc_bilstm_forward.6} parent=5 // pred_check_branch
      %1231 = sbr.rel (%p1229) target = $region68
    $region67: #{dc_bilstm_forward.6} parent=5 // pred_region
      %s1232 = ssub.s32 %s16, 2
      // Predicated region
      $region69: #{dc_bilstm_forward.6} parent=67 // pred_check
        %p1233 = pneg %p290
      $region70: #{dc_bilstm_forward.6} parent=67 // pred_check_branch
        %1235 = sbr.rel (%p1233) target = $region72
      $region71: #{dc_bilstm_forward.6} parent=67 // pred_region
        %p1236 = scmp.lt.s32.totalorder %s22, 1
        %s1237 = scalar_select %p1236, %s22, 1
        %s1238 = smul.addr %s1237, 2
        %s1239 = scalar_lea.vmem %s10, %s1238
      $region72: #{dc_bilstm_forward.6} parent=67 // pred_fallthru
        _
    $region68: #{dc_bilstm_forward.6} parent=5 // pred_fallthru
      _
  $region6: #{dc_bilstm_forward.6} parent=0 // loop_footer
    %s20 = sadd.s32 1, %s16
  $region7: #{dc_bilstm_forward.6} parent=0 // loop_footer_branch
    %15 = sbr.rel target = $region3
  $region8: #{dc_bilstm_forward.6} parent=0 // loop_exit
    _

// kernel: dc_bilstm_forward.4
$region0: #{dc_bilstm_forward.4}
  #allocation0 [shape = 'u32[]', space=smem, size = 0x4, offset = 0x4, fixed_abs, tag = 'smem constant byte address 0x4 - core index']
  #allocation1 [shape = 'u32[72,128]{1,0:T(1,128)}', space=vmem, size = 0x9000, scoped, tag = 'internal scratch']
  #allocation2 [shape = 'f32[8,2,128]{2,1,0:T(2,128)}', space=vmem, size = 0x2000, scoped, tag = 'scratch operand']
  %s0 = inlined_call_operand.vmem [shape: f32[16,48], index: 0, kind: input, shape index: {}]
  %s1 = inlined_call_operand.vmem [shape: bf16[2,48,128], index: 1, kind: input, shape index: {}]
  %s2 = inlined_call_operand.vmem [shape: bf16[2,32,128], index: 2, kind: input, shape index: {}]
  %s3 = inlined_call_operand.vmem [shape: f32[2,1,128], index: 3, kind: input, shape index: {}]
  %s4 = inlined_call_operand.vmem [shape: f32[2,2,32], index: 4, kind: input, shape index: {}, may-alias: {4,5}]
  %s5 = inlined_call_operand.vmem [shape: f32[2,2,32], index: 5, kind: input, shape index: {}, may-alias: {4,5}]
  %s6 = inlined_call_operand.vmem [shape: f32[2,8,2,32], index: 6, kind: output, shape index: {0}]
  %s7 = inlined_call_operand.vmem [shape: f32[2,2,32], index: 7, kind: output, shape index: {1}]
  %s8 = inlined_call_operand.vmem [shape: f32[2,2,32], index: 8, kind: output, shape index: {2}]
  %9 = xla_tuple %s6, %s7, %s8
  %s10 = sld [smem:[#allocation0]]
  $region73: #{dc_bilstm_forward.4} parent=0
    _
  %s12 = ssub.s32 1, %s10
  %s13 = scalar_select 0, %s12, %s10
  loop: start=0, step=1, limit=4
  $region2: #{dc_bilstm_forward.4} parent=0 // loop_pre_header
    _
  $region3: #{dc_bilstm_forward.4} parent=0 // loop_header
    %s15 = sphi 0, %s19
    %p16 = scmp.ge.s32.totalorder %s15, 4
    %s23 = sphi 0, %s23
    %s25 = sphi 0, %s23
    %s26 = sphi 0, %s25
    %s40 = sphi 0, %s26
    %s46 = sphi 0, %s48
    %s49 = sphi 0, %s46
    %s50 = sphi 0, %s49
    %s66 = sphi 0, %s50
    %s72 = sphi 0, %s74
    %s75 = sphi 0, %s72
    %s76 = sphi 0, %s75
    %s92 = sphi 0, %s76
    %s98 = sphi 0, %s100
    %s101 = sphi 0, %s98
    %s102 = sphi 0, %s101
    %s118 = sphi 0, %s102
    %s124 = sphi 0, %s126
    %s127 = sphi 0, %s124
    %s128 = sphi 0, %s127
    %s144 = sphi 0, %s128
    %s150 = sphi 0, %s152
    %s153 = sphi 0, %s150
    %s154 = sphi 0, %s153
    %s170 = sphi 0, %s154
    %s176 = sphi 0, %s178
    %s179 = sphi 0, %s176
    %s180 = sphi 0, %s179
    %s196 = sphi 0, %s180
    %s202 = sphi 0, %s204
    %s205 = sphi 0, %s202
    %s206 = sphi 0, %s205
    %s222 = sphi 0, %s206
    %s228 = sphi 0, %s230
    %s231 = sphi 0, %s228
    %s232 = sphi 0, %s231
    %s248 = sphi 0, %s232
  $region4: #{dc_bilstm_forward.4} parent=0 // loop_header_branch
    %18 = sbr.rel (%p16) target = $region8
  $region5: #{dc_bilstm_forward.4} parent=0 // loop_body
    %s20 = ssub.s32 %s15, 1
    %s21 = ssub.s32 %s15, 2
    %s22 = sadd.s32 %s15, 1
    %s24 = sadd.s32 %s23, 1
    %p27 = scmp.eq.s32.totalorder %s15, 1
    %p28 = scmp.ne.s32.totalorder %s23, %s25
    %p29 = scmp.eq.s32.totalorder %s15, 0
    %p30 = por %p28, %p29
    %p31 = scmp.ne.s32.totalorder %s23, %s25
    %p32 = scmp.eq.s32.totalorder %s20, 1
    %p33 = por %p31, %p32
    %p34 = scmp.ne.s32.totalorder %s25, %s26
    %p35 = scmp.eq.s32.totalorder %s20, 0
    %p36 = por %p34, %p35
    %p37 = scmp.ne.s32.totalorder %s25, %s26
    %p38 = scmp.eq.s32.totalorder %s21, 1
    %p39 = por %p37, %p38
    %p41 = scmp.ne.s32.totalorder %s26, %s40
    %p42 = scmp.eq.s32.totalorder %s21, 0
    %p43 = por %p41, %p42
    %s44 = ssub.s32 %s15, %s22
    %p45 = scmp.eq.s32.totalorder %s44, 0
    %s47 = sadd.s32 %s46, 1
    %s48 = scalar_select %p45, %s46, %s47
    %p51 = pneg %p45
    %p52 = scmp.eq.s32.totalorder %s15, 1
    %p53 = por %p51, %p52
    %p54 = scmp.ne.s32.totalorder %s46, %s49
    %p55 = scmp.eq.s32.totalorder %s15, 0
    %p56 = por %p54, %p55
    %p57 = scmp.ne.s32.totalorder %s46, %s49
    %p58 = scmp.eq.s32.totalorder %s20, 1
    %p59 = por %p57, %p58
    %p60 = scmp.ne.s32.totalorder %s49, %s50
    %p61 = scmp.eq.s32.totalorder %s20, 0
    %p62 = por %p60, %p61
    %p63 = scmp.ne.s32.totalorder %s49, %s50
    %p64 = scmp.eq.s32.totalorder %s21, 1
    %p65 = por %p63, %p64
    %p67 = scmp.ne.s32.totalorder %s50, %s66
    %p68 = scmp.eq.s32.totalorder %s21, 0
    %p69 = por %p67, %p68
    %s70 = ssub.s32 %s15, %s22
    %p71 = scmp.eq.s32.totalorder %s70, 0
    %s73 = sadd.s32 %s72, 1
    %s74 = scalar_select %p71, %s72, %s73
    %p77 = pneg %p71
    %p78 = scmp.eq.s32.totalorder %s15, 1
    %p79 = por %p77, %p78
    %p80 = scmp.ne.s32.totalorder %s72, %s75
    %p81 = scmp.eq.s32.totalorder %s15, 0
    %p82 = por %p80, %p81
    %p83 = scmp.ne.s32.totalorder %s72, %s75
    %p84 = scmp.eq.s32.totalorder %s20, 1
    %p85 = por %p83, %p84
    %p86 = scmp.ne.s32.totalorder %s75, %s76
    %p87 = scmp.eq.s32.totalorder %s20, 0
    %p88 = por %p86, %p87
    %p89 = scmp.ne.s32.totalorder %s75, %s76
    %p90 = scmp.eq.s32.totalorder %s21, 1
    %p91 = por %p89, %p90
    %p93 = scmp.ne.s32.totalorder %s76, %s92
    %p94 = scmp.eq.s32.totalorder %s21, 0
    %p95 = por %p93, %p94
    %s96 = ssub.s32 %s15, %s22
    %p97 = scmp.eq.s32.totalorder %s96, 0
    %s99 = sadd.s32 %s98, 1
    %s100 = scalar_select %p97, %s98, %s99
    %p103 = pneg %p97
    %p104 = scmp.eq.s32.totalorder %s15, 1
    %p105 = por %p103, %p104
    %p106 = scmp.ne.s32.totalorder %s98, %s101
    %p107 = scmp.eq.s32.totalorder %s15, 0
    %p108 = por %p106, %p107
    %p109 = scmp.ne.s32.totalorder %s98, %s101
    %p110 = scmp.eq.s32.totalorder %s20, 1
    %p111 = por %p109, %p110
    %p112 = scmp.ne.s32.totalorder %s101, %s102
    %p113 = scmp.eq.s32.totalorder %s20, 0
    %p114 = por %p112, %p113
    %p115 = scmp.ne.s32.totalorder %s101, %s102
    %p116 = scmp.eq.s32.totalorder %s21, 1
    %p117 = por %p115, %p116
    %p119 = scmp.ne.s32.totalorder %s102, %s118
    %p120 = scmp.eq.s32.totalorder %s21, 0
    %p121 = por %p119, %p120
    %s122 = ssub.s32 %s15, %s22
    %p123 = scmp.eq.s32.totalorder %s122, 0
    %s125 = sadd.s32 %s124, 1
    %s126 = scalar_select %p123, %s124, %s125
    %p129 = pneg %p123
    %p130 = scmp.eq.s32.totalorder %s15, 1
    %p131 = por %p129, %p130
    %p132 = scmp.ne.s32.totalorder %s124, %s127
    %p133 = scmp.eq.s32.totalorder %s15, 0
    %p134 = por %p132, %p133
    %p135 = scmp.ne.s32.totalorder %s124, %s127
    %p136 = scmp.eq.s32.totalorder %s20, 1
    %p137 = por %p135, %p136
    %p138 = scmp.ne.s32.totalorder %s127, %s128
    %p139 = scmp.eq.s32.totalorder %s20, 0
    %p140 = por %p138, %p139
    %p141 = scmp.ne.s32.totalorder %s127, %s128
    %p142 = scmp.eq.s32.totalorder %s21, 1
    %p143 = por %p141, %p142
    %p145 = scmp.ne.s32.totalorder %s128, %s144
    %p146 = scmp.eq.s32.totalorder %s21, 0
    %p147 = por %p145, %p146
    %s148 = ssub.s32 %s15, %s22
    %p149 = scmp.eq.s32.totalorder %s148, 0
    %s151 = sadd.s32 %s150, 1
    %s152 = scalar_select %p149, %s150, %s151
    %p155 = pneg %p149
    %p156 = scmp.eq.s32.totalorder %s15, 1
    %p157 = por %p155, %p156
    %p158 = scmp.ne.s32.totalorder %s150, %s153
    %p159 = scmp.eq.s32.totalorder %s15, 0
    %p160 = por %p158, %p159
    %p161 = scmp.ne.s32.totalorder %s150, %s153
    %p162 = scmp.eq.s32.totalorder %s20, 1
    %p163 = por %p161, %p162
    %p164 = scmp.ne.s32.totalorder %s153, %s154
    %p165 = scmp.eq.s32.totalorder %s20, 0
    %p166 = por %p164, %p165
    %p167 = scmp.ne.s32.totalorder %s153, %s154
    %p168 = scmp.eq.s32.totalorder %s21, 1
    %p169 = por %p167, %p168
    %p171 = scmp.ne.s32.totalorder %s154, %s170
    %p172 = scmp.eq.s32.totalorder %s21, 0
    %p173 = por %p171, %p172
    %s174 = ssub.s32 %s15, %s22
    %p175 = scmp.eq.s32.totalorder %s174, 0
    %s177 = sadd.s32 %s176, 1
    %s178 = scalar_select %p175, %s176, %s177
    %p181 = pneg %p175
    %p182 = scmp.eq.s32.totalorder %s15, 1
    %p183 = por %p181, %p182
    %p184 = scmp.ne.s32.totalorder %s176, %s179
    %p185 = scmp.eq.s32.totalorder %s15, 0
    %p186 = por %p184, %p185
    %p187 = scmp.ne.s32.totalorder %s176, %s179
    %p188 = scmp.eq.s32.totalorder %s20, 1
    %p189 = por %p187, %p188
    %p190 = scmp.ne.s32.totalorder %s179, %s180
    %p191 = scmp.eq.s32.totalorder %s20, 0
    %p192 = por %p190, %p191
    %p193 = scmp.ne.s32.totalorder %s179, %s180
    %p194 = scmp.eq.s32.totalorder %s21, 1
    %p195 = por %p193, %p194
    %p197 = scmp.ne.s32.totalorder %s180, %s196
    %p198 = scmp.eq.s32.totalorder %s21, 0
    %p199 = por %p197, %p198
    %s200 = ssub.s32 %s15, %s22
    %p201 = scmp.eq.s32.totalorder %s200, 0
    %s203 = sadd.s32 %s202, 1
    %s204 = scalar_select %p201, %s202, %s203
    %p207 = pneg %p201
    %p208 = scmp.eq.s32.totalorder %s15, 1
    %p209 = por %p207, %p208
    %p210 = scmp.ne.s32.totalorder %s202, %s205
    %p211 = scmp.eq.s32.totalorder %s15, 0
    %p212 = por %p210, %p211
    %p213 = scmp.ne.s32.totalorder %s202, %s205
    %p214 = scmp.eq.s32.totalorder %s20, 1
    %p215 = por %p213, %p214
    %p216 = scmp.ne.s32.totalorder %s205, %s206
    %p217 = scmp.eq.s32.totalorder %s20, 0
    %p218 = por %p216, %p217
    %p219 = scmp.ne.s32.totalorder %s205, %s206
    %p220 = scmp.eq.s32.totalorder %s21, 1
    %p221 = por %p219, %p220
    %p223 = scmp.ne.s32.totalorder %s206, %s222
    %p224 = scmp.eq.s32.totalorder %s21, 0
    %p225 = por %p223, %p224
    %s226 = ssub.s32 %s15, %s22
    %p227 = scmp.eq.s32.totalorder %s226, 0
    %s229 = sadd.s32 %s228, 1
    %s230 = scalar_select %p227, %s228, %s229
    %p233 = pneg %p227
    %p234 = scmp.eq.s32.totalorder %s15, 1
    %p235 = por %p233, %p234
    %p236 = scmp.ne.s32.totalorder %s228, %s231
    %p237 = scmp.eq.s32.totalorder %s15, 0
    %p238 = por %p236, %p237
    %p239 = scmp.ne.s32.totalorder %s228, %s231
    %p240 = scmp.eq.s32.totalorder %s20, 1
    %p241 = por %p239, %p240
    %p242 = scmp.ne.s32.totalorder %s231, %s232
    %p243 = scmp.eq.s32.totalorder %s20, 0
    %p244 = por %p242, %p243
    %p245 = scmp.ne.s32.totalorder %s231, %s232
    %p246 = scmp.eq.s32.totalorder %s21, 1
    %p247 = por %p245, %p246
    %p249 = scmp.ne.s32.totalorder %s232, %s248
    %p250 = scmp.eq.s32.totalorder %s21, 0
    %p251 = por %p249, %p250
    %p252 = scmp.le.s32.totalorder 1, %s15
    %p253 = scmp.lt.s32.totalorder %s15, 3
    %p254 = pnand %p252, %p253
    %p255 = pneg %p254
    // Predicated region
    $region9: #{dc_bilstm_forward.4} parent=5 // pred_check
      _
    $region10: #{dc_bilstm_forward.4} parent=5 // pred_check_branch
      %257 = sbr.rel (%p254) target = $region12
    $region11: #{dc_bilstm_forward.4} parent=5 // pred_region
      %s258 = ssub.s32 %s15, 1
      // Predicated region
      $region13: #{dc_bilstm_forward.4} parent=11 // pred_check
        %p259 = pneg %p36
      $region14: #{dc_bilstm_forward.4} parent=11 // pred_check_branch
        %261 = sbr.rel (%p259) target = $region16
      $region15: #{dc_bilstm_forward.4} parent=11 // pred_region
        _
      $region16: #{dc_bilstm_forward.4} parent=11 // pred_fallthru
        _
    $region12: #{dc_bilstm_forward.4} parent=5 // pred_fallthru
      _
    %p262 = scmp.lt.s32.totalorder %s15, 2
    // Predicated region
    $region17: #{dc_bilstm_forward.4} parent=5 // pred_check
      %p263 = pneg %p262
    $region18: #{dc_bilstm_forward.4} parent=5 // pred_check_branch
      %265 = sbr.rel (%p263) target = $region20
    $region19: #{dc_bilstm_forward.4} parent=5 // pred_region
      // Predicated region
      $region21: #{dc_bilstm_forward.4} parent=19 // pred_check
        %p266 = pneg %p56
      $region22: #{dc_bilstm_forward.4} parent=19 // pred_check_branch
        %268 = sbr.rel (%p266) target = $region24
      $region23: #{dc_bilstm_forward.4} parent=19 // pred_region
        %p269 = scmp.lt.s32.totalorder %s15, 1
        %s270 = scalar_select %p269, %s15, 1
        %s271 = smul.addr %s270, 6
        %s272 = smul.addr %s271, 4
        %s273 = scalar_lea.vmem %s1, %s272
      $region24: #{dc_bilstm_forward.4} parent=19 // pred_fallthru
        _
      // Predicated region
      $region25: #{dc_bilstm_forward.4} parent=19 // pred_check
        %p274 = pneg %p82
      $region26: #{dc_bilstm_forward.4} parent=19 // pred_check_branch
        %276 = sbr.rel (%p274) target = $region28
      $region27: #{dc_bilstm_forward.4} parent=19 // pred_region
        %p277 = scmp.lt.s32.totalorder %s15, 1
        %s278 = scalar_select %p277, %s15, 1
        %s279 = smul.addr %s278, 4
        %s280 = smul.addr %s279, 4
        %s281 = scalar_lea.vmem %s2, %s280
      $region28: #{dc_bilstm_forward.4} parent=19 // pred_fallthru
        _
      // Predicated region
      $region29: #{dc_bilstm_forward.4} parent=19 // pred_check
        %p282 = pneg %p108
      $region30: #{dc_bilstm_forward.4} parent=19 // pred_check_branch
        %284 = sbr.rel (%p282) target = $region32
      $region31: #{dc_bilstm_forward.4} parent=19 // pred_region
        %p285 = scmp.lt.s32.totalorder %s15, 1
        %s286 = scalar_select %p285, %s15, 1
        %s287 = scalar_lea.vmem %s3, %s286
      $region32: #{dc_bilstm_forward.4} parent=19 // pred_fallthru
        _
      // Predicated region
      $region33: #{dc_bilstm_forward.4} parent=19 // pred_check
        %p288 = pneg %p134
      $region34: #{dc_bilstm_forward.4} parent=19 // pred_check_branch
        %290 = sbr.rel (%p288) target = $region36
      $region35: #{dc_bilstm_forward.4} parent=19 // pred_region
        %p291 = scmp.lt.s32.totalorder %s15, 1
        %s292 = scalar_select %p291, %s15, 1
        %s293 = smul.addr %s292, 2
        %s294 = scalar_lea.vmem %s4, %s293
      $region36: #{dc_bilstm_forward.4} parent=19 // pred_fallthru
        _
      // Predicated region
      $region37: #{dc_bilstm_forward.4} parent=19 // pred_check
        %p295 = pneg %p160
      $region38: #{dc_bilstm_forward.4} parent=19 // pred_check_branch
        %297 = sbr.rel (%p295) target = $region40
      $region39: #{dc_bilstm_forward.4} parent=19 // pred_region
        %p298 = scmp.lt.s32.totalorder %s15, 1
        %s299 = scalar_select %p298, %s15, 1
        %s300 = smul.addr %s299, 2
        %s301 = scalar_lea.vmem %s5, %s300
      $region40: #{dc_bilstm_forward.4} parent=19 // pred_fallthru
        _
    $region20: #{dc_bilstm_forward.4} parent=5 // pred_fallthru
      _
    %p302 = scmp.le.s32.totalorder 1, %s15
    %p303 = scmp.lt.s32.totalorder %s15, 3
    %p304 = pnand %p302, %p303
    %p305 = pneg %p304
    // Predicated region
    $region41: #{dc_bilstm_forward.4} parent=5 // pred_check
      _
    $region42: #{dc_bilstm_forward.4} parent=5 // pred_check_branch
      %307 = sbr.rel (%p304) target = $region44
    $region43: #{dc_bilstm_forward.4} parent=5 // pred_region
      %s308 = ssub.s32 %s15, 1
      %p309 = pneg %p36
      %p310 = pneg %p33
      %p311 = scmp.lt.s32.totalorder %s20, 1
      %s312 = scalar_select %p311, %s20, 1
      %s313 = smul.addr %s312, 6
      %s314 = smul.addr %s313, 4
      %s315 = scalar_lea.vmem %s1, %s314
      %p316 = pneg %p62
      %p317 = pneg %p59
      %p318 = scmp.lt.s32.totalorder %s20, 1
      %s319 = scalar_select %p318, %s20, 1
      %s320 = smul.addr %s319, 4
      %s321 = smul.addr %s320, 4
      %s322 = scalar_lea.vmem %s2, %s321
      %p323 = pneg %p88
      %p324 = pneg %p85
      %p325 = scmp.lt.s32.totalorder %s20, 1
      %s326 = scalar_select %p325, %s20, 1
      %s327 = scalar_lea.vmem %s3, %s326
      %p328 = pneg %p114
      %p329 = pneg %p111
      %p330 = scmp.lt.s32.totalorder %s20, 1
      %s331 = scalar_select %p330, %s20, 1
      %s332 = smul.addr %s331, 2
      %s333 = scalar_lea.vmem %s4, %s332
      %p334 = pneg %p140
      %p335 = pneg %p137
      %p336 = scmp.lt.s32.totalorder %s20, 1
      %s337 = scalar_select %p336, %s20, 1
      %s338 = smul.addr %s337, 2
      %s339 = scalar_lea.vmem %s5, %s338
      %p340 = pneg %p166
      %p341 = pneg %p163
      %p342 = pneg %p192
      %p343 = pneg %p189
      %p344 = scmp.lt.s32.totalorder %s20, 1
      %s345 = scalar_select %p344, %s20, 1
      %s346 = smul.addr %s345, 8
      %s347 = smul.addr %s346, 2
      %s348 = scalar_lea.vmem %s6, %s347
      %p349 = pneg %p218
      %p350 = pneg %p215
      %p351 = scmp.lt.s32.totalorder %s20, 1
      %s352 = scalar_select %p351, %s20, 1
      %s353 = smul.addr %s352, 2
      %s354 = scalar_lea.vmem %s7, %s353
      %p355 = pneg %p244
      %p356 = pneg %p241
      %p357 = scmp.lt.s32.totalorder %s20, 1
      %s358 = scalar_select %p357, %s20, 1
      %s359 = smul.addr %s358, 2
      %s360 = scalar_lea.vmem %s8, %s359
      %p361 = scmp.lt.s32.totalorder %s20, 1
      %s362 = scalar_select %p361, %s20, 1
      %s363 = smul.addr %s362, 6
      %s364 = smul.addr %s363, 4
      %s365 = scalar_lea.vmem %s1, %s364
      %p366 = scmp.lt.s32.totalorder %s20, 1
      %s367 = scalar_select %p366, %s20, 1
      %s368 = smul.addr %s367, 4
      %s369 = smul.addr %s368, 4
      %s370 = scalar_lea.vmem %s2, %s369
      %p371 = scmp.lt.s32.totalorder %s20, 1
      %s372 = scalar_select %p371, %s20, 1
      %s373 = scalar_lea.vmem %s3, %s372
      %p374 = scmp.lt.s32.totalorder %s20, 1
      %s375 = scalar_select %p374, %s20, 1
      %s376 = smul.addr %s375, 2
      %s377 = scalar_lea.vmem %s4, %s376
      %p378 = scmp.lt.s32.totalorder %s20, 1
      %s379 = scalar_select %p378, %s20, 1
      %s380 = smul.addr %s379, 2
      %s381 = scalar_lea.vmem %s5, %s380
      %p382 = scmp.lt.s32.totalorder %s20, 1
      %s383 = scalar_select %p382, %s20, 1
      %s384 = smul.addr %s383, 8
      %s385 = smul.addr %s384, 2
      %s386 = scalar_lea.vmem %s6, %s385
      %p387 = scmp.lt.s32.totalorder %s20, 1
      %s388 = scalar_select %p387, %s20, 1
      %s389 = smul.addr %s388, 2
      %s390 = scalar_lea.vmem %s7, %s389
      %p391 = scmp.lt.s32.totalorder %s20, 1
      %s392 = scalar_select %p391, %s20, 1
      %s393 = smul.addr %s392, 2
      %s394 = scalar_lea.vmem %s8, %s393
      %v396 = vld [vmem:[%s365] sm:$0xf]
      %v397 = vld [vmem:[%s365 + $0x4] sm:$0xf]
      %v398 = vld [vmem:[%s365 + $0x8] sm:$0xf]
      %v399 = vld [vmem:[%s365 + $0xc] sm:$0xf]
      %v400 = vld [vmem:[%s365 + $0x10] sm:$0xf]
      %v401 = vld [vmem:[%s365 + $0x14] sm:$0xf]
      %v402 = vld [vmem:[%s0] sm:$0xff]
      %v403 = vld [vmem:[%s0 + $0x8] sm:$0xff]
      %v404 = vpack.c.bf16 %v403, %v402
      %v405 = vld [vmem:[%s373] sm:$0x1]
      %v407 = vperm.slane %v405, 0
      %v415 = vunpack.c.l.b16 %v396
      %v416 = vunpack.c.l.b16 %v397
      %v417 = vunpack.c.l.b16 %v398
      %v418 = vunpack.c.l.b16 %v399
      %v419 = vunpack.c.l.b16 %v400
      %v420 = vunpack.c.l.b16 %v401
      %v421 = vpack.c.b16 %v416, %v415
      %v422 = vpack.c.b16 %v418, %v417
      %v423 = vpack.c.b16 %v420, %v419
      %vm427 = vcmask 392192
      %v429 = vsel %vm427, %v404, 0
      %431 = vmatpush.bf16.msra.mxu0 0
      %432 = vmatpush.bf16.msra.mxu0 0
      %433 = vmatpush.bf16.msra.mxu0 0
      %434 = vmatpush.bf16.msra.mxu0 0
      %435 = vmatpush.bf16.msra.mxu0 0
      %436 = vmatpush.bf16.msra.mxu0 %v423
      %437 = vmatpush.bf16.msra.mxu0 %v422
      %438 = vmatpush.bf16.msra.mxu0 %v421
      %439 = vmatmul.bf16.gmra.mxu0 %v429
      %v440 = vpop.f32.mrf.mxu0
      %v441 = vadd.f32 %v407, %v440
      %v442 = vpop.f32.mrf.mxu0
      %v443 = vadd.f32 %v407, %v442
      %444 = vdwg.mxu0
      %445 = vst [vmem:[#allocation2] sm:$0x3] %v441
      %s446 = scalar_lea.vmem [#allocation2], 2
      %447 = vst [vmem:[%s446 - $0x2] sm:$0xc] %v441
      %s448 = scalar_lea.vmem [#allocation2], 4
      %449 = vst [vmem:[%s448 - $0x4] sm:$0x30] %v441
      %s450 = scalar_lea.vmem [#allocation2], 6
      %451 = vst [vmem:[%s450 - $0x6] sm:$0xc0] %v441
      %s452 = scalar_lea.vmem [#allocation2], 8
      %453 = vst [vmem:[%s452] sm:$0x3] %v443
      %s454 = scalar_lea.vmem [#allocation2], 10
      %455 = vst [vmem:[%s454 - $0x2] sm:$0xc] %v443
      %s456 = scalar_lea.vmem [#allocation2], 12
      %457 = vst [vmem:[%s456 - $0x4] sm:$0x30] %v443
      %s458 = scalar_lea.vmem [#allocation2], 14
      %459 = vst [vmem:[%s458 - $0x6] sm:$0xc0] %v443
      %v460 = vld [vmem:[%s370] sm:$0xf]
      %v461 = vld [vmem:[%s370 + $0x4] sm:$0xf]
      %v462 = vld [vmem:[%s370 + $0x8] sm:$0xf]
      %v463 = vld [vmem:[%s370 + $0xc] sm:$0xf]
      %v464 = vld [vmem:[%s377] sm:$0x3]
      %v465 = vld [vmem:[%s381] sm:$0x3]
      %s466 = smul.u32 %s20, 7
      %s467 = smul.u32 %s466, 2
      %s468 = scalar_lea.vmem [#allocation2], %s467
      %v469 = vld [vmem:[%s468] sm:$0x3]
      %v470 = vpack.c.bf16 %v464, %v464
      %v475 = vunpack.c.l.b16 %v460
      %v476 = vunpack.c.l.b16 %v461
      %v477 = vunpack.c.l.b16 %v462
      %v478 = vunpack.c.l.b16 %v463
      %v479 = vpack.c.b16 %v476, %v475
      %v480 = vpack.c.b16 %v478, %v477
      %vm483 = vcmask 261120
      %v485 = vsel %vm483, %v470, 0
      %487 = vmatpush.bf16.msra.mxu0 0
      %488 = vmatpush.bf16.msra.mxu0 0
      %489 = vmatpush.bf16.msra.mxu0 0
      %490 = vmatpush.bf16.msra.mxu0 0
      %491 = vmatpush.bf16.msra.mxu0 0
      %492 = vmatpush.bf16.msra.mxu0 0
      %493 = vmatpush.bf16.msra.mxu0 %v480
      %494 = vmatpush.bf16.msra.mxu0 %v479
      %495 = vmatmul.bf16.gmra.mxu0 %v485
      %v496 = vpop.f32.mrf.mxu0
      %v497 = vadd.f32 0.0, %v496
      %v498 = vpop.f32.mrf.mxu0
      %499 = vdwg.mxu0
      %v500 = vadd.f32 %v469, %v497
      %v501 = vxor.u32 %v500, 2147483648
      %v502 = vmul.f32 %v501, 1.442695
      %v503 = vpow.pop %v502
      %v504 = vadd.f32 %v503, 1.0
      %v505 = vrcp.pop %v504
      %v506 = vmul.f32 %v504, %v505
      %v507 = vsub.f32 1.0, %v506
      %v508 = vmul.f32 %v505, %v507
      %v509 = vadd.f32 %v505, %v508
      %vm510 = vweird.f32 %v504
      %vm511 = vweird.f32 %v505
      %vm512 = vmor %vm510, %vm511
      %v513 = vsel %vm512, %v505, %v509
      %v514 = vand.u32 2147483647, %v504
      %vm515 = vcmp.eq.f32.partialorder %v514, 8.507059e+37
      %v516 = vand.u32 %v504, 2147483648
      %v517 = vor.u32 1.1754944e-38, %v516
      %v518 = vsel %vm515, %v517, %v513
      %v519 = vmul.f32 1.0, %v518
      %v520 = vtanh.pop %v500
      %522 = vrot.lane.b32.xlu0 %v465, 32
      %v523 = vpop.permute.xlu0 %522
      %v525 = vmul.f32 %v519, %v523
      %527 = vrot.lane.b32.xlu0 %v520, 64
      %v528 = vpop.permute.xlu0 %527
      %v530 = vmul.f32 %v519, %v528
      %532 = vrot.lane.b32.xlu0 %v530, 32
      %v533 = vpop.permute.xlu0 %532
      %v535 = vadd.f32 %v525, %v533
      %v536 = vtanh.pop %v535
      %538 = vrot.lane.b32.xlu0 %v536, 64
      %v539 = vpop.permute.xlu0 %538
      %v541 = vmul.f32 %v519, %v539
      %543 = vrot.lane.b32.xlu0 %v541, 32
      %v544 = vpop.permute.xlu0 %543
      %s546 = scalar_lea.vmem %s386, %s467
      %vm547 = vcmask 254976
      %548 = vst.msk [vmem:[%s546] sm:$0x3] %vm547, %v544
      %s549 = smul.u32 %s20, 5
      %s550 = sadd.s32 %s549, 1
      %s551 = smul.u32 %s550, 2
      %s552 = scalar_lea.vmem [#allocation2], %s551
      %v553 = vld [vmem:[%s552] sm:$0x3]
      %v554 = vpack.c.bf16 %v541, %v541
      %556 = vrot.lane.b32.xlu0 %v554, 32
      %v557 = vpop.permute.xlu0 %556
      %v559 = vsel %vm483, %v557, 0
      %561 = vmatpush.bf16.msra.mxu0 0
      %562 = vmatpush.bf16.msra.mxu0 0
      %563 = vmatpush.bf16.msra.mxu0 0
      %564 = vmatpush.bf16.msra.mxu0 0
      %565 = vmatpush.bf16.msra.mxu0 0
      %566 = vmatpush.bf16.msra.mxu0 0
      %567 = vmatpush.bf16.msra.mxu0 %v480
      %568 = vmatpush.bf16.msra.mxu0 %v479
      %569 = vmatmul.bf16.gmra.mxu0 %v559
      %v570 = vpop.f32.mrf.mxu0
      %v571 = vadd.f32 0.0, %v570
      %v572 = vpop.f32.mrf.mxu0
      %573 = vdwg.mxu0
      %v574 = vadd.f32 %v553, %v571
      %v575 = vxor.u32 %v574, 2147483648
      %v576 = vmul.f32 %v575, 1.442695
      %v577 = vpow.pop %v576
      %v578 = vadd.f32 %v577, 1.0
      %v579 = vrcp.pop %v578
      %v580 = vmul.f32 %v578, %v579
      %v581 = vsub.f32 1.0, %v580
      %v582 = vmul.f32 %v579, %v581
      %v583 = vadd.f32 %v579, %v582
      %vm584 = vweird.f32 %v578
      %vm585 = vweird.f32 %v579
      %vm586 = vmor %vm584, %vm585
      %v587 = vsel %vm586, %v579, %v583
      %v588 = vand.u32 2147483647, %v578
      %vm589 = vcmp.eq.f32.partialorder %v588, 8.507059e+37
      %v590 = vand.u32 %v578, 2147483648
      %v591 = vor.u32 1.1754944e-38, %v590
      %v592 = vsel %vm589, %v591, %v587
      %v593 = vmul.f32 1.0, %v592
      %v594 = vtanh.pop %v574
      %v595 = vmul.f32 %v593, %v535
      %597 = vrot.lane.b32.xlu0 %v594, 64
      %v598 = vpop.permute.xlu0 %597
      %v600 = vmul.f32 %v593, %v598
      %602 = vrot.lane.b32.xlu0 %v600, 32
      %v603 = vpop.permute.xlu0 %602
      %v605 = vadd.f32 %v595, %v603
      %v606 = vtanh.pop %v605
      %608 = vrot.lane.b32.xlu0 %v606, 64
      %v609 = vpop.permute.xlu0 %608
      %v611 = vmul.f32 %v593, %v609
      %613 = vrot.lane.b32.xlu0 %v611, 32
      %v614 = vpop.permute.xlu0 %613
      %s616 = scalar_lea.vmem %s386, %s551
      %617 = vst.msk [vmem:[%s616] sm:$0x3] %vm547, %v614
      %s618 = smul.u32 %s20, 3
      %s619 = sadd.s32 %s618, 2
      %s620 = smul.u32 %s619, 2
      %s621 = scalar_lea.vmem [#allocation2], %s620
      %v622 = vld [vmem:[%s621] sm:$0x3]
      %v623 = vpack.c.bf16 %v611, %v611
      %625 = vrot.lane.b32.xlu0 %v623, 32
      %v626 = vpop.permute.xlu0 %625
      %v628 = vsel %vm483, %v626, 0
      %630 = vmatpush.bf16.msra.mxu0 0
      %631 = vmatpush.bf16.msra.mxu0 0
      %632 = vmatpush.bf16.msra.mxu0 0
      %633 = vmatpush.bf16.msra.mxu0 0
      %634 = vmatpush.bf16.msra.mxu0 0
      %635 = vmatpush.bf16.msra.mxu0 0
      %636 = vmatpush.bf16.msra.mxu0 %v480
      %637 = vmatpush.bf16.msra.mxu0 %v479
      %638 = vmatmul.bf16.gmra.mxu0 %v628
      %v639 = vpop.f32.mrf.mxu0
      %v640 = vadd.f32 0.0, %v639
      %v641 = vpop.f32.mrf.mxu0
      %642 = vdwg.mxu0
      %v643 = vadd.f32 %v622, %v640
      %v644 = vxor.u32 %v643, 2147483648
      %v645 = vmul.f32 %v644, 1.442695
      %v646 = vpow.pop %v645
      %v647 = vadd.f32 %v646, 1.0
      %v648 = vrcp.pop %v647
      %v649 = vmul.f32 %v647, %v648
      %v650 = vsub.f32 1.0, %v649
      %v651 = vmul.f32 %v648, %v650
      %v652 = vadd.f32 %v648, %v651
      %vm653 = vweird.f32 %v647
      %vm654 = vweird.f32 %v648
      %vm655 = vmor %vm653, %vm654
      %v656 = vsel %vm655, %v648, %v652
      %v657 = vand.u32 2147483647, %v647
      %vm658 = vcmp.eq.f32.partialorder %v657, 8.507059e+37
      %v659 = vand.u32 %v647, 2147483648
      %v660 = vor.u32 1.1754944e-38, %v659
      %v661 = vsel %vm658, %v660, %v656
      %v662 = vmul.f32 1.0, %v661
      %v663 = vtanh.pop %v643
      %v664 = vmul.f32 %v662, %v605
      %666 = vrot.lane.b32.xlu0 %v663, 64
      %v667 = vpop.permute.xlu0 %666
      %v669 = vmul.f32 %v662, %v667
      %671 = vrot.lane.b32.xlu0 %v669, 32
      %v672 = vpop.permute.xlu0 %671
      %v674 = vadd.f32 %v664, %v672
      %v675 = vtanh.pop %v674
      %677 = vrot.lane.b32.xlu0 %v675, 64
      %v678 = vpop.permute.xlu0 %677
      %v680 = vmul.f32 %v662, %v678
      %682 = vrot.lane.b32.xlu0 %v680, 32
      %v683 = vpop.permute.xlu0 %682
      %s685 = scalar_lea.vmem %s386, %s620
      %686 = vst.msk [vmem:[%s685] sm:$0x3] %vm547, %v683
      %s687 = sadd.s32 %s20, 3
      %s688 = smul.u32 %s687, 2
      %s689 = scalar_lea.vmem [#allocation2], %s688
      %v690 = vld [vmem:[%s689] sm:$0x3]
      %v691 = vpack.c.bf16 %v680, %v680
      %693 = vrot.lane.b32.xlu0 %v691, 32
      %v694 = vpop.permute.xlu0 %693
      %v696 = vsel %vm483, %v694, 0
      %698 = vmatpush.bf16.msra.mxu0 0
      %699 = vmatpush.bf16.msra.mxu0 0
      %700 = vmatpush.bf16.msra.mxu0 0
      %701 = vmatpush.bf16.msra.mxu0 0
      %702 = vmatpush.bf16.msra.mxu0 0
      %703 = vmatpush.bf16.msra.mxu0 0
      %704 = vmatpush.bf16.msra.mxu0 %v480
      %705 = vmatpush.bf16.msra.mxu0 %v479
      %706 = vmatmul.bf16.gmra.mxu0 %v696
      %v707 = vpop.f32.mrf.mxu0
      %v708 = vadd.f32 0.0, %v707
      %v709 = vpop.f32.mrf.mxu0
      %710 = vdwg.mxu0
      %v711 = vadd.f32 %v690, %v708
      %v712 = vxor.u32 %v711, 2147483648
      %v713 = vmul.f32 %v712, 1.442695
      %v714 = vpow.pop %v713
      %v715 = vadd.f32 %v714, 1.0
      %v716 = vrcp.pop %v715
      %v717 = vmul.f32 %v715, %v716
      %v718 = vsub.f32 1.0, %v717
      %v719 = vmul.f32 %v716, %v718
      %v720 = vadd.f32 %v716, %v719
      %vm721 = vweird.f32 %v715
      %vm722 = vweird.f32 %v716
      %vm723 = vmor %vm721, %vm722
      %v724 = vsel %vm723, %v716, %v720
      %v725 = vand.u32 2147483647, %v715
      %vm726 = vcmp.eq.f32.partialorder %v725, 8.507059e+37
      %v727 = vand.u32 %v715, 2147483648
      %v728 = vor.u32 1.1754944e-38, %v727
      %v729 = vsel %vm726, %v728, %v724
      %v730 = vmul.f32 1.0, %v729
      %v731 = vtanh.pop %v711
      %v732 = vmul.f32 %v730, %v674
      %734 = vrot.lane.b32.xlu0 %v731, 64
      %v735 = vpop.permute.xlu0 %734
      %v737 = vmul.f32 %v730, %v735
      %739 = vrot.lane.b32.xlu0 %v737, 32
      %v740 = vpop.permute.xlu0 %739
      %v742 = vadd.f32 %v732, %v740
      %v743 = vtanh.pop %v742
      %745 = vrot.lane.b32.xlu0 %v743, 64
      %v746 = vpop.permute.xlu0 %745
      %v748 = vmul.f32 %v730, %v746
      %750 = vrot.lane.b32.xlu0 %v748, 32
      %v751 = vpop.permute.xlu0 %750
      %s753 = scalar_lea.vmem %s386, %s688
      %754 = vst.msk [vmem:[%s753] sm:$0x3] %vm547, %v751
      %s755 = ssub.s32 4, %s20
      %s756 = smul.u32 %s755, 2
      %s757 = scalar_lea.vmem [#allocation2], %s756
      %v758 = vld [vmem:[%s757] sm:$0x3]
      %v759 = vpack.c.bf16 %v748, %v748
      %761 = vrot.lane.b32.xlu0 %v759, 32
      %v762 = vpop.permute.xlu0 %761
      %v764 = vsel %vm483, %v762, 0
      %766 = vmatpush.bf16.msra.mxu0 0
      %767 = vmatpush.bf16.msra.mxu0 0
      %768 = vmatpush.bf16.msra.mxu0 0
      %769 = vmatpush.bf16.msra.mxu0 0
      %770 = vmatpush.bf16.msra.mxu0 0
      %771 = vmatpush.bf16.msra.mxu0 0
      %772 = vmatpush.bf16.msra.mxu0 %v480
      %773 = vmatpush.bf16.msra.mxu0 %v479
      %774 = vmatmul.bf16.gmra.mxu0 %v764
      %v775 = vpop.f32.mrf.mxu0
      %v776 = vadd.f32 0.0, %v775
      %v777 = vpop.f32.mrf.mxu0
      %778 = vdwg.mxu0
      %v779 = vadd.f32 %v758, %v776
      %v780 = vxor.u32 %v779, 2147483648
      %v781 = vmul.f32 %v780, 1.442695
      %v782 = vpow.pop %v781
      %v783 = vadd.f32 %v782, 1.0
      %v784 = vrcp.pop %v783
      %v785 = vmul.f32 %v783, %v784
      %v786 = vsub.f32 1.0, %v785
      %v787 = vmul.f32 %v784, %v786
      %v788 = vadd.f32 %v784, %v787
      %vm789 = vweird.f32 %v783
      %vm790 = vweird.f32 %v784
      %vm791 = vmor %vm789, %vm790
      %v792 = vsel %vm791, %v784, %v788
      %v793 = vand.u32 2147483647, %v783
      %vm794 = vcmp.eq.f32.partialorder %v793, 8.507059e+37
      %v795 = vand.u32 %v783, 2147483648
      %v796 = vor.u32 1.1754944e-38, %v795
      %v797 = vsel %vm794, %v796, %v792
      %v798 = vmul.f32 1.0, %v797
      %v799 = vtanh.pop %v779
      %v800 = vmul.f32 %v798, %v742
      %802 = vrot.lane.b32.xlu0 %v799, 64
      %v803 = vpop.permute.xlu0 %802
      %v805 = vmul.f32 %v798, %v803
      %807 = vrot.lane.b32.xlu0 %v805, 32
      %v808 = vpop.permute.xlu0 %807
      %v810 = vadd.f32 %v800, %v808
      %v811 = vtanh.pop %v810
      %813 = vrot.lane.b32.xlu0 %v811, 64
      %v814 = vpop.permute.xlu0 %813
      %v816 = vmul.f32 %v798, %v814
      %818 = vrot.lane.b32.xlu0 %v816, 32
      %v819 = vpop.permute.xlu0 %818
      %s821 = scalar_lea.vmem %s386, %s756
      %822 = vst.msk [vmem:[%s821] sm:$0x3] %vm547, %v819
      %s823 = smul.u32 %s20, 4294967293
      %s824 = sadd.s32 %s823, 5
      %s825 = smul.u32 %s824, 2
      %s826 = scalar_lea.vmem [#allocation2], %s825
      %v827 = vld [vmem:[%s826] sm:$0x3]
      %v828 = vpack.c.bf16 %v816, %v816
      %830 = vrot.lane.b32.xlu0 %v828, 32
      %v831 = vpop.permute.xlu0 %830
      %v833 = vsel %vm483, %v831, 0
      %835 = vmatpush.bf16.msra.mxu0 0
      %836 = vmatpush.bf16.msra.mxu0 0
      %837 = vmatpush.bf16.msra.mxu0 0
      %838 = vmatpush.bf16.msra.mxu0 0
      %839 = vmatpush.bf16.msra.mxu0 0
      %840 = vmatpush.bf16.msra.mxu0 0
      %841 = vmatpush.bf16.msra.mxu0 %v480
      %842 = vmatpush.bf16.msra.mxu0 %v479
      %843 = vmatmul.bf16.gmra.mxu0 %v833
      %v844 = vpop.f32.mrf.mxu0
      %v845 = vadd.f32 0.0, %v844
      %v846 = vpop.f32.mrf.mxu0
      %847 = vdwg.mxu0
      %v848 = vadd.f32 %v827, %v845
      %v849 = vxor.u32 %v848, 2147483648
      %v850 = vmul.f32 %v849, 1.442695
      %v851 = vpow.pop %v850
      %v852 = vadd.f32 %v851, 1.0
      %v853 = vrcp.pop %v852
      %v854 = vmul.f32 %v852, %v853
      %v855 = vsub.f32 1.0, %v854
      %v856 = vmul.f32 %v853, %v855
      %v857 = vadd.f32 %v853, %v856
      %vm858 = vweird.f32 %v852
      %vm859 = vweird.f32 %v853
      %vm860 = vmor %vm858, %vm859
      %v861 = vsel %vm860, %v853, %v857
      %v862 = vand.u32 2147483647, %v852
      %vm863 = vcmp.eq.f32.partialorder %v862, 8.507059e+37
      %v864 = vand.u32 %v852, 2147483648
      %v865 = vor.u32 1.1754944e-38, %v864
      %v866 = vsel %vm863, %v865, %v861
      %v867 = vmul.f32 1.0, %v866
      %v868 = vtanh.pop %v848
      %v869 = vmul.f32 %v867, %v810
      %871 = vrot.lane.b32.xlu0 %v868, 64
      %v872 = vpop.permute.xlu0 %871
      %v874 = vmul.f32 %v867, %v872
      %876 = vrot.lane.b32.xlu0 %v874, 32
      %v877 = vpop.permute.xlu0 %876
      %v879 = vadd.f32 %v869, %v877
      %v880 = vtanh.pop %v879
      %882 = vrot.lane.b32.xlu0 %v880, 64
      %v883 = vpop.permute.xlu0 %882
      %v885 = vmul.f32 %v867, %v883
      %887 = vrot.lane.b32.xlu0 %v885, 32
      %v888 = vpop.permute.xlu0 %887
      %s890 = scalar_lea.vmem %s386, %s825
      %891 = vst.msk [vmem:[%s890] sm:$0x3] %vm547, %v888
      %s892 = smul.u32 %s20, 4294967291
      %s893 = sadd.s32 %s892, 6
      %s894 = smul.u32 %s893, 2
      %s895 = scalar_lea.vmem [#allocation2], %s894
      %v896 = vld [vmem:[%s895] sm:$0x3]
      %v897 = vpack.c.bf16 %v885, %v885
      %899 = vrot.lane.b32.xlu0 %v897, 32
      %v900 = vpop.permute.xlu0 %899
      %v902 = vsel %vm483, %v900, 0
      %904 = vmatpush.bf16.msra.mxu0 0
      %905 = vmatpush.bf16.msra.mxu0 0
      %906 = vmatpush.bf16.msra.mxu0 0
      %907 = vmatpush.bf16.msra.mxu0 0
      %908 = vmatpush.bf16.msra.mxu0 0
      %909 = vmatpush.bf16.msra.mxu0 0
      %910 = vmatpush.bf16.msra.mxu0 %v480
      %911 = vmatpush.bf16.msra.mxu0 %v479
      %912 = vmatmul.bf16.gmra.mxu0 %v902
      %v913 = vpop.f32.mrf.mxu0
      %v914 = vadd.f32 0.0, %v913
      %v915 = vpop.f32.mrf.mxu0
      %916 = vdwg.mxu0
      %v917 = vadd.f32 %v896, %v914
      %v918 = vxor.u32 %v917, 2147483648
      %v919 = vmul.f32 %v918, 1.442695
      %v920 = vpow.pop %v919
      %v921 = vadd.f32 %v920, 1.0
      %v922 = vrcp.pop %v921
      %v923 = vmul.f32 %v921, %v922
      %v924 = vsub.f32 1.0, %v923
      %v925 = vmul.f32 %v922, %v924
      %v926 = vadd.f32 %v922, %v925
      %vm927 = vweird.f32 %v921
      %vm928 = vweird.f32 %v922
      %vm929 = vmor %vm927, %vm928
      %v930 = vsel %vm929, %v922, %v926
      %v931 = vand.u32 2147483647, %v921
      %vm932 = vcmp.eq.f32.partialorder %v931, 8.507059e+37
      %v933 = vand.u32 %v921, 2147483648
      %v934 = vor.u32 1.1754944e-38, %v933
      %v935 = vsel %vm932, %v934, %v930
      %v936 = vmul.f32 1.0, %v935
      %v937 = vtanh.pop %v917
      %v938 = vmul.f32 %v936, %v879
      %940 = vrot.lane.b32.xlu0 %v937, 64
      %v941 = vpop.permute.xlu0 %940
      %v943 = vmul.f32 %v936, %v941
      %945 = vrot.lane.b32.xlu0 %v943, 32
      %v946 = vpop.permute.xlu0 %945
      %v948 = vadd.f32 %v938, %v946
      %v949 = vtanh.pop %v948
      %951 = vrot.lane.b32.xlu0 %v949, 64
      %v952 = vpop.permute.xlu0 %951
      %v954 = vmul.f32 %v936, %v952
      %956 = vrot.lane.b32.xlu0 %v954, 32
      %v957 = vpop.permute.xlu0 %956
      %s959 = scalar_lea.vmem %s386, %s894
      %960 = vst.msk [vmem:[%s959] sm:$0x3] %vm547, %v957
      %s961 = smul.u32 %s20, 4294967289
      %s962 = sadd.s32 %s961, 7
      %s963 = smul.u32 %s962, 2
      %s964 = scalar_lea.vmem [#allocation2], %s963
      %v965 = vld [vmem:[%s964] sm:$0x3]
      %v966 = vpack.c.bf16 %v954, %v954
      %968 = vrot.lane.b32.xlu0 %v966, 32
      %v969 = vpop.permute.xlu0 %968
      %v971 = vsel %vm483, %v969, 0
      %973 = vmatpush.bf16.msra.mxu0 0
      %974 = vmatpush.bf16.msra.mxu0 0
      %975 = vmatpush.bf16.msra.mxu0 0
      %976 = vmatpush.bf16.msra.mxu0 0
      %977 = vmatpush.bf16.msra.mxu0 0
      %978 = vmatpush.bf16.msra.mxu0 0
      %979 = vmatpush.bf16.msra.mxu0 %v480
      %980 = vmatpush.bf16.msra.mxu0 %v479
      %981 = vmatmul.bf16.gmra.mxu0 %v971
      %v982 = vpop.f32.mrf.mxu0
      %v983 = vadd.f32 0.0, %v982
      %v984 = vpop.f32.mrf.mxu0
      %985 = vdwg.mxu0
      %v986 = vadd.f32 %v965, %v983
      %v987 = vxor.u32 %v986, 2147483648
      %v988 = vmul.f32 %v987, 1.442695
      %v989 = vpow.pop %v988
      %v990 = vadd.f32 %v989, 1.0
      %v991 = vrcp.pop %v990
      %v992 = vmul.f32 %v990, %v991
      %v993 = vsub.f32 1.0, %v992
      %v994 = vmul.f32 %v991, %v993
      %v995 = vadd.f32 %v991, %v994
      %vm996 = vweird.f32 %v990
      %vm997 = vweird.f32 %v991
      %vm998 = vmor %vm996, %vm997
      %v999 = vsel %vm998, %v991, %v995
      %v1000 = vand.u32 2147483647, %v990
      %vm1001 = vcmp.eq.f32.partialorder %v1000, 8.507059e+37
      %v1002 = vand.u32 %v990, 2147483648
      %v1003 = vor.u32 1.1754944e-38, %v1002
      %v1004 = vsel %vm1001, %v1003, %v999
      %v1005 = vmul.f32 1.0, %v1004
      %v1006 = vtanh.pop %v986
      %v1007 = vmul.f32 %v1005, %v948
      %1009 = vrot.lane.b32.xlu0 %v1006, 64
      %v1010 = vpop.permute.xlu0 %1009
      %v1012 = vmul.f32 %v1005, %v1010
      %1014 = vrot.lane.b32.xlu0 %v1012, 32
      %v1015 = vpop.permute.xlu0 %1014
      %v1017 = vadd.f32 %v1007, %v1015
      %v1018 = vtanh.pop %v1017
      %1020 = vrot.lane.b32.xlu0 %v1018, 64
      %v1021 = vpop.permute.xlu0 %1020
      %v1023 = vmul.f32 %v1005, %v1021
      %1025 = vrot.lane.b32.xlu0 %v1023, 32
      %v1026 = vpop.permute.xlu0 %1025
      %s1028 = scalar_lea.vmem %s386, %s963
      %1029 = vst.msk [vmem:[%s1028] sm:$0x3] %vm547, %v1026
      %1030 = vst.msk [vmem:[%s390] sm:$0x3] %vm547, %v1026
      %1032 = vrot.lane.b32.xlu0 %v1017, 96
      %v1033 = vpop.permute.xlu0 %1032
      %1035 = vst.msk [vmem:[%s394] sm:$0x3] %vm547, %v1033
      %p1036 = scmp.lt.s32.totalorder %s20, 1
      %s1037 = scalar_select %p1036, %s20, 1
      %s1038 = smul.addr %s1037, 8
      %s1039 = smul.addr %s1038, 2
      %s1040 = scalar_lea.vmem %s6, %s1039
      %p1041 = scmp.lt.s32.totalorder %s20, 1
      %s1042 = scalar_select %p1041, %s20, 1
      %s1043 = smul.addr %s1042, 2
      %s1044 = scalar_lea.vmem %s7, %s1043
      %p1045 = scmp.lt.s32.totalorder %s20, 1
      %s1046 = scalar_select %p1045, %s20, 1
      %s1047 = smul.addr %s1046, 2
      %s1048 = scalar_lea.vmem %s8, %s1047
      // Predicated region
      $region45: #{dc_bilstm_forward.4} parent=43 // pred_check
        %p1049 = pneg %p189
      $region46: #{dc_bilstm_forward.4} parent=43 // pred_check_branch
        %1051 = sbr.rel (%p1049) target = $region48
      $region47: #{dc_bilstm_forward.4} parent=43 // pred_region
        _
      $region48: #{dc_bilstm_forward.4} parent=43 // pred_fallthru
        _
      // Predicated region
      $region49: #{dc_bilstm_forward.4} parent=43 // pred_check
        %p1052 = pneg %p215
      $region50: #{dc_bilstm_forward.4} parent=43 // pred_check_branch
        %1054 = sbr.rel (%p1052) target = $region52
      $region51: #{dc_bilstm_forward.4} parent=43 // pred_region
        _
      $region52: #{dc_bilstm_forward.4} parent=43 // pred_fallthru
        _
      // Predicated region
      $region53: #{dc_bilstm_forward.4} parent=43 // pred_check
        %p1055 = pneg %p241
      $region54: #{dc_bilstm_forward.4} parent=43 // pred_check_branch
        %1057 = sbr.rel (%p1055) target = $region56
      $region55: #{dc_bilstm_forward.4} parent=43 // pred_region
        _
      $region56: #{dc_bilstm_forward.4} parent=43 // pred_fallthru
        _
    $region44: #{dc_bilstm_forward.4} parent=5 // pred_fallthru
      _
    %p1058 = scmp.le.s32.totalorder 2, %s15
    // Predicated region
    $region57: #{dc_bilstm_forward.4} parent=5 // pred_check
      %p1059 = pneg %p1058
    $region58: #{dc_bilstm_forward.4} parent=5 // pred_check_branch
      %1061 = sbr.rel (%p1059) target = $region60
    $region59: #{dc_bilstm_forward.4} parent=5 // pred_region
      %s1062 = ssub.s32 %s15, 2
      // Predicated region
      $region61: #{dc_bilstm_forward.4} parent=59 // pred_check
        %p1063 = pneg %p195
      $region62: #{dc_bilstm_forward.4} parent=59 // pred_check_branch
        %1065 = sbr.rel (%p1063) target = $region64
      $region63: #{dc_bilstm_forward.4} parent=59 // pred_region
        %p1066 = scmp.lt.s32.totalorder %s21, 1
        %s1067 = scalar_select %p1066, %s21, 1
        %s1068 = smul.addr %s1067, 8
        %s1069 = smul.addr %s1068, 2
        %s1070 = scalar_lea.vmem %s6, %s1069
      $region64: #{dc_bilstm_forward.4} parent=59 // pred_fallthru
        _
      // Predicated region
      $region65: #{dc_bilstm_forward.4} parent=59 // pred_check
        %p1071 = pneg %p221
      $region66: #{dc_bilstm_forward.4} parent=59 // pred_check_branch
        %1073 = sbr.rel (%p1071) target = $region68
      $region67: #{dc_bilstm_forward.4} parent=59 // pred_region
        %p1074 = scmp.lt.s32.totalorder %s21, 1
        %s1075 = scalar_select %p1074, %s21, 1
        %s1076 = smul.addr %s1075, 2
        %s1077 = scalar_lea.vmem %s7, %s1076
      $region68: #{dc_bilstm_forward.4} parent=59 // pred_fallthru
        _
      // Predicated region
      $region69: #{dc_bilstm_forward.4} parent=59 // pred_check
        %p1078 = pneg %p247
      $region70: #{dc_bilstm_forward.4} parent=59 // pred_check_branch
        %1080 = sbr.rel (%p1078) target = $region72
      $region71: #{dc_bilstm_forward.4} parent=59 // pred_region
        %p1081 = scmp.lt.s32.totalorder %s21, 1
        %s1082 = scalar_select %p1081, %s21, 1
        %s1083 = smul.addr %s1082, 2
        %s1084 = scalar_lea.vmem %s8, %s1083
      $region72: #{dc_bilstm_forward.4} parent=59 // pred_fallthru
        _
    $region60: #{dc_bilstm_forward.4} parent=5 // pred_fallthru
      _
  $region6: #{dc_bilstm_forward.4} parent=0 // loop_footer
    %s19 = sadd.s32 1, %s15
  $region7: #{dc_bilstm_forward.4} parent=0 // loop_footer_branch
    %14 = sbr.rel target = $region3
  $region8: #{dc_bilstm_forward.4} parent=0 // loop_exit
    _

// kernel: dc_bilstm_forward.5
$region0: #{dc_bilstm_forward.5}
  #allocation0 [shape = 'u32[]', space=smem, size = 0x4, offset = 0x4, fixed_abs, tag = 'smem constant byte address 0x4 - core index']
  #allocation1 [shape = 'u32[72,128]{1,0:T(1,128)}', space=vmem, size = 0x9000, scoped, tag = 'internal scratch']
  #allocation2 [shape = 'f32[8,2,128]{2,1,0:T(2,128)}', space=vmem, size = 0x2000, scoped, tag = 'scratch operand']
  %s0 = inlined_call_operand.vmem [shape: f32[2,16,32], index: 0, kind: input, shape index: {}]
  %s1 = inlined_call_operand.vmem [shape: f32[16,48], index: 1, kind: input, shape index: {}]
  %s2 = inlined_call_operand.vmem [shape: bf16[2,64,128], index: 2, kind: input, shape index: {}]
  %s3 = inlined_call_operand.vmem [shape: bf16[2,48,128], index: 3, kind: input, shape index: {}]
  %s4 = inlined_call_operand.vmem [shape: bf16[2,32,128], index: 4, kind: input, shape index: {}]
  %s5 = inlined_call_operand.vmem [shape: f32[2,1,128], index: 5, kind: input, shape index: {}]
  %s6 = inlined_call_operand.vmem [shape: f32[2,2,32], index: 6, kind: input, shape index: {}]
  %s7 = inlined_call_operand.vmem [shape: f32[2,2,32], index: 7, kind: input, shape index: {}]
  %s8 = inlined_call_operand.vmem [shape: f32[2,8,2,32], index: 8, kind: output, shape index: {0}]
  %s9 = inlined_call_operand.vmem [shape: f32[2,2,32], index: 9, kind: output, shape index: {1}]
  %s10 = inlined_call_operand.vmem [shape: f32[2,2,32], index: 10, kind: output, shape index: {2}]
  %11 = xla_tuple %s8, %s9, %s10
  %s12 = sld [smem:[#allocation0]]
  $region81: #{dc_bilstm_forward.5} parent=0
    _
  %s14 = ssub.s32 1, %s12
  %s15 = scalar_select 0, %s14, %s12
  loop: start=0, step=1, limit=4
  $region2: #{dc_bilstm_forward.5} parent=0 // loop_pre_header
    _
  $region3: #{dc_bilstm_forward.5} parent=0 // loop_header
    %s17 = sphi 0, %s21
    %p18 = scmp.ge.s32.totalorder %s17, 4
    %s25 = sphi 0, %s25
    %s27 = sphi 0, %s25
    %s28 = sphi 0, %s27
    %s42 = sphi 0, %s28
    %s46 = sphi 0, %s46
    %s48 = sphi 0, %s46
    %s49 = sphi 0, %s48
    %s63 = sphi 0, %s49
    %s69 = sphi 0, %s71
    %s72 = sphi 0, %s69
    %s73 = sphi 0, %s72
    %s89 = sphi 0, %s73
    %s95 = sphi 0, %s97
    %s98 = sphi 0, %s95
    %s99 = sphi 0, %s98
    %s115 = sphi 0, %s99
    %s121 = sphi 0, %s123
    %s124 = sphi 0, %s121
    %s125 = sphi 0, %s124
    %s141 = sphi 0, %s125
    %s147 = sphi 0, %s149
    %s150 = sphi 0, %s147
    %s151 = sphi 0, %s150
    %s167 = sphi 0, %s151
    %s173 = sphi 0, %s175
    %s176 = sphi 0, %s173
    %s177 = sphi 0, %s176
    %s193 = sphi 0, %s177
    %s199 = sphi 0, %s201
    %s202 = sphi 0, %s199
    %s203 = sphi 0, %s202
    %s219 = sphi 0, %s203
    %s225 = sphi 0, %s227
    %s228 = sphi 0, %s225
    %s229 = sphi 0, %s228
    %s245 = sphi 0, %s229
    %s251 = sphi 0, %s253
    %s254 = sphi 0, %s251
    %s255 = sphi 0, %s254
    %s271 = sphi 0, %s255
    %s277 = sphi 0, %s279
    %s280 = sphi 0, %s277
    %s281 = sphi 0, %s280
    %s297 = sphi 0, %s281
  $region4: #{dc_bilstm_forward.5} parent=0 // loop_header_branch
    %20 = sbr.rel (%p18) target = $region8
  $region5: #{dc_bilstm_forward.5} parent=0 // loop_body
    %s22 = ssub.s32 %s17, 1
    %s23 = ssub.s32 %s17, 2
    %s24 = sadd.s32 %s17, 1
    %s26 = sadd.s32 %s25, 1
    %p29 = scmp.eq.s32.totalorder %s17, 1
    %p30 = scmp.ne.s32.totalorder %s25, %s27
    %p31 = scmp.eq.s32.totalorder %s17, 0
    %p32 = por %p30, %p31
    %p33 = scmp.ne.s32.totalorder %s25, %s27
    %p34 = scmp.eq.s32.totalorder %s22, 1
    %p35 = por %p33, %p34
    %p36 = scmp.ne.s32.totalorder %s27, %s28
    %p37 = scmp.eq.s32.totalorder %s22, 0
    %p38 = por %p36, %p37
    %p39 = scmp.ne.s32.totalorder %s27, %s28
    %p40 = scmp.eq.s32.totalorder %s23, 1
    %p41 = por %p39, %p40
    %p43 = scmp.ne.s32.totalorder %s28, %s42
    %p44 = scmp.eq.s32.totalorder %s23, 0
    %p45 = por %p43, %p44
    %s47 = sadd.s32 %s46, 1
    %p50 = scmp.eq.s32.totalorder %s17, 1
    %p51 = scmp.ne.s32.totalorder %s46, %s48
    %p52 = scmp.eq.s32.totalorder %s17, 0
    %p53 = por %p51, %p52
    %p54 = scmp.ne.s32.totalorder %s46, %s48
    %p55 = scmp.eq.s32.totalorder %s22, 1
    %p56 = por %p54, %p55
    %p57 = scmp.ne.s32.totalorder %s48, %s49
    %p58 = scmp.eq.s32.totalorder %s22, 0
    %p59 = por %p57, %p58
    %p60 = scmp.ne.s32.totalorder %s48, %s49
    %p61 = scmp.eq.s32.totalorder %s23, 1
    %p62 = por %p60, %p61
    %p64 = scmp.ne.s32.totalorder %s49, %s63
    %p65 = scmp.eq.s32.totalorder %s23, 0
    %p66 = por %p64, %p65
    %s67 = ssub.s32 %s17, %s24
    %p68 = scmp.eq.s32.totalorder %s67, 0
    %s70 = sadd.s32 %s69, 1
    %s71 = scalar_select %p68, %s69, %s70
    %p74 = pneg %p68
    %p75 = scmp.eq.s32.totalorder %s17, 1
    %p76 = por %p74, %p75
    %p77 = scmp.ne.s32.totalorder %s69, %s72
    %p78 = scmp.eq.s32.totalorder %s17, 0
    %p79 = por %p77, %p78
    %p80 = scmp.ne.s32.totalorder %s69, %s72
    %p81 = scmp.eq.s32.totalorder %s22, 1
    %p82 = por %p80, %p81
    %p83 = scmp.ne.s32.totalorder %s72, %s73
    %p84 = scmp.eq.s32.totalorder %s22, 0
    %p85 = por %p83, %p84
    %p86 = scmp.ne.s32.totalorder %s72, %s73
    %p87 = scmp.eq.s32.totalorder %s23, 1
    %p88 = por %p86, %p87
    %p90 = scmp.ne.s32.totalorder %s73, %s89
    %p91 = scmp.eq.s32.totalorder %s23, 0
    %p92 = por %p90, %p91
    %s93 = ssub.s32 %s17, %s24
    %p94 = scmp.eq.s32.totalorder %s93, 0
    %s96 = sadd.s32 %s95, 1
    %s97 = scalar_select %p94, %s95, %s96
    %p100 = pneg %p94
    %p101 = scmp.eq.s32.totalorder %s17, 1
    %p102 = por %p100, %p101
    %p103 = scmp.ne.s32.totalorder %s95, %s98
    %p104 = scmp.eq.s32.totalorder %s17, 0
    %p105 = por %p103, %p104
    %p106 = scmp.ne.s32.totalorder %s95, %s98
    %p107 = scmp.eq.s32.totalorder %s22, 1
    %p108 = por %p106, %p107
    %p109 = scmp.ne.s32.totalorder %s98, %s99
    %p110 = scmp.eq.s32.totalorder %s22, 0
    %p111 = por %p109, %p110
    %p112 = scmp.ne.s32.totalorder %s98, %s99
    %p113 = scmp.eq.s32.totalorder %s23, 1
    %p114 = por %p112, %p113
    %p116 = scmp.ne.s32.totalorder %s99, %s115
    %p117 = scmp.eq.s32.totalorder %s23, 0
    %p118 = por %p116, %p117
    %s119 = ssub.s32 %s17, %s24
    %p120 = scmp.eq.s32.totalorder %s119, 0
    %s122 = sadd.s32 %s121, 1
    %s123 = scalar_select %p120, %s121, %s122
    %p126 = pneg %p120
    %p127 = scmp.eq.s32.totalorder %s17, 1
    %p128 = por %p126, %p127
    %p129 = scmp.ne.s32.totalorder %s121, %s124
    %p130 = scmp.eq.s32.totalorder %s17, 0
    %p131 = por %p129, %p130
    %p132 = scmp.ne.s32.totalorder %s121, %s124
    %p133 = scmp.eq.s32.totalorder %s22, 1
    %p134 = por %p132, %p133
    %p135 = scmp.ne.s32.totalorder %s124, %s125
    %p136 = scmp.eq.s32.totalorder %s22, 0
    %p137 = por %p135, %p136
    %p138 = scmp.ne.s32.totalorder %s124, %s125
    %p139 = scmp.eq.s32.totalorder %s23, 1
    %p140 = por %p138, %p139
    %p142 = scmp.ne.s32.totalorder %s125, %s141
    %p143 = scmp.eq.s32.totalorder %s23, 0
    %p144 = por %p142, %p143
    %s145 = ssub.s32 %s17, %s24
    %p146 = scmp.eq.s32.totalorder %s145, 0
    %s148 = sadd.s32 %s147, 1
    %s149 = scalar_select %p146, %s147, %s148
    %p152 = pneg %p146
    %p153 = scmp.eq.s32.totalorder %s17, 1
    %p154 = por %p152, %p153
    %p155 = scmp.ne.s32.totalorder %s147, %s150
    %p156 = scmp.eq.s32.totalorder %s17, 0
    %p157 = por %p155, %p156
    %p158 = scmp.ne.s32.totalorder %s147, %s150
    %p159 = scmp.eq.s32.totalorder %s22, 1
    %p160 = por %p158, %p159
    %p161 = scmp.ne.s32.totalorder %s150, %s151
    %p162 = scmp.eq.s32.totalorder %s22, 0
    %p163 = por %p161, %p162
    %p164 = scmp.ne.s32.totalorder %s150, %s151
    %p165 = scmp.eq.s32.totalorder %s23, 1
    %p166 = por %p164, %p165
    %p168 = scmp.ne.s32.totalorder %s151, %s167
    %p169 = scmp.eq.s32.totalorder %s23, 0
    %p170 = por %p168, %p169
    %s171 = ssub.s32 %s17, %s24
    %p172 = scmp.eq.s32.totalorder %s171, 0
    %s174 = sadd.s32 %s173, 1
    %s175 = scalar_select %p172, %s173, %s174
    %p178 = pneg %p172
    %p179 = scmp.eq.s32.totalorder %s17, 1
    %p180 = por %p178, %p179
    %p181 = scmp.ne.s32.totalorder %s173, %s176
    %p182 = scmp.eq.s32.totalorder %s17, 0
    %p183 = por %p181, %p182
    %p184 = scmp.ne.s32.totalorder %s173, %s176
    %p185 = scmp.eq.s32.totalorder %s22, 1
    %p186 = por %p184, %p185
    %p187 = scmp.ne.s32.totalorder %s176, %s177
    %p188 = scmp.eq.s32.totalorder %s22, 0
    %p189 = por %p187, %p188
    %p190 = scmp.ne.s32.totalorder %s176, %s177
    %p191 = scmp.eq.s32.totalorder %s23, 1
    %p192 = por %p190, %p191
    %p194 = scmp.ne.s32.totalorder %s177, %s193
    %p195 = scmp.eq.s32.totalorder %s23, 0
    %p196 = por %p194, %p195
    %s197 = ssub.s32 %s17, %s24
    %p198 = scmp.eq.s32.totalorder %s197, 0
    %s200 = sadd.s32 %s199, 1
    %s201 = scalar_select %p198, %s199, %s200
    %p204 = pneg %p198
    %p205 = scmp.eq.s32.totalorder %s17, 1
    %p206 = por %p204, %p205
    %p207 = scmp.ne.s32.totalorder %s199, %s202
    %p208 = scmp.eq.s32.totalorder %s17, 0
    %p209 = por %p207, %p208
    %p210 = scmp.ne.s32.totalorder %s199, %s202
    %p211 = scmp.eq.s32.totalorder %s22, 1
    %p212 = por %p210, %p211
    %p213 = scmp.ne.s32.totalorder %s202, %s203
    %p214 = scmp.eq.s32.totalorder %s22, 0
    %p215 = por %p213, %p214
    %p216 = scmp.ne.s32.totalorder %s202, %s203
    %p217 = scmp.eq.s32.totalorder %s23, 1
    %p218 = por %p216, %p217
    %p220 = scmp.ne.s32.totalorder %s203, %s219
    %p221 = scmp.eq.s32.totalorder %s23, 0
    %p222 = por %p220, %p221
    %s223 = ssub.s32 %s17, %s24
    %p224 = scmp.eq.s32.totalorder %s223, 0
    %s226 = sadd.s32 %s225, 1
    %s227 = scalar_select %p224, %s225, %s226
    %p230 = pneg %p224
    %p231 = scmp.eq.s32.totalorder %s17, 1
    %p232 = por %p230, %p231
    %p233 = scmp.ne.s32.totalorder %s225, %s228
    %p234 = scmp.eq.s32.totalorder %s17, 0
    %p235 = por %p233, %p234
    %p236 = scmp.ne.s32.totalorder %s225, %s228
    %p237 = scmp.eq.s32.totalorder %s22, 1
    %p238 = por %p236, %p237
    %p239 = scmp.ne.s32.totalorder %s228, %s229
    %p240 = scmp.eq.s32.totalorder %s22, 0
    %p241 = por %p239, %p240
    %p242 = scmp.ne.s32.totalorder %s228, %s229
    %p243 = scmp.eq.s32.totalorder %s23, 1
    %p244 = por %p242, %p243
    %p246 = scmp.ne.s32.totalorder %s229, %s245
    %p247 = scmp.eq.s32.totalorder %s23, 0
    %p248 = por %p246, %p247
    %s249 = ssub.s32 %s17, %s24
    %p250 = scmp.eq.s32.totalorder %s249, 0
    %s252 = sadd.s32 %s251, 1
    %s253 = scalar_select %p250, %s251, %s252
    %p256 = pneg %p250
    %p257 = scmp.eq.s32.totalorder %s17, 1
    %p258 = por %p256, %p257
    %p259 = scmp.ne.s32.totalorder %s251, %s254
    %p260 = scmp.eq.s32.totalorder %s17, 0
    %p261 = por %p259, %p260
    %p262 = scmp.ne.s32.totalorder %s251, %s254
    %p263 = scmp.eq.s32.totalorder %s22, 1
    %p264 = por %p262, %p263
    %p265 = scmp.ne.s32.totalorder %s254, %s255
    %p266 = scmp.eq.s32.totalorder %s22, 0
    %p267 = por %p265, %p266
    %p268 = scmp.ne.s32.totalorder %s254, %s255
    %p269 = scmp.eq.s32.totalorder %s23, 1
    %p270 = por %p268, %p269
    %p272 = scmp.ne.s32.totalorder %s255, %s271
    %p273 = scmp.eq.s32.totalorder %s23, 0
    %p274 = por %p272, %p273
    %s275 = ssub.s32 %s17, %s24
    %p276 = scmp.eq.s32.totalorder %s275, 0
    %s278 = sadd.s32 %s277, 1
    %s279 = scalar_select %p276, %s277, %s278
    %p282 = pneg %p276
    %p283 = scmp.eq.s32.totalorder %s17, 1
    %p284 = por %p282, %p283
    %p285 = scmp.ne.s32.totalorder %s277, %s280
    %p286 = scmp.eq.s32.totalorder %s17, 0
    %p287 = por %p285, %p286
    %p288 = scmp.ne.s32.totalorder %s277, %s280
    %p289 = scmp.eq.s32.totalorder %s22, 1
    %p290 = por %p288, %p289
    %p291 = scmp.ne.s32.totalorder %s280, %s281
    %p292 = scmp.eq.s32.totalorder %s22, 0
    %p293 = por %p291, %p292
    %p294 = scmp.ne.s32.totalorder %s280, %s281
    %p295 = scmp.eq.s32.totalorder %s23, 1
    %p296 = por %p294, %p295
    %p298 = scmp.ne.s32.totalorder %s281, %s297
    %p299 = scmp.eq.s32.totalorder %s23, 0
    %p300 = por %p298, %p299
    %p301 = scmp.le.s32.totalorder 1, %s17
    %p302 = scmp.lt.s32.totalorder %s17, 3
    %p303 = pnand %p301, %p302
    %p304 = pneg %p303
    // Predicated region
    $region9: #{dc_bilstm_forward.5} parent=5 // pred_check
      _
    $region10: #{dc_bilstm_forward.5} parent=5 // pred_check_branch
      %306 = sbr.rel (%p303) target = $region12
    $region11: #{dc_bilstm_forward.5} parent=5 // pred_region
      %s307 = ssub.s32 %s17, 1
      // Predicated region
      $region13: #{dc_bilstm_forward.5} parent=11 // pred_check
        %p308 = pneg %p38
      $region14: #{dc_bilstm_forward.5} parent=11 // pred_check_branch
        %310 = sbr.rel (%p308) target = $region16
      $region15: #{dc_bilstm_forward.5} parent=11 // pred_region
        _
      $region16: #{dc_bilstm_forward.5} parent=11 // pred_fallthru
        _
      // Predicated region
      $region17: #{dc_bilstm_forward.5} parent=11 // pred_check
        %p311 = pneg %p59
      $region18: #{dc_bilstm_forward.5} parent=11 // pred_check_branch
        %313 = sbr.rel (%p311) target = $region20
      $region19: #{dc_bilstm_forward.5} parent=11 // pred_region
        _
      $region20: #{dc_bilstm_forward.5} parent=11 // pred_fallthru
        _
    $region12: #{dc_bilstm_forward.5} parent=5 // pred_fallthru
      _
    %p314 = scmp.lt.s32.totalorder %s17, 2
    // Predicated region
    $region21: #{dc_bilstm_forward.5} parent=5 // pred_check
      %p315 = pneg %p314
    $region22: #{dc_bilstm_forward.5} parent=5 // pred_check_branch
      %317 = sbr.rel (%p315) target = $region24
    $region23: #{dc_bilstm_forward.5} parent=5 // pred_region
      // Predicated region
      $region25: #{dc_bilstm_forward.5} parent=23 // pred_check
        %p318 = pneg %p79
      $region26: #{dc_bilstm_forward.5} parent=23 // pred_check_branch
        %320 = sbr.rel (%p318) target = $region28
      $region27: #{dc_bilstm_forward.5} parent=23 // pred_region
        %p321 = scmp.lt.s32.totalorder %s17, 1
        %s322 = scalar_select %p321, %s17, 1
        %s323 = smul.addr %s322, 8
        %s324 = smul.addr %s323, 4
        %s325 = scalar_lea.vmem %s2, %s324
      $region28: #{dc_bilstm_forward.5} parent=23 // pred_fallthru
        _
      // Predicated region
      $region29: #{dc_bilstm_forward.5} parent=23 // pred_check
        %p326 = pneg %p105
      $region30: #{dc_bilstm_forward.5} parent=23 // pred_check_branch
        %328 = sbr.rel (%p326) target = $region32
      $region31: #{dc_bilstm_forward.5} parent=23 // pred_region
        %p329 = scmp.lt.s32.totalorder %s17, 1
        %s330 = scalar_select %p329, %s17, 1
        %s331 = smul.addr %s330, 6
        %s332 = smul.addr %s331, 4
        %s333 = scalar_lea.vmem %s3, %s332
      $region32: #{dc_bilstm_forward.5} parent=23 // pred_fallthru
        _
      // Predicated region
      $region33: #{dc_bilstm_forward.5} parent=23 // pred_check
        %p334 = pneg %p131
      $region34: #{dc_bilstm_forward.5} parent=23 // pred_check_branch
        %336 = sbr.rel (%p334) target = $region36
      $region35: #{dc_bilstm_forward.5} parent=23 // pred_region
        %p337 = scmp.lt.s32.totalorder %s17, 1
        %s338 = scalar_select %p337, %s17, 1
        %s339 = smul.addr %s338, 4
        %s340 = smul.addr %s339, 4
        %s341 = scalar_lea.vmem %s4, %s340
      $region36: #{dc_bilstm_forward.5} parent=23 // pred_fallthru
        _
      // Predicated region
      $region37: #{dc_bilstm_forward.5} parent=23 // pred_check
        %p342 = pneg %p157
      $region38: #{dc_bilstm_forward.5} parent=23 // pred_check_branch
        %344 = sbr.rel (%p342) target = $region40
      $region39: #{dc_bilstm_forward.5} parent=23 // pred_region
        %p345 = scmp.lt.s32.totalorder %s17, 1
        %s346 = scalar_select %p345, %s17, 1
        %s347 = scalar_lea.vmem %s5, %s346
      $region40: #{dc_bilstm_forward.5} parent=23 // pred_fallthru
        _
      // Predicated region
      $region41: #{dc_bilstm_forward.5} parent=23 // pred_check
        %p348 = pneg %p183
      $region42: #{dc_bilstm_forward.5} parent=23 // pred_check_branch
        %350 = sbr.rel (%p348) target = $region44
      $region43: #{dc_bilstm_forward.5} parent=23 // pred_region
        %p351 = scmp.lt.s32.totalorder %s17, 1
        %s352 = scalar_select %p351, %s17, 1
        %s353 = smul.addr %s352, 2
        %s354 = scalar_lea.vmem %s6, %s353
      $region44: #{dc_bilstm_forward.5} parent=23 // pred_fallthru
        _
      // Predicated region
      $region45: #{dc_bilstm_forward.5} parent=23 // pred_check
        %p355 = pneg %p209
      $region46: #{dc_bilstm_forward.5} parent=23 // pred_check_branch
        %357 = sbr.rel (%p355) target = $region48
      $region47: #{dc_bilstm_forward.5} parent=23 // pred_region
        %p358 = scmp.lt.s32.totalorder %s17, 1
        %s359 = scalar_select %p358, %s17, 1
        %s360 = smul.addr %s359, 2
        %s361 = scalar_lea.vmem %s7, %s360
      $region48: #{dc_bilstm_forward.5} parent=23 // pred_fallthru
        _
    $region24: #{dc_bilstm_forward.5} parent=5 // pred_fallthru
      _
    %p362 = scmp.le.s32.totalorder 1, %s17
    %p363 = scmp.lt.s32.totalorder %s17, 3
    %p364 = pnand %p362, %p363
    %p365 = pneg %p364
    // Predicated region
    $region49: #{dc_bilstm_forward.5} parent=5 // pred_check
      _
    $region50: #{dc_bilstm_forward.5} parent=5 // pred_check_branch
      %367 = sbr.rel (%p364) target = $region52
    $region51: #{dc_bilstm_forward.5} parent=5 // pred_region
      %s368 = ssub.s32 %s17, 1
      %p369 = pneg %p38
      %p370 = pneg %p35
      %p371 = pneg %p59
      %p372 = pneg %p56
      %p373 = scmp.lt.s32.totalorder %s22, 1
      %s374 = scalar_select %p373, %s22, 1
      %s375 = smul.addr %s374, 8
      %s376 = smul.addr %s375, 4
      %s377 = scalar_lea.vmem %s2, %s376
      %p378 = pneg %p85
      %p379 = pneg %p82
      %p380 = scmp.lt.s32.totalorder %s22, 1
      %s381 = scalar_select %p380, %s22, 1
      %s382 = smul.addr %s381, 6
      %s383 = smul.addr %s382, 4
      %s384 = scalar_lea.vmem %s3, %s383
      %p385 = pneg %p111
      %p386 = pneg %p108
      %p387 = scmp.lt.s32.totalorder %s22, 1
      %s388 = scalar_select %p387, %s22, 1
      %s389 = smul.addr %s388, 4
      %s390 = smul.addr %s389, 4
      %s391 = scalar_lea.vmem %s4, %s390
      %p392 = pneg %p137
      %p393 = pneg %p134
      %p394 = scmp.lt.s32.totalorder %s22, 1
      %s395 = scalar_select %p394, %s22, 1
      %s396 = scalar_lea.vmem %s5, %s395
      %p397 = pneg %p163
      %p398 = pneg %p160
      %p399 = scmp.lt.s32.totalorder %s22, 1
      %s400 = scalar_select %p399, %s22, 1
      %s401 = smul.addr %s400, 2
      %s402 = scalar_lea.vmem %s6, %s401
      %p403 = pneg %p189
      %p404 = pneg %p186
      %p405 = scmp.lt.s32.totalorder %s22, 1
      %s406 = scalar_select %p405, %s22, 1
      %s407 = smul.addr %s406, 2
      %s408 = scalar_lea.vmem %s7, %s407
      %p409 = pneg %p215
      %p410 = pneg %p212
      %p411 = pneg %p241
      %p412 = pneg %p238
      %p413 = scmp.lt.s32.totalorder %s22, 1
      %s414 = scalar_select %p413, %s22, 1
      %s415 = smul.addr %s414, 8
      %s416 = smul.addr %s415, 2
      %s417 = scalar_lea.vmem %s8, %s416
      %p418 = pneg %p267
      %p419 = pneg %p264
      %p420 = scmp.lt.s32.totalorder %s22, 1
      %s421 = scalar_select %p420, %s22, 1
      %s422 = smul.addr %s421, 2
      %s423 = scalar_lea.vmem %s9, %s422
      %p424 = pneg %p293
      %p425 = pneg %p290
      %p426 = scmp.lt.s32.totalorder %s22, 1
      %s427 = scalar_select %p426, %s22, 1
      %s428 = smul.addr %s427, 2
      %s429 = scalar_lea.vmem %s10, %s428
      %p430 = scmp.lt.s32.totalorder %s22, 1
      %s431 = scalar_select %p430, %s22, 1
      %s432 = smul.addr %s431, 8
      %s433 = smul.addr %s432, 4
      %s434 = scalar_lea.vmem %s2, %s433
      %p435 = scmp.lt.s32.totalorder %s22, 1
      %s436 = scalar_select %p435, %s22, 1
      %s437 = smul.addr %s436, 6
      %s438 = smul.addr %s437, 4
      %s439 = scalar_lea.vmem %s3, %s438
      %p440 = scmp.lt.s32.totalorder %s22, 1
      %s441 = scalar_select %p440, %s22, 1
      %s442 = smul.addr %s441, 4
      %s443 = smul.addr %s442, 4
      %s444 = scalar_lea.vmem %s4, %s443
      %p445 = scmp.lt.s32.totalorder %s22, 1
      %s446 = scalar_select %p445, %s22, 1
      %s447 = scalar_lea.vmem %s5, %s446
      %p448 = scmp.lt.s32.totalorder %s22, 1
      %s449 = scalar_select %p448, %s22, 1
      %s450 = smul.addr %s449, 2
      %s451 = scalar_lea.vmem %s6, %s450
      %p452 = scmp.lt.s32.totalorder %s22, 1
      %s453 = scalar_select %p452, %s22, 1
      %s454 = smul.addr %s453, 2
      %s455 = scalar_lea.vmem %s7, %s454
      %p456 = scmp.lt.s32.totalorder %s22, 1
      %s457 = scalar_select %p456, %s22, 1
      %s458 = smul.addr %s457, 8
      %s459 = smul.addr %s458, 2
      %s460 = scalar_lea.vmem %s8, %s459
      %p461 = scmp.lt.s32.totalorder %s22, 1
      %s462 = scalar_select %p461, %s22, 1
      %s463 = smul.addr %s462, 2
      %s464 = scalar_lea.vmem %s9, %s463
      %p465 = scmp.lt.s32.totalorder %s22, 1
      %s466 = scalar_select %p465, %s22, 1
      %s467 = smul.addr %s466, 2
      %s468 = scalar_lea.vmem %s10, %s467
      %v470 = vld [vmem:[%s434] sm:$0xf]
      %v471 = vld [vmem:[%s434 + $0x4] sm:$0xf]
      %v472 = vld [vmem:[%s434 + $0x8] sm:$0xf]
      %v473 = vld [vmem:[%s434 + $0xc] sm:$0xf]
      %v474 = vld [vmem:[%s434 + $0x10] sm:$0xf]
      %v475 = vld [vmem:[%s434 + $0x14] sm:$0xf]
      %v476 = vld [vmem:[%s434 + $0x18] sm:$0xf]
      %v477 = vld [vmem:[%s434 + $0x1c] sm:$0xf]
      %v478 = vld [vmem:[%s0] sm:$0xff]
      %v479 = vld [vmem:[%s0 + $0x8] sm:$0xff]
      %v480 = vpack.c.bf16 %v479, %v478
      %s481 = scalar_lea.vmem %s0, 16
      %v482 = vld [vmem:[%s481] sm:$0xff]
      %v483 = vld [vmem:[%s481 + $0x8] sm:$0xff]
      %v484 = vpack.c.bf16 %v483, %v482
      %v489 = vunpack.c.l.b16 %v474
      %v490 = vunpack.c.l.b16 %v475
      %v491 = vunpack.c.l.b16 %v476
      %v492 = vunpack.c.l.b16 %v477
      %v493 = vpack.c.b16 %v490, %v489
      %v494 = vpack.c.b16 %v492, %v491
      %vm497 = vcmask 261120
      %v499 = vsel %vm497, %v484, 0
      %501 = vmatpush.bf16.msra.mxu0 0
      %502 = vmatpush.bf16.msra.mxu0 0
      %503 = vmatpush.bf16.msra.mxu0 0
      %504 = vmatpush.bf16.msra.mxu0 0
      %505 = vmatpush.bf16.msra.mxu0 0
      %506 = vmatpush.bf16.msra.mxu0 0
      %507 = vmatpush.bf16.msra.mxu0 %v494
      %508 = vmatpush.bf16.msra.mxu0 %v493
      %509 = vmatmul.bf16.gmra.mxu0 %v499
      %v510 = vpop.f32.mrf.mxu0
      %v511 = vadd.f32 0.0, %v510
      %v512 = vpop.f32.mrf.mxu0
      %v513 = vadd.f32 0.0, %v512
      %514 = vdwg.mxu0
      %v519 = vunpack.c.l.b16 %v470
      %v520 = vunpack.c.l.b16 %v471
      %v521 = vunpack.c.l.b16 %v472
      %v522 = vunpack.c.l.b16 %v473
      %v523 = vpack.c.b16 %v520, %v519
      %v524 = vpack.c.b16 %v522, %v521
      %v528 = vsel %vm497, %v480, 0
      %530 = vmatpush.bf16.msra.mxu0 0
      %531 = vmatpush.bf16.msra.mxu0 0
      %532 = vmatpush.bf16.msra.mxu0 0
      %533 = vmatpush.bf16.msra.mxu0 0
      %534 = vmatpush.bf16.msra.mxu0 0
      %535 = vmatpush.bf16.msra.mxu0 0
      %536 = vmatpush.bf16.msra.mxu0 %v524
      %537 = vmatpush.bf16.msra.mxu0 %v523
      %538 = vmatmul.bf16.gmra.mxu0 %v528
      %v539 = vpop.f32.mrf.mxu0
      %v540 = vadd.f32 %v511, %v539
      %v541 = vpop.f32.mrf.mxu0
      %v542 = vadd.f32 %v513, %v541
      %543 = vdwg.mxu0
      %v544 = vld [vmem:[%s439] sm:$0xf]
      %v545 = vld [vmem:[%s439 + $0x4] sm:$0xf]
      %v546 = vld [vmem:[%s439 + $0x8] sm:$0xf]
      %v547 = vld [vmem:[%s439 + $0xc] sm:$0xf]
      %v548 = vld [vmem:[%s439 + $0x10] sm:$0xf]
      %v549 = vld [vmem:[%s439 + $0x14] sm:$0xf]
      %v550 = vld [vmem:[%s1] sm:$0xff]
      %v551 = vld [vmem:[%s1 + $0x8] sm:$0xff]
      %v552 = vpack.c.bf16 %v551, %v550
      %v559 = vunpack.c.l.b16 %v544
      %v560 = vunpack.c.l.b16 %v545
      %v561 = vunpack.c.l.b16 %v546
      %v562 = vunpack.c.l.b16 %v547
      %v563 = vunpack.c.l.b16 %v548
      %v564 = vunpack.c.l.b16 %v549
      %v565 = vpack.c.b16 %v560, %v559
      %v566 = vpack.c.b16 %v562, %v561
      %v567 = vpack.c.b16 %v564, %v563
      %vm571 = vcmask 392192
      %v573 = vsel %vm571, %v552, 0
      %575 = vmatpush.bf16.msra.mxu0 0
      %576 = vmatpush.bf16.msra.mxu0 0
      %577 = vmatpush.bf16.msra.mxu0 0
      %578 = vmatpush.bf16.msra.mxu0 0
      %579 = vmatpush.bf16.msra.mxu0 0
      %580 = vmatpush.bf16.msra.mxu0 %v567
      %581 = vmatpush.bf16.msra.mxu0 %v566
      %582 = vmatpush.bf16.msra.mxu0 %v565
      %583 = vmatmul.bf16.gmra.mxu0 %v573
      %v584 = vpop.f32.mrf.mxu0
      %v585 = vadd.f32 0.0, %v584
      %v586 = vpop.f32.mrf.mxu0
      %v587 = vadd.f32 0.0, %v586
      %588 = vdwg.mxu0
      %v589 = vadd.f32 %v540, %v585
      %v590 = vadd.f32 %v542, %v587
      %v591 = vld [vmem:[%s447] sm:$0x1]
      %v593 = vperm.slane %v591, 0
      %v595 = vadd.f32 %v589, %v593
      %v596 = vadd.f32 %v590, %v593
      %597 = vst [vmem:[#allocation2] sm:$0x3] %v595
      %s598 = scalar_lea.vmem [#allocation2], 2
      %599 = vst [vmem:[%s598 - $0x2] sm:$0xc] %v595
      %s600 = scalar_lea.vmem [#allocation2], 4
      %601 = vst [vmem:[%s600 - $0x4] sm:$0x30] %v595
      %s602 = scalar_lea.vmem [#allocation2], 6
      %603 = vst [vmem:[%s602 - $0x6] sm:$0xc0] %v595
      %s604 = scalar_lea.vmem [#allocation2], 8
      %605 = vst [vmem:[%s604] sm:$0x3] %v596
      %s606 = scalar_lea.vmem [#allocation2], 10
      %607 = vst [vmem:[%s606 - $0x2] sm:$0xc] %v596
      %s608 = scalar_lea.vmem [#allocation2], 12
      %609 = vst [vmem:[%s608 - $0x4] sm:$0x30] %v596
      %s610 = scalar_lea.vmem [#allocation2], 14
      %611 = vst [vmem:[%s610 - $0x6] sm:$0xc0] %v596
      %v612 = vld [vmem:[%s444] sm:$0xf]
      %v613 = vld [vmem:[%s444 + $0x4] sm:$0xf]
      %v614 = vld [vmem:[%s444 + $0x8] sm:$0xf]
      %v615 = vld [vmem:[%s444 + $0xc] sm:$0xf]
      %v616 = vld [vmem:[%s451] sm:$0x3]
      %v617 = vld [vmem:[%s455] sm:$0x3]
      %s618 = smul.u32 %s22, 7
      %s619 = smul.u32 %s618, 2
      %s620 = scalar_lea.vmem [#allocation2], %s619
      %v621 = vld [vmem:[%s620] sm:$0x3]
      %v622 = vpack.c.bf16 %v616, %v616
      %v627 = vunpack.c.l.b16 %v612
      %v628 = vunpack.c.l.b16 %v613
      %v629 = vunpack.c.l.b16 %v614
      %v630 = vunpack.c.l.b16 %v615
      %v631 = vpack.c.b16 %v628, %v627
      %v632 = vpack.c.b16 %v630, %v629
      %v636 = vsel %vm497, %v622, 0
      %638 = vmatpush.bf16.msra.mxu0 0
      %639 = vmatpush.bf16.msra.mxu0 0
      %640 = vmatpush.bf16.msra.mxu0 0
      %641 = vmatpush.bf16.msra.mxu0 0
      %642 = vmatpush.bf16.msra.mxu0 0
      %643 = vmatpush.bf16.msra.mxu0 0
      %644 = vmatpush.bf16.msra.mxu0 %v632
      %645 = vmatpush.bf16.msra.mxu0 %v631
      %646 = vmatmul.bf16.gmra.mxu0 %v636
      %v647 = vpop.f32.mrf.mxu0
      %v648 = vadd.f32 0.0, %v647
      %v649 = vpop.f32.mrf.mxu0
      %650 = vdwg.mxu0
      %v651 = vadd.f32 %v621, %v648
      %v652 = vxor.u32 %v651, 2147483648
      %v653 = vmul.f32 %v652, 1.442695
      %v654 = vpow.pop %v653
      %v655 = vadd.f32 %v654, 1.0
      %v656 = vrcp.pop %v655
      %v657 = vmul.f32 %v655, %v656
      %v658 = vsub.f32 1.0, %v657
      %v659 = vmul.f32 %v656, %v658
      %v660 = vadd.f32 %v656, %v659
      %vm661 = vweird.f32 %v655
      %vm662 = vweird.f32 %v656
      %vm663 = vmor %vm661, %vm662
      %v664 = vsel %vm663, %v656, %v660
      %v665 = vand.u32 2147483647, %v655
      %vm666 = vcmp.eq.f32.partialorder %v665, 8.507059e+37
      %v667 = vand.u32 %v655, 2147483648
      %v668 = vor.u32 1.1754944e-38, %v667
      %v669 = vsel %vm666, %v668, %v664
      %v670 = vmul.f32 1.0, %v669
      %v671 = vtanh.pop %v651
      %673 = vrot.lane.b32.xlu0 %v617, 32
      %v674 = vpop.permute.xlu0 %673
      %v676 = vmul.f32 %v670, %v674
      %678 = vrot.lane.b32.xlu0 %v671, 64
      %v679 = vpop.permute.xlu0 %678
      %v681 = vmul.f32 %v670, %v679
      %683 = vrot.lane.b32.xlu0 %v681, 32
      %v684 = vpop.permute.xlu0 %683
      %v686 = vadd.f32 %v676, %v684
      %v687 = vtanh.pop %v686
      %689 = vrot.lane.b32.xlu0 %v687, 64
      %v690 = vpop.permute.xlu0 %689
      %v692 = vmul.f32 %v670, %v690
      %694 = vrot.lane.b32.xlu0 %v692, 32
      %v695 = vpop.permute.xlu0 %694
      %s697 = scalar_lea.vmem %s460, %s619
      %vm698 = vcmask 254976
      %699 = vst.msk [vmem:[%s697] sm:$0x3] %vm698, %v695
      %s700 = smul.u32 %s22, 5
      %s701 = sadd.s32 %s700, 1
      %s702 = smul.u32 %s701, 2
      %s703 = scalar_lea.vmem [#allocation2], %s702
      %v704 = vld [vmem:[%s703] sm:$0x3]
      %v705 = vpack.c.bf16 %v692, %v692
      %707 = vrot.lane.b32.xlu0 %v705, 32
      %v708 = vpop.permute.xlu0 %707
      %v710 = vsel %vm497, %v708, 0
      %712 = vmatpush.bf16.msra.mxu0 0
      %713 = vmatpush.bf16.msra.mxu0 0
      %714 = vmatpush.bf16.msra.mxu0 0
      %715 = vmatpush.bf16.msra.mxu0 0
      %716 = vmatpush.bf16.msra.mxu0 0
      %717 = vmatpush.bf16.msra.mxu0 0
      %718 = vmatpush.bf16.msra.mxu0 %v632
      %719 = vmatpush.bf16.msra.mxu0 %v631
      %720 = vmatmul.bf16.gmra.mxu0 %v710
      %v721 = vpop.f32.mrf.mxu0
      %v722 = vadd.f32 0.0, %v721
      %v723 = vpop.f32.mrf.mxu0
      %724 = vdwg.mxu0
      %v725 = vadd.f32 %v704, %v722
      %v726 = vxor.u32 %v725, 2147483648
      %v727 = vmul.f32 %v726, 1.442695
      %v728 = vpow.pop %v727
      %v729 = vadd.f32 %v728, 1.0
      %v730 = vrcp.pop %v729
      %v731 = vmul.f32 %v729, %v730
      %v732 = vsub.f32 1.0, %v731
      %v733 = vmul.f32 %v730, %v732
      %v734 = vadd.f32 %v730, %v733
      %vm735 = vweird.f32 %v729
      %vm736 = vweird.f32 %v730
      %vm737 = vmor %vm735, %vm736
      %v738 = vsel %vm737, %v730, %v734
      %v739 = vand.u32 2147483647, %v729
      %vm740 = vcmp.eq.f32.partialorder %v739, 8.507059e+37
      %v741 = vand.u32 %v729, 2147483648
      %v742 = vor.u32 1.1754944e-38, %v741
      %v743 = vsel %vm740, %v742, %v738
      %v744 = vmul.f32 1.0, %v743
      %v745 = vtanh.pop %v725
      %v746 = vmul.f32 %v744, %v686
      %748 = vrot.lane.b32.xlu0 %v745, 64
      %v749 = vpop.permute.xlu0 %748
      %v751 = vmul.f32 %v744, %v749
      %753 = vrot.lane.b32.xlu0 %v751, 32
      %v754 = vpop.permute.xlu0 %753
      %v756 = vadd.f32 %v746, %v754
      %v757 = vtanh.pop %v756
      %759 = vrot.lane.b32.xlu0 %v757, 64
      %v760 = vpop.permute.xlu0 %759
      %v762 = vmul.f32 %v744, %v760
      %764 = vrot.lane.b32.xlu0 %v762, 32
      %v765 = vpop.permute.xlu0 %764
      %s767 = scalar_lea.vmem %s460, %s702
      %768 = vst.msk [vmem:[%s767] sm:$0x3] %vm698, %v765
      %s769 = smul.u32 %s22, 3
      %s770 = sadd.s32 %s769, 2
      %s771 = smul.u32 %s770, 2
      %s772 = scalar_lea.vmem [#allocation2], %s771
      %v773 = vld [vmem:[%s772] sm:$0x3]
      %v774 = vpack.c.bf16 %v762, %v762
      %776 = vrot.lane.b32.xlu0 %v774, 32
      %v777 = vpop.permute.xlu0 %776
      %v779 = vsel %vm497, %v777, 0
      %781 = vmatpush.bf16.msra.mxu0 0
      %782 = vmatpush.bf16.msra.mxu0 0
      %783 = vmatpush.bf16.msra.mxu0 0
      %784 = vmatpush.bf16.msra.mxu0 0
      %785 = vmatpush.bf16.msra.mxu0 0
      %786 = vmatpush.bf16.msra.mxu0 0
      %787 = vmatpush.bf16.msra.mxu0 %v632
      %788 = vmatpush.bf16.msra.mxu0 %v631
      %789 = vmatmul.bf16.gmra.mxu0 %v779
      %v790 = vpop.f32.mrf.mxu0
      %v791 = vadd.f32 0.0, %v790
      %v792 = vpop.f32.mrf.mxu0
      %793 = vdwg.mxu0
      %v794 = vadd.f32 %v773, %v791
      %v795 = vxor.u32 %v794, 2147483648
      %v796 = vmul.f32 %v795, 1.442695
      %v797 = vpow.pop %v796
      %v798 = vadd.f32 %v797, 1.0
      %v799 = vrcp.pop %v798
      %v800 = vmul.f32 %v798, %v799
      %v801 = vsub.f32 1.0, %v800
      %v802 = vmul.f32 %v799, %v801
      %v803 = vadd.f32 %v799, %v802
      %vm804 = vweird.f32 %v798
      %vm805 = vweird.f32 %v799
      %vm806 = vmor %vm804, %vm805
      %v807 = vsel %vm806, %v799, %v803
      %v808 = vand.u32 2147483647, %v798
      %vm809 = vcmp.eq.f32.partialorder %v808, 8.507059e+37
      %v810 = vand.u32 %v798, 2147483648
      %v811 = vor.u32 1.1754944e-38, %v810
      %v812 = vsel %vm809, %v811, %v807
      %v813 = vmul.f32 1.0, %v812
      %v814 = vtanh.pop %v794
      %v815 = vmul.f32 %v813, %v756
      %817 = vrot.lane.b32.xlu0 %v814, 64
      %v818 = vpop.permute.xlu0 %817
      %v820 = vmul.f32 %v813, %v818
      %822 = vrot.lane.b32.xlu0 %v820, 32
      %v823 = vpop.permute.xlu0 %822
      %v825 = vadd.f32 %v815, %v823
      %v826 = vtanh.pop %v825
      %828 = vrot.lane.b32.xlu0 %v826, 64
      %v829 = vpop.permute.xlu0 %828
      %v831 = vmul.f32 %v813, %v829
      %833 = vrot.lane.b32.xlu0 %v831, 32
      %v834 = vpop.permute.xlu0 %833
      %s836 = scalar_lea.vmem %s460, %s771
      %837 = vst.msk [vmem:[%s836] sm:$0x3] %vm698, %v834
      %s838 = sadd.s32 %s22, 3
      %s839 = smul.u32 %s838, 2
      %s840 = scalar_lea.vmem [#allocation2], %s839
      %v841 = vld [vmem:[%s840] sm:$0x3]
      %v842 = vpack.c.bf16 %v831, %v831
      %844 = vrot.lane.b32.xlu0 %v842, 32
      %v845 = vpop.permute.xlu0 %844
      %v847 = vsel %vm497, %v845, 0
      %849 = vmatpush.bf16.msra.mxu0 0
      %850 = vmatpush.bf16.msra.mxu0 0
      %851 = vmatpush.bf16.msra.mxu0 0
      %852 = vmatpush.bf16.msra.mxu0 0
      %853 = vmatpush.bf16.msra.mxu0 0
      %854 = vmatpush.bf16.msra.mxu0 0
      %855 = vmatpush.bf16.msra.mxu0 %v632
      %856 = vmatpush.bf16.msra.mxu0 %v631
      %857 = vmatmul.bf16.gmra.mxu0 %v847
      %v858 = vpop.f32.mrf.mxu0
      %v859 = vadd.f32 0.0, %v858
      %v860 = vpop.f32.mrf.mxu0
      %861 = vdwg.mxu0
      %v862 = vadd.f32 %v841, %v859
      %v863 = vxor.u32 %v862, 2147483648
      %v864 = vmul.f32 %v863, 1.442695
      %v865 = vpow.pop %v864
      %v866 = vadd.f32 %v865, 1.0
      %v867 = vrcp.pop %v866
      %v868 = vmul.f32 %v866, %v867
      %v869 = vsub.f32 1.0, %v868
      %v870 = vmul.f32 %v867, %v869
      %v871 = vadd.f32 %v867, %v870
      %vm872 = vweird.f32 %v866
      %vm873 = vweird.f32 %v867
      %vm874 = vmor %vm872, %vm873
      %v875 = vsel %vm874, %v867, %v871
      %v876 = vand.u32 2147483647, %v866
      %vm877 = vcmp.eq.f32.partialorder %v876, 8.507059e+37
      %v878 = vand.u32 %v866, 2147483648
      %v879 = vor.u32 1.1754944e-38, %v878
      %v880 = vsel %vm877, %v879, %v875
      %v881 = vmul.f32 1.0, %v880
      %v882 = vtanh.pop %v862
      %v883 = vmul.f32 %v881, %v825
      %885 = vrot.lane.b32.xlu0 %v882, 64
      %v886 = vpop.permute.xlu0 %885
      %v888 = vmul.f32 %v881, %v886
      %890 = vrot.lane.b32.xlu0 %v888, 32
      %v891 = vpop.permute.xlu0 %890
      %v893 = vadd.f32 %v883, %v891
      %v894 = vtanh.pop %v893
      %896 = vrot.lane.b32.xlu0 %v894, 64
      %v897 = vpop.permute.xlu0 %896
      %v899 = vmul.f32 %v881, %v897
      %901 = vrot.lane.b32.xlu0 %v899, 32
      %v902 = vpop.permute.xlu0 %901
      %s904 = scalar_lea.vmem %s460, %s839
      %905 = vst.msk [vmem:[%s904] sm:$0x3] %vm698, %v902
      %s906 = ssub.s32 4, %s22
      %s907 = smul.u32 %s906, 2
      %s908 = scalar_lea.vmem [#allocation2], %s907
      %v909 = vld [vmem:[%s908] sm:$0x3]
      %v910 = vpack.c.bf16 %v899, %v899
      %912 = vrot.lane.b32.xlu0 %v910, 32
      %v913 = vpop.permute.xlu0 %912
      %v915 = vsel %vm497, %v913, 0
      %917 = vmatpush.bf16.msra.mxu0 0
      %918 = vmatpush.bf16.msra.mxu0 0
      %919 = vmatpush.bf16.msra.mxu0 0
      %920 = vmatpush.bf16.msra.mxu0 0
      %921 = vmatpush.bf16.msra.mxu0 0
      %922 = vmatpush.bf16.msra.mxu0 0
      %923 = vmatpush.bf16.msra.mxu0 %v632
      %924 = vmatpush.bf16.msra.mxu0 %v631
      %925 = vmatmul.bf16.gmra.mxu0 %v915
      %v926 = vpop.f32.mrf.mxu0
      %v927 = vadd.f32 0.0, %v926
      %v928 = vpop.f32.mrf.mxu0
      %929 = vdwg.mxu0
      %v930 = vadd.f32 %v909, %v927
      %v931 = vxor.u32 %v930, 2147483648
      %v932 = vmul.f32 %v931, 1.442695
      %v933 = vpow.pop %v932
      %v934 = vadd.f32 %v933, 1.0
      %v935 = vrcp.pop %v934
      %v936 = vmul.f32 %v934, %v935
      %v937 = vsub.f32 1.0, %v936
      %v938 = vmul.f32 %v935, %v937
      %v939 = vadd.f32 %v935, %v938
      %vm940 = vweird.f32 %v934
      %vm941 = vweird.f32 %v935
      %vm942 = vmor %vm940, %vm941
      %v943 = vsel %vm942, %v935, %v939
      %v944 = vand.u32 2147483647, %v934
      %vm945 = vcmp.eq.f32.partialorder %v944, 8.507059e+37
      %v946 = vand.u32 %v934, 2147483648
      %v947 = vor.u32 1.1754944e-38, %v946
      %v948 = vsel %vm945, %v947, %v943
      %v949 = vmul.f32 1.0, %v948
      %v950 = vtanh.pop %v930
      %v951 = vmul.f32 %v949, %v893
      %953 = vrot.lane.b32.xlu0 %v950, 64
      %v954 = vpop.permute.xlu0 %953
      %v956 = vmul.f32 %v949, %v954
      %958 = vrot.lane.b32.xlu0 %v956, 32
      %v959 = vpop.permute.xlu0 %958
      %v961 = vadd.f32 %v951, %v959
      %v962 = vtanh.pop %v961
      %964 = vrot.lane.b32.xlu0 %v962, 64
      %v965 = vpop.permute.xlu0 %964
      %v967 = vmul.f32 %v949, %v965
      %969 = vrot.lane.b32.xlu0 %v967, 32
      %v970 = vpop.permute.xlu0 %969
      %s972 = scalar_lea.vmem %s460, %s907
      %973 = vst.msk [vmem:[%s972] sm:$0x3] %vm698, %v970
      %s974 = smul.u32 %s22, 4294967293
      %s975 = sadd.s32 %s974, 5
      %s976 = smul.u32 %s975, 2
      %s977 = scalar_lea.vmem [#allocation2], %s976
      %v978 = vld [vmem:[%s977] sm:$0x3]
      %v979 = vpack.c.bf16 %v967, %v967
      %981 = vrot.lane.b32.xlu0 %v979, 32
      %v982 = vpop.permute.xlu0 %981
      %v984 = vsel %vm497, %v982, 0
      %986 = vmatpush.bf16.msra.mxu0 0
      %987 = vmatpush.bf16.msra.mxu0 0
      %988 = vmatpush.bf16.msra.mxu0 0
      %989 = vmatpush.bf16.msra.mxu0 0
      %990 = vmatpush.bf16.msra.mxu0 0
      %991 = vmatpush.bf16.msra.mxu0 0
      %992 = vmatpush.bf16.msra.mxu0 %v632
      %993 = vmatpush.bf16.msra.mxu0 %v631
      %994 = vmatmul.bf16.gmra.mxu0 %v984
      %v995 = vpop.f32.mrf.mxu0
      %v996 = vadd.f32 0.0, %v995
      %v997 = vpop.f32.mrf.mxu0
      %998 = vdwg.mxu0
      %v999 = vadd.f32 %v978, %v996
      %v1000 = vxor.u32 %v999, 2147483648
      %v1001 = vmul.f32 %v1000, 1.442695
      %v1002 = vpow.pop %v1001
      %v1003 = vadd.f32 %v1002, 1.0
      %v1004 = vrcp.pop %v1003
      %v1005 = vmul.f32 %v1003, %v1004
      %v1006 = vsub.f32 1.0, %v1005
      %v1007 = vmul.f32 %v1004, %v1006
      %v1008 = vadd.f32 %v1004, %v1007
      %vm1009 = vweird.f32 %v1003
      %vm1010 = vweird.f32 %v1004
      %vm1011 = vmor %vm1009, %vm1010
      %v1012 = vsel %vm1011, %v1004, %v1008
      %v1013 = vand.u32 2147483647, %v1003
      %vm1014 = vcmp.eq.f32.partialorder %v1013, 8.507059e+37
      %v1015 = vand.u32 %v1003, 2147483648
      %v1016 = vor.u32 1.1754944e-38, %v1015
      %v1017 = vsel %vm1014, %v1016, %v1012
      %v1018 = vmul.f32 1.0, %v1017
      %v1019 = vtanh.pop %v999
      %v1020 = vmul.f32 %v1018, %v961
      %1022 = vrot.lane.b32.xlu0 %v1019, 64
      %v1023 = vpop.permute.xlu0 %1022
      %v1025 = vmul.f32 %v1018, %v1023
      %1027 = vrot.lane.b32.xlu0 %v1025, 32
      %v1028 = vpop.permute.xlu0 %1027
      %v1030 = vadd.f32 %v1020, %v1028
      %v1031 = vtanh.pop %v1030
      %1033 = vrot.lane.b32.xlu0 %v1031, 64
      %v1034 = vpop.permute.xlu0 %1033
      %v1036 = vmul.f32 %v1018, %v1034
      %1038 = vrot.lane.b32.xlu0 %v1036, 32
      %v1039 = vpop.permute.xlu0 %1038
      %s1041 = scalar_lea.vmem %s460, %s976
      %1042 = vst.msk [vmem:[%s1041] sm:$0x3] %vm698, %v1039
      %s1043 = smul.u32 %s22, 4294967291
      %s1044 = sadd.s32 %s1043, 6
      %s1045 = smul.u32 %s1044, 2
      %s1046 = scalar_lea.vmem [#allocation2], %s1045
      %v1047 = vld [vmem:[%s1046] sm:$0x3]
      %v1048 = vpack.c.bf16 %v1036, %v1036
      %1050 = vrot.lane.b32.xlu0 %v1048, 32
      %v1051 = vpop.permute.xlu0 %1050
      %v1053 = vsel %vm497, %v1051, 0
      %1055 = vmatpush.bf16.msra.mxu0 0
      %1056 = vmatpush.bf16.msra.mxu0 0
      %1057 = vmatpush.bf16.msra.mxu0 0
      %1058 = vmatpush.bf16.msra.mxu0 0
      %1059 = vmatpush.bf16.msra.mxu0 0
      %1060 = vmatpush.bf16.msra.mxu0 0
      %1061 = vmatpush.bf16.msra.mxu0 %v632
      %1062 = vmatpush.bf16.msra.mxu0 %v631
      %1063 = vmatmul.bf16.gmra.mxu0 %v1053
      %v1064 = vpop.f32.mrf.mxu0
      %v1065 = vadd.f32 0.0, %v1064
      %v1066 = vpop.f32.mrf.mxu0
      %1067 = vdwg.mxu0
      %v1068 = vadd.f32 %v1047, %v1065
      %v1069 = vxor.u32 %v1068, 2147483648
      %v1070 = vmul.f32 %v1069, 1.442695
      %v1071 = vpow.pop %v1070
      %v1072 = vadd.f32 %v1071, 1.0
      %v1073 = vrcp.pop %v1072
      %v1074 = vmul.f32 %v1072, %v1073
      %v1075 = vsub.f32 1.0, %v1074
      %v1076 = vmul.f32 %v1073, %v1075
      %v1077 = vadd.f32 %v1073, %v1076
      %vm1078 = vweird.f32 %v1072
      %vm1079 = vweird.f32 %v1073
      %vm1080 = vmor %vm1078, %vm1079
      %v1081 = vsel %vm1080, %v1073, %v1077
      %v1082 = vand.u32 2147483647, %v1072
      %vm1083 = vcmp.eq.f32.partialorder %v1082, 8.507059e+37
      %v1084 = vand.u32 %v1072, 2147483648
      %v1085 = vor.u32 1.1754944e-38, %v1084
      %v1086 = vsel %vm1083, %v1085, %v1081
      %v1087 = vmul.f32 1.0, %v1086
      %v1088 = vtanh.pop %v1068
      %v1089 = vmul.f32 %v1087, %v1030
      %1091 = vrot.lane.b32.xlu0 %v1088, 64
      %v1092 = vpop.permute.xlu0 %1091
      %v1094 = vmul.f32 %v1087, %v1092
      %1096 = vrot.lane.b32.xlu0 %v1094, 32
      %v1097 = vpop.permute.xlu0 %1096
      %v1099 = vadd.f32 %v1089, %v1097
      %v1100 = vtanh.pop %v1099
      %1102 = vrot.lane.b32.xlu0 %v1100, 64
      %v1103 = vpop.permute.xlu0 %1102
      %v1105 = vmul.f32 %v1087, %v1103
      %1107 = vrot.lane.b32.xlu0 %v1105, 32
      %v1108 = vpop.permute.xlu0 %1107
      %s1110 = scalar_lea.vmem %s460, %s1045
      %1111 = vst.msk [vmem:[%s1110] sm:$0x3] %vm698, %v1108
      %s1112 = smul.u32 %s22, 4294967289
      %s1113 = sadd.s32 %s1112, 7
      %s1114 = smul.u32 %s1113, 2
      %s1115 = scalar_lea.vmem [#allocation2], %s1114
      %v1116 = vld [vmem:[%s1115] sm:$0x3]
      %v1117 = vpack.c.bf16 %v1105, %v1105
      %1119 = vrot.lane.b32.xlu0 %v1117, 32
      %v1120 = vpop.permute.xlu0 %1119
      %v1122 = vsel %vm497, %v1120, 0
      %1124 = vmatpush.bf16.msra.mxu0 0
      %1125 = vmatpush.bf16.msra.mxu0 0
      %1126 = vmatpush.bf16.msra.mxu0 0
      %1127 = vmatpush.bf16.msra.mxu0 0
      %1128 = vmatpush.bf16.msra.mxu0 0
      %1129 = vmatpush.bf16.msra.mxu0 0
      %1130 = vmatpush.bf16.msra.mxu0 %v632
      %1131 = vmatpush.bf16.msra.mxu0 %v631
      %1132 = vmatmul.bf16.gmra.mxu0 %v1122
      %v1133 = vpop.f32.mrf.mxu0
      %v1134 = vadd.f32 0.0, %v1133
      %v1135 = vpop.f32.mrf.mxu0
      %1136 = vdwg.mxu0
      %v1137 = vadd.f32 %v1116, %v1134
      %v1138 = vxor.u32 %v1137, 2147483648
      %v1139 = vmul.f32 %v1138, 1.442695
      %v1140 = vpow.pop %v1139
      %v1141 = vadd.f32 %v1140, 1.0
      %v1142 = vrcp.pop %v1141
      %v1143 = vmul.f32 %v1141, %v1142
      %v1144 = vsub.f32 1.0, %v1143
      %v1145 = vmul.f32 %v1142, %v1144
      %v1146 = vadd.f32 %v1142, %v1145
      %vm1147 = vweird.f32 %v1141
      %vm1148 = vweird.f32 %v1142
      %vm1149 = vmor %vm1147, %vm1148
      %v1150 = vsel %vm1149, %v1142, %v1146
      %v1151 = vand.u32 2147483647, %v1141
      %vm1152 = vcmp.eq.f32.partialorder %v1151, 8.507059e+37
      %v1153 = vand.u32 %v1141, 2147483648
      %v1154 = vor.u32 1.1754944e-38, %v1153
      %v1155 = vsel %vm1152, %v1154, %v1150
      %v1156 = vmul.f32 1.0, %v1155
      %v1157 = vtanh.pop %v1137
      %v1158 = vmul.f32 %v1156, %v1099
      %1160 = vrot.lane.b32.xlu0 %v1157, 64
      %v1161 = vpop.permute.xlu0 %1160
      %v1163 = vmul.f32 %v1156, %v1161
      %1165 = vrot.lane.b32.xlu0 %v1163, 32
      %v1166 = vpop.permute.xlu0 %1165
      %v1168 = vadd.f32 %v1158, %v1166
      %v1169 = vtanh.pop %v1168
      %1171 = vrot.lane.b32.xlu0 %v1169, 64
      %v1172 = vpop.permute.xlu0 %1171
      %v1174 = vmul.f32 %v1156, %v1172
      %1176 = vrot.lane.b32.xlu0 %v1174, 32
      %v1177 = vpop.permute.xlu0 %1176
      %s1179 = scalar_lea.vmem %s460, %s1114
      %1180 = vst.msk [vmem:[%s1179] sm:$0x3] %vm698, %v1177
      %1181 = vst.msk [vmem:[%s464] sm:$0x3] %vm698, %v1177
      %1183 = vrot.lane.b32.xlu0 %v1168, 96
      %v1184 = vpop.permute.xlu0 %1183
      %1186 = vst.msk [vmem:[%s468] sm:$0x3] %vm698, %v1184
      %p1187 = scmp.lt.s32.totalorder %s22, 1
      %s1188 = scalar_select %p1187, %s22, 1
      %s1189 = smul.addr %s1188, 8
      %s1190 = smul.addr %s1189, 2
      %s1191 = scalar_lea.vmem %s8, %s1190
      %p1192 = scmp.lt.s32.totalorder %s22, 1
      %s1193 = scalar_select %p1192, %s22, 1
      %s1194 = smul.addr %s1193, 2
      %s1195 = scalar_lea.vmem %s9, %s1194
      %p1196 = scmp.lt.s32.totalorder %s22, 1
      %s1197 = scalar_select %p1196, %s22, 1
      %s1198 = smul.addr %s1197, 2
      %s1199 = scalar_lea.vmem %s10, %s1198
      // Predicated region
      $region53: #{dc_bilstm_forward.5} parent=51 // pred_check
        %p1200 = pneg %p238
      $region54: #{dc_bilstm_forward.5} parent=51 // pred_check_branch
        %1202 = sbr.rel (%p1200) target = $region56
      $region55: #{dc_bilstm_forward.5} parent=51 // pred_region
        _
      $region56: #{dc_bilstm_forward.5} parent=51 // pred_fallthru
        _
      // Predicated region
      $region57: #{dc_bilstm_forward.5} parent=51 // pred_check
        %p1203 = pneg %p264
      $region58: #{dc_bilstm_forward.5} parent=51 // pred_check_branch
        %1205 = sbr.rel (%p1203) target = $region60
      $region59: #{dc_bilstm_forward.5} parent=51 // pred_region
        _
      $region60: #{dc_bilstm_forward.5} parent=51 // pred_fallthru
        _
      // Predicated region
      $region61: #{dc_bilstm_forward.5} parent=51 // pred_check
        %p1206 = pneg %p290
      $region62: #{dc_bilstm_forward.5} parent=51 // pred_check_branch
        %1208 = sbr.rel (%p1206) target = $region64
      $region63: #{dc_bilstm_forward.5} parent=51 // pred_region
        _
      $region64: #{dc_bilstm_forward.5} parent=51 // pred_fallthru
        _
    $region52: #{dc_bilstm_forward.5} parent=5 // pred_fallthru
      _
    %p1209 = scmp.le.s32.totalorder 2, %s17
    // Predicated region
    $region65: #{dc_bilstm_forward.5} parent=5 // pred_check
      %p1210 = pneg %p1209
    $region66: #{dc_bilstm_forward.5} parent=5 // pred_check_branch
      %1212 = sbr.rel (%p1210) target = $region68
    $region67: #{dc_bilstm_forward.5} parent=5 // pred_region
      %s1213 = ssub.s32 %s17, 2
      // Predicated region
      $region69: #{dc_bilstm_forward.5} parent=67 // pred_check
        %p1214 = pneg %p244
      $region70: #{dc_bilstm_forward.5} parent=67 // pred_check_branch
        %1216 = sbr.rel (%p1214) target = $region72
      $region71: #{dc_bilstm_forward.5} parent=67 // pred_region
        %p1217 = scmp.lt.s32.totalorder %s23, 1
        %s1218 = scalar_select %p1217, %s23, 1
        %s1219 = smul.addr %s1218, 8
        %s1220 = smul.addr %s1219, 2
        %s1221 = scalar_lea.vmem %s8, %s1220
      $region72: #{dc_bilstm_forward.5} parent=67 // pred_fallthru
        _
      // Predicated region
      $region73: #{dc_bilstm_forward.5} parent=67 // pred_check
        %p1222 = pneg %p270
      $region74: #{dc_bilstm_forward.5} parent=67 // pred_check_branch
        %1224 = sbr.rel (%p1222) target = $region76
      $region75: #{dc_bilstm_forward.5} parent=67 // pred_region
        %p1225 = scmp.lt.s32.totalorder %s23, 1
        %s1226 = scalar_select %p1225, %s23, 1
        %s1227 = smul.addr %s1226, 2
        %s1228 = scalar_lea.vmem %s9, %s1227
      $region76: #{dc_bilstm_forward.5} parent=67 // pred_fallthru
        _
      // Predicated region
      $region77: #{dc_bilstm_forward.5} parent=67 // pred_check
        %p1229 = pneg %p296
      $region78: #{dc_bilstm_forward.5} parent=67 // pred_check_branch
        %1231 = sbr.rel (%p1229) target = $region80
      $region79: #{dc_bilstm_forward.5} parent=67 // pred_region
        %p1232 = scmp.lt.s32.totalorder %s23, 1
        %s1233 = scalar_select %p1232, %s23, 1
        %s1234 = smul.addr %s1233, 2
        %s1235 = scalar_lea.vmem %s10, %s1234
      $region80: #{dc_bilstm_forward.5} parent=67 // pred_fallthru
        _
    $region68: #{dc_bilstm_forward.5} parent=5 // pred_fallthru
      _
  $region6: #{dc_bilstm_forward.5} parent=0 // loop_footer
    %s21 = sadd.s32 1, %s17
  $region7: #{dc_bilstm_forward.5} parent=0 // loop_footer_branch
    %16 = sbr.rel target = $region3
  $region8: #{dc_bilstm_forward.5} parent=0 // loop_exit
    _

</llo_original>
